<compile_context>
chip_gen: v7x
topology: tpu7x:2x2x1
jax: 0.10.0
libtpu: 0.0.40
codegen_flags: <defaults>
</compile_context>

<pallas_src>
import math
import jax
import jax.numpy as jnp
from jax.experimental import pallas as pl
from jax.experimental.pallas import tpu as pltpu

B, S, H = 2, 8, 32          # batch, seq, hidden_size
NUM_HEADS = 4
HEAD_DIM = H // NUM_HEADS
INNER = 4 * H               # n_inner is None -> 4 * hidden_size
LN_EPS = 1e-5
ATTN_SCALE = 1.0 / math.sqrt(HEAD_DIM)

# Set True on v6e/v7x for full bf16 MXU rate on the MLP matmuls (small numeric drift
# vs. the f32 torch reference — gate on an accuracy check). Default matches reference.
MLP_WEIGHTS_BF16 = False


def _layernorm_f32(x, g, b):
    mean = jnp.mean(x, axis=-1, keepdims=True)
    var = jnp.mean(jnp.square(x - mean), axis=-1, keepdims=True)
    return (x - mean) * jax.lax.rsqrt(var + LN_EPS) * g + b


def adapter_block_kernel(x_ref, g1_ref, b1_ref,
                         wq_ref, wk_ref, wv_ref, bq_ref, bk_ref, bv_ref,
                         wproj_ref, bproj_ref, g2_ref, b2_ref,
                         wfc_ref, bfc_ref, wpr_ref, bpr_ref, o_ref):
    """One batch element per grid step: ln_1 + attn + residual + ln_2 + MLP."""
    x = x_ref[0]                                          # (S, H) f32 — also the residual

    # ---- ln_1 in f32, then .to(bfloat16) as in the torch reference ----
    h = _layernorm_f32(x, g1_ref[...], b1_ref[...]).astype(jnp.bfloat16)

    # ---- q/k/v projections (bf16 weights, f32 accumulation). ATTN_SCALE is already
    #      folded into wq/bq host-side, so no score scaling is needed below. ----
    q = jnp.dot(h, wq_ref[...], preferred_element_type=jnp.float32) + bq_ref[...].astype(jnp.float32)
    k = jnp.dot(h, wk_ref[...], preferred_element_type=jnp.float32) + bk_ref[...].astype(jnp.float32)
    v = jnp.dot(h, wv_ref[...], preferred_element_type=jnp.float32) + bv_ref[...].astype(jnp.float32)

    # Split heads once (no per-head loop / slicing / concat).
    q4 = q.reshape(S, NUM_HEADS, HEAD_DIM).astype(jnp.bfloat16)
    k4 = k.reshape(S, NUM_HEADS, HEAD_DIM).astype(jnp.bfloat16)
    v4 = v.reshape(S, NUM_HEADS, HEAD_DIM).astype(jnp.bfloat16)

    # Static causal mask; masked_bias = -10000.0 (HF GPT-2).
    row = jax.lax.broadcasted_iota(jnp.int32, (S, S), 0)
    col = jax.lax.broadcasted_iota(jnp.int32, (S, S), 1)
    causal = col <= row                                   # (S, S)

    # Head-batched QK^T: (NUM_HEADS, S, S), f32 accumulation.
    s = jnp.einsum('qhd,khd->hqk', q4, k4, preferred_element_type=jnp.float32)
    s = jnp.where(causal[None, :, :], s, jnp.float32(-10000.0))

    # Manual softmax: max-subtract, exp (EUP), reciprocal (EUP), multiply.
    m = jnp.max(s, axis=-1, keepdims=True)
    e = jnp.exp(s - m)
    p = e * pl.reciprocal(jnp.sum(e, axis=-1, keepdims=True), approx=True)
    # TODO(synk): attn_dropout treated as identity (inference).

    # Head-batched P@V, output directly in (q, h, d) order -> merge heads by reshape.
    o = jnp.einsum('hqk,khd->qhd', p.astype(jnp.bfloat16), v4,
                   preferred_element_type=jnp.float32)
    attn_out = o.reshape(S, H).astype(jnp.bfloat16)       # (S, H)

    # ---- c_proj (bf16 weights) ----
    proj = jnp.dot(attn_out, wproj_ref[...], preferred_element_type=jnp.float32)
    proj = (proj + bproj_ref[...].astype(jnp.float32)).astype(jnp.bfloat16)
    # TODO(synk): resid_dropout treated as identity (inference).
    # attn_output (bf16) + residual (f32) -> f32, matching torch type promotion.
    x1 = proj.astype(jnp.float32) + x

    # ---- ln_2 + GPT2MLP; no second residual, matching the reference ----
    h2 = _layernorm_f32(x1, g2_ref[...], b2_ref[...])
    fc = jnp.dot(h2.astype(wfc_ref.dtype), wfc_ref[...],
                 preferred_element_type=jnp.float32) + bfc_ref[...]
    # gelu_new (GPT-2 default activation_function) — tanh runs on the EUP.
    act = 0.5 * fc * (1.0 + jnp.tanh(0.7978845608028654 * (fc + 0.044715 * fc * fc * fc)))
    out = jnp.dot(act.astype(wpr_ref.dtype), wpr_ref[...],
                  preferred_element_type=jnp.float32) + bpr_ref[...]
    # TODO(synk): mlp dropout treated as identity (inference).
    o_ref[0] = out


def _cost_estimate():
    flops = (2 * B * S * H * (3 * H)                    # q/k/v projections
             + 2 * B * NUM_HEADS * S * S * HEAD_DIM * 2  # QK^T + P@V
             + 2 * B * S * H * H                         # c_proj
             + 2 * B * S * H * INNER * 2)                # c_fc + mlp c_proj
    transcendentals = (B * NUM_HEADS * S * S             # exp
                       + B * NUM_HEADS * S               # reciprocal
                       + B * S * INNER                   # tanh
                       + 4 * B * S)                      # rsqrt (2 layernorms)
    mlp_w_bytes = 2 if MLP_WEIGHTS_BF16 else 4
    bytes_accessed = (2 * B * S * H * 4                              # x in + out
                      + (4 * H * H + 4 * H) * 2                      # attn weights (bf16)
                      + (2 * H * INNER) * mlp_w_bytes                # mlp weights
                      + (INNER + H) * 4 + 4 * H * 4)                 # biases + ln params
    return pl.CostEstimate(flops=flops, transcendentals=transcendentals,
                           bytes_accessed=bytes_accessed)


def adapter_block_forward(x, params):
    """x: (B, S, H) f32. Grid over batch (parallel) — shards across TCs on v7x."""
    def full_spec(a):
        n = a.ndim
        return pl.BlockSpec(a.shape, lambda b, n=n: (0,) * n)

    weight_args = [params["ln1_g"], params["ln1_b"],
                   params["c_attn_wq"], params["c_attn_wk"], params["c_attn_wv"],
                   params["c_attn_bq"], params["c_attn_bk"], params["c_attn_bv"],
                   params["c_proj_w"], params["c_proj_b"],
                   params["ln2_g"], params["ln2_b"],
                   params["c_fc_w"], params["c_fc_b"],
                   params["c_proj2_w"], params["c_proj2_b"]]

    in_specs = [pl.BlockSpec((1, S, H), lambda b: (b, 0, 0))] + [full_spec(a) for a in weight_args]
    out_spec = pl.BlockSpec((1, S, H), lambda b: (b, 0, 0))

    out = pl.pallas_call(
        adapter_block_kernel,
        out_shape=jax.ShapeDtypeStruct((B, S, H), jnp.float32),
        grid_spec=pltpu.PrefetchScalarGridSpec(
            num_scalar_prefetch=0,
            grid=(B,),
            in_specs=in_specs,
            out_specs=out_spec),
        compiler_params=pltpu.CompilerParams(
            dimension_semantics=("parallel",),          # megacore sharding on v7x
            vmem_limit_bytes=32 * 1024 * 1024),         # safe on v7x (64 MiB) and v5e/v6e
        cost_estimate=_cost_estimate(),
    )(x, *weight_args)
    return out


def make_params(key):
    ks = jax.random.split(key, 4)
    # Matches torch init: LayerNorm w=1/b=0; Conv1D weight ~ N(0, 0.02), bias = 0.
    c_attn_w = 0.02 * jax.random.normal(ks[0], (H, 3 * H), dtype=jnp.float32)
    c_attn_b = jnp.zeros((1, 3 * H), jnp.float32)
    # Host-side (free) weight prep: split the fused Conv1D c_attn weight into
    # Wq / Wk / Wv along columns and fold the 1/sqrt(head_dim) attention scale into
    # the query projection. This removes in-kernel lane slicing at offsets 0/H/2H and
    # the extra f32 score multiply.
    wq = (c_attn_w[:, 0 * H:1 * H] * ATTN_SCALE).astype(jnp.bfloat16)
    wk = c_attn_w[:, 1 * H:2 * H].astype(jnp.bfloat16)
    wv = c_attn_w[:, 2 * H:3 * H].astype(jnp.bfloat16)
    bq = (c_attn_b[:, 0 * H:1 * H] * ATTN_SCALE).astype(jnp.bfloat16)
    bk = c_attn_b[:, 1 * H:2 * H].astype(jnp.bfloat16)
    bv = c_attn_b[:, 2 * H:3 * H].astype(jnp.bfloat16)

    mlp_dtype = jnp.bfloat16 if MLP_WEIGHTS_BF16 else jnp.float32
    return {
        "ln1_g": jnp.ones((1, H), jnp.float32),
        "ln1_b": jnp.zeros((1, H), jnp.float32),
        "c_attn_wq": wq, "c_attn_wk": wk, "c_attn_wv": wv,
        "c_attn_bq": bq, "c_attn_bk": bk, "c_attn_bv": bv,
        "c_proj_w": (0.02 * jax.random.normal(ks[1], (H, H))).astype(jnp.bfloat16),
        "c_proj_b": jnp.zeros((1, H), jnp.bfloat16),
        "ln2_g": jnp.ones((1, H), jnp.float32),
        "ln2_b": jnp.zeros((1, H), jnp.float32),
        "c_fc_w": (0.02 * jax.random.normal(ks[2], (H, INNER))).astype(mlp_dtype),
        "c_fc_b": jnp.zeros((1, INNER), jnp.float32),
        "c_proj2_w": (0.02 * jax.random.normal(ks[3], (INNER, H))).astype(mlp_dtype),
        "c_proj2_b": jnp.zeros((1, H), jnp.float32),
    }


if __name__ == "__main__":
    key = jax.random.PRNGKey(0)
    pkey, xkey = jax.random.split(key)
    params = make_params(pkey)
    x = jax.random.normal(xkey, (B, S, H), dtype=jnp.float32)

    out = adapter_block_forward(x, params)
    jax.block_until_ready(out)
    assert out.shape == (B, S, H) and out.dtype == jnp.float32
    print("KERNEL_OK")
</pallas_src>

<mosaic_0001>
module attributes {stable_mosaic.version = 11 : i64} {
  func.func @adapter_block_kernel(%arg0: i32, %arg1: memref<1x8x32xf32, #tpu.memory_space<vmem>>, %arg2: memref<1x32xf32, #tpu.memory_space<vmem>>, %arg3: memref<1x32xf32, #tpu.memory_space<vmem>>, %arg4: memref<32x32xbf16, #tpu.memory_space<vmem>>, %arg5: memref<32x32xbf16, #tpu.memory_space<vmem>>, %arg6: memref<32x32xbf16, #tpu.memory_space<vmem>>, %arg7: memref<1x32xbf16, #tpu.memory_space<vmem>>, %arg8: memref<1x32xbf16, #tpu.memory_space<vmem>>, %arg9: memref<1x32xbf16, #tpu.memory_space<vmem>>, %arg10: memref<32x32xbf16, #tpu.memory_space<vmem>>, %arg11: memref<1x32xbf16, #tpu.memory_space<vmem>>, %arg12: memref<1x32xf32, #tpu.memory_space<vmem>>, %arg13: memref<1x32xf32, #tpu.memory_space<vmem>>, %arg14: memref<32x128xf32, #tpu.memory_space<vmem>>, %arg15: memref<1x128xf32, #tpu.memory_space<vmem>>, %arg16: memref<128x32xf32, #tpu.memory_space<vmem>>, %arg17: memref<1x32xf32, #tpu.memory_space<vmem>>, %arg18: memref<1x8x32xf32, #tpu.memory_space<vmem>>) attributes {dimension_semantics = [#tpu.dimension_semantics<parallel>], iteration_bounds = array<i64: 2>, scalar_prefetch = 0 : i64, scratch_operands = 0 : i64, tpu.core_type = #tpu.core_type<tc>, window_params = [{transform_indices = @transform_0, window_bounds = array<i64: 1, 8, 32>}, {pipeline_mode = #tpu.pipeline_mode<synchronous>, transform_indices = @transform_1, window_bounds = array<i64: 1, 32>}, {pipeline_mode = #tpu.pipeline_mode<synchronous>, transform_indices = @transform_2, window_bounds = array<i64: 1, 32>}, {pipeline_mode = #tpu.pipeline_mode<synchronous>, transform_indices = @transform_3, window_bounds = array<i64: 32, 32>}, {pipeline_mode = #tpu.pipeline_mode<synchronous>, transform_indices = @transform_4, window_bounds = array<i64: 32, 32>}, {pipeline_mode = #tpu.pipeline_mode<synchronous>, transform_indices = @transform_5, window_bounds = array<i64: 32, 32>}, {pipeline_mode = #tpu.pipeline_mode<synchronous>, transform_indices = @transform_6, window_bounds = array<i64: 1, 32>}, {pipeline_mode = #tpu.pipeline_mode<synchronous>, transform_indices = @transform_7, window_bounds = array<i64: 1, 32>}, {pipeline_mode = #tpu.pipeline_mode<synchronous>, transform_indices = @transform_8, window_bounds = array<i64: 1, 32>}, {pipeline_mode = #tpu.pipeline_mode<synchronous>, transform_indices = @transform_9, window_bounds = array<i64: 32, 32>}, {pipeline_mode = #tpu.pipeline_mode<synchronous>, transform_indices = @transform_10, window_bounds = array<i64: 1, 32>}, {pipeline_mode = #tpu.pipeline_mode<synchronous>, transform_indices = @transform_11, window_bounds = array<i64: 1, 32>}, {pipeline_mode = #tpu.pipeline_mode<synchronous>, transform_indices = @transform_12, window_bounds = array<i64: 1, 32>}, {pipeline_mode = #tpu.pipeline_mode<synchronous>, transform_indices = @transform_13, window_bounds = array<i64: 32, 128>}, {pipeline_mode = #tpu.pipeline_mode<synchronous>, transform_indices = @transform_14, window_bounds = array<i64: 1, 128>}, {pipeline_mode = #tpu.pipeline_mode<synchronous>, transform_indices = @transform_15, window_bounds = array<i64: 128, 32>}, {pipeline_mode = #tpu.pipeline_mode<synchronous>, transform_indices = @transform_16, window_bounds = array<i64: 1, 32>}, {transform_indices = @transform_17, window_bounds = array<i64: 1, 8, 32>}]} {
    %c0 = arith.constant 0 : index
    %c0_0 = arith.constant 0 : index
    %c0_1 = arith.constant 0 : index
    %0 = vector.load %arg1[%c0, %c0_0, %c0_1] : memref<1x8x32xf32, #tpu.memory_space<vmem>>, vector<1x8x32xf32>
    %1 = vector.shape_cast %0 : vector<1x8x32xf32> to vector<8x32xf32>
    %c0_2 = arith.constant 0 : index
    %c0_3 = arith.constant 0 : index
    %2 = vector.load %arg2[%c0_2, %c0_3] : memref<1x32xf32, #tpu.memory_space<vmem>>, vector<1x32xf32>
    %c0_4 = arith.constant 0 : index
    %c0_5 = arith.constant 0 : index
    %3 = vector.load %arg3[%c0_4, %c0_5] : memref<1x32xf32, #tpu.memory_space<vmem>>, vector<1x32xf32>
    %cst = arith.constant dense<0.000000e+00> : vector<8xf32>
    %4 = vector.multi_reduction <add>, %1, %cst [1] : vector<8x32xf32> to vector<8xf32>
    %5 = vector.shape_cast %4 : vector<8xf32> to vector<8x1xf32>
    %cst_6 = arith.constant 3.200000e+01 : f32
    %6 = vector.broadcast %cst_6 : f32 to vector<8x1xf32>
    %7 = arith.divf %5, %6 : vector<8x1xf32>
    %8 = vector.broadcast %7 : vector<8x1xf32> to vector<8x32xf32>
    %9 = arith.subf %1, %8 : vector<8x32xf32>
    %10 = arith.mulf %9, %9 : vector<8x32xf32>
    %cst_7 = arith.constant dense<0.000000e+00> : vector<8xf32>
    %11 = vector.multi_reduction <add>, %10, %cst_7 [1] : vector<8x32xf32> to vector<8xf32>
    %12 = vector.shape_cast %11 : vector<8xf32> to vector<8x1xf32>
    %cst_8 = arith.constant 3.200000e+01 : f32
    %13 = vector.broadcast %cst_8 : f32 to vector<8x1xf32>
    %14 = arith.divf %12, %13 : vector<8x1xf32>
    %15 = vector.broadcast %7 : vector<8x1xf32> to vector<8x32xf32>
    %16 = arith.subf %1, %15 : vector<8x32xf32>
    %cst_9 = arith.constant 9.99999974E-6 : f32
    %17 = vector.broadcast %cst_9 : f32 to vector<8x1xf32>
    %18 = arith.addf %14, %17 : vector<8x1xf32>
    %19 = math.rsqrt %18 : vector<8x1xf32>
    %20 = vector.broadcast %19 : vector<8x1xf32> to vector<8x32xf32>
    %21 = arith.mulf %16, %20 : vector<8x32xf32>
    %22 = vector.broadcast %2 : vector<1x32xf32> to vector<8x32xf32>
    %23 = arith.mulf %21, %22 : vector<8x32xf32>
    %24 = vector.broadcast %3 : vector<1x32xf32> to vector<8x32xf32>
    %25 = arith.addf %23, %24 : vector<8x32xf32>
    %26 = arith.truncf %25 : vector<8x32xf32> to vector<8x32xbf16>
    %c0_10 = arith.constant 0 : index
    %c0_11 = arith.constant 0 : index
    %27 = vector.load %arg4[%c0_10, %c0_11] : memref<32x32xbf16, #tpu.memory_space<vmem>>, vector<32x32xbf16>
    %cst_12 = arith.constant dense<0.000000e+00> : vector<8x32xf32>
    %28 = tpu.matmul %26, %27, %cst_12 {dimension_numbers = #tpu.dot_dimension_numbers<[1], [0], [0], [1], [0, 0, 1, 1], [], []>} : vector<8x32xbf16>, vector<32x32xbf16>, vector<8x32xf32> -> vector<8x32xf32>
    %c0_13 = arith.constant 0 : index
    %c0_14 = arith.constant 0 : index
    %29 = vector.load %arg7[%c0_13, %c0_14] : memref<1x32xbf16, #tpu.memory_space<vmem>>, vector<1x32xbf16>
    %30 = arith.extf %29 : vector<1x32xbf16> to vector<1x32xf32>
    %31 = vector.broadcast %30 : vector<1x32xf32> to vector<8x32xf32>
    %32 = arith.addf %28, %31 : vector<8x32xf32>
    %c0_15 = arith.constant 0 : index
    %c0_16 = arith.constant 0 : index
    %33 = vector.load %arg5[%c0_15, %c0_16] : memref<32x32xbf16, #tpu.memory_space<vmem>>, vector<32x32xbf16>
    %cst_17 = arith.constant dense<0.000000e+00> : vector<8x32xf32>
    %34 = tpu.matmul %26, %33, %cst_17 {dimension_numbers = #tpu.dot_dimension_numbers<[1], [0], [0], [1], [0, 0, 1, 1], [], []>} : vector<8x32xbf16>, vector<32x32xbf16>, vector<8x32xf32> -> vector<8x32xf32>
    %c0_18 = arith.constant 0 : index
    %c0_19 = arith.constant 0 : index
    %35 = vector.load %arg8[%c0_18, %c0_19] : memref<1x32xbf16, #tpu.memory_space<vmem>>, vector<1x32xbf16>
    %36 = arith.extf %35 : vector<1x32xbf16> to vector<1x32xf32>
    %37 = vector.broadcast %36 : vector<1x32xf32> to vector<8x32xf32>
    %38 = arith.addf %34, %37 : vector<8x32xf32>
    %c0_20 = arith.constant 0 : index
    %c0_21 = arith.constant 0 : index
    %39 = vector.load %arg6[%c0_20, %c0_21] : memref<32x32xbf16, #tpu.memory_space<vmem>>, vector<32x32xbf16>
    %cst_22 = arith.constant dense<0.000000e+00> : vector<8x32xf32>
    %40 = tpu.matmul %26, %39, %cst_22 {dimension_numbers = #tpu.dot_dimension_numbers<[1], [0], [0], [1], [0, 0, 1, 1], [], []>} : vector<8x32xbf16>, vector<32x32xbf16>, vector<8x32xf32> -> vector<8x32xf32>
    %c0_23 = arith.constant 0 : index
    %c0_24 = arith.constant 0 : index
    %41 = vector.load %arg9[%c0_23, %c0_24] : memref<1x32xbf16, #tpu.memory_space<vmem>>, vector<1x32xbf16>
    %42 = arith.extf %41 : vector<1x32xbf16> to vector<1x32xf32>
    %43 = vector.broadcast %42 : vector<1x32xf32> to vector<8x32xf32>
    %44 = arith.addf %40, %43 : vector<8x32xf32>
    %45 = vector.shape_cast %32 : vector<8x32xf32> to vector<8x4x8xf32>
    %46 = arith.truncf %45 : vector<8x4x8xf32> to vector<8x4x8xbf16>
    %47 = vector.shape_cast %38 : vector<8x32xf32> to vector<8x4x8xf32>
    %48 = arith.truncf %47 : vector<8x4x8xf32> to vector<8x4x8xbf16>
    %49 = vector.shape_cast %44 : vector<8x32xf32> to vector<8x4x8xf32>
    %50 = arith.truncf %49 : vector<8x4x8xf32> to vector<8x4x8xbf16>
    %51 = tpu.iota {dimensions = array<i32: 0>} : vector<8x8xi32>
    %52 = tpu.iota {dimensions = array<i32: 1>} : vector<8x8xi32>
    %53 = arith.cmpi sle, %52, %51 : vector<8x8xi32>
    "tpu.trace_start"() <{level = 10 : i32, message = "qhd,khd->hqk"}> : () -> ()
    %cst_25 = arith.constant dense<0.000000e+00> : vector<4x8x8xf32>
    %54 = tpu.matmul %46, %48, %cst_25 {dimension_numbers = #tpu.dot_dimension_numbers<[2], [2], [0], [0], [0, 1, 0, 0, 1, 0], [1], [1]>} : vector<8x4x8xbf16>, vector<8x4x8xbf16>, vector<4x8x8xf32> -> vector<4x8x8xf32>
    "tpu.trace_stop"() : () -> ()
    %55 = vector.shape_cast %53 : vector<8x8xi1> to vector<1x8x8xi1>
    %cst_26 = arith.constant -1.000000e+04 : f32
    %56 = vector.shape_cast %55 : vector<1x8x8xi1> to vector<1x8x8xi1>
    %57 = vector.broadcast %56 : vector<1x8x8xi1> to vector<4x8x8xi1>
    %58 = vector.broadcast %cst_26 : f32 to vector<4x8x8xf32>
    %59 = arith.select %57, %54, %58 : vector<4x8x8xi1>, vector<4x8x8xf32>
    %cst_27 = arith.constant dense<0xFF800000> : vector<4x8xf32>
    %60 = vector.multi_reduction <maximumf>, %59, %cst_27 [2] : vector<4x8x8xf32> to vector<4x8xf32>
    %61 = vector.shape_cast %60 : vector<4x8xf32> to vector<4x8x1xf32>
    %62 = vector.broadcast %61 : vector<4x8x1xf32> to vector<4x8x8xf32>
    %63 = arith.subf %59, %62 : vector<4x8x8xf32>
    %64 = math.exp %63 : vector<4x8x8xf32>
    %cst_28 = arith.constant dense<0.000000e+00> : vector<4x8xf32>
    %65 = vector.multi_reduction <add>, %64, %cst_28 [2] : vector<4x8x8xf32> to vector<4x8xf32>
    %66 = vector.shape_cast %65 : vector<4x8xf32> to vector<4x8x1xf32>
    %67 = tpu.reciprocal %66 {approx = true} : vector<4x8x1xf32> -> vector<4x8x1xf32>
    %68 = vector.broadcast %67 : vector<4x8x1xf32> to vector<4x8x8xf32>
    %69 = arith.mulf %64, %68 : vector<4x8x8xf32>
    %70 = arith.truncf %69 : vector<4x8x8xf32> to vector<4x8x8xbf16>
    "tpu.trace_start"() <{level = 10 : i32, message = "hqk,khd->qhd"}> : () -> ()
    %cst_29 = arith.constant dense<0.000000e+00> : vector<4x8x8xf32>
    %71 = tpu.matmul %50, %70, %cst_29 {dimension_numbers = #tpu.dot_dimension_numbers<[0], [2], [2], [1], [0, 1, 0, 2, 1, 1], [1], [0]>} : vector<8x4x8xbf16>, vector<4x8x8xbf16>, vector<4x8x8xf32> -> vector<4x8x8xf32>
    %72 = tpu.transpose %71, [2, 0, 1] : vector<4x8x8xf32> -> vector<8x4x8xf32>
    "tpu.trace_stop"() : () -> ()
    %73 = vector.shape_cast %72 : vector<8x4x8xf32> to vector<8x32xf32>
    %74 = arith.truncf %73 : vector<8x32xf32> to vector<8x32xbf16>
    %c0_30 = arith.constant 0 : index
    %c0_31 = arith.constant 0 : index
    %75 = vector.load %arg10[%c0_30, %c0_31] : memref<32x32xbf16, #tpu.memory_space<vmem>>, vector<32x32xbf16>
    %cst_32 = arith.constant dense<0.000000e+00> : vector<8x32xf32>
    %76 = tpu.matmul %74, %75, %cst_32 {dimension_numbers = #tpu.dot_dimension_numbers<[1], [0], [0], [1], [0, 0, 1, 1], [], []>} : vector<8x32xbf16>, vector<32x32xbf16>, vector<8x32xf32> -> vector<8x32xf32>
    %c0_33 = arith.constant 0 : index
    %c0_34 = arith.constant 0 : index
    %77 = vector.load %arg11[%c0_33, %c0_34] : memref<1x32xbf16, #tpu.memory_space<vmem>>, vector<1x32xbf16>
    %78 = arith.extf %77 : vector<1x32xbf16> to vector<1x32xf32>
    %79 = vector.broadcast %78 : vector<1x32xf32> to vector<8x32xf32>
    %80 = arith.addf %76, %79 : vector<8x32xf32>
    %81 = arith.truncf %80 : vector<8x32xf32> to vector<8x32xbf16>
    %82 = arith.extf %81 : vector<8x32xbf16> to vector<8x32xf32>
    %83 = arith.addf %82, %1 : vector<8x32xf32>
    %c0_35 = arith.constant 0 : index
    %c0_36 = arith.constant 0 : index
    %84 = vector.load %arg12[%c0_35, %c0_36] : memref<1x32xf32, #tpu.memory_space<vmem>>, vector<1x32xf32>
    %c0_37 = arith.constant 0 : index
    %c0_38 = arith.constant 0 : index
    %85 = vector.load %arg13[%c0_37, %c0_38] : memref<1x32xf32, #tpu.memory_space<vmem>>, vector<1x32xf32>
    %cst_39 = arith.constant dense<0.000000e+00> : vector<8xf32>
    %86 = vector.multi_reduction <add>, %83, %cst_39 [1] : vector<8x32xf32> to vector<8xf32>
    %87 = vector.shape_cast %86 : vector<8xf32> to vector<8x1xf32>
    %cst_40 = arith.constant 3.200000e+01 : f32
    %88 = vector.broadcast %cst_40 : f32 to vector<8x1xf32>
    %89 = arith.divf %87, %88 : vector<8x1xf32>
    %90 = vector.broadcast %89 : vector<8x1xf32> to vector<8x32xf32>
    %91 = arith.subf %83, %90 : vector<8x32xf32>
    %92 = arith.mulf %91, %91 : vector<8x32xf32>
    %cst_41 = arith.constant dense<0.000000e+00> : vector<8xf32>
    %93 = vector.multi_reduction <add>, %92, %cst_41 [1] : vector<8x32xf32> to vector<8xf32>
    %94 = vector.shape_cast %93 : vector<8xf32> to vector<8x1xf32>
    %cst_42 = arith.constant 3.200000e+01 : f32
    %95 = vector.broadcast %cst_42 : f32 to vector<8x1xf32>
    %96 = arith.divf %94, %95 : vector<8x1xf32>
    %97 = vector.broadcast %89 : vector<8x1xf32> to vector<8x32xf32>
    %98 = arith.subf %83, %97 : vector<8x32xf32>
    %cst_43 = arith.constant 9.99999974E-6 : f32
    %99 = vector.broadcast %cst_43 : f32 to vector<8x1xf32>
    %100 = arith.addf %96, %99 : vector<8x1xf32>
    %101 = math.rsqrt %100 : vector<8x1xf32>
    %102 = vector.broadcast %101 : vector<8x1xf32> to vector<8x32xf32>
    %103 = arith.mulf %98, %102 : vector<8x32xf32>
    %104 = vector.broadcast %84 : vector<1x32xf32> to vector<8x32xf32>
    %105 = arith.mulf %103, %104 : vector<8x32xf32>
    %106 = vector.broadcast %85 : vector<1x32xf32> to vector<8x32xf32>
    %107 = arith.addf %105, %106 : vector<8x32xf32>
    %c0_44 = arith.constant 0 : index
    %c0_45 = arith.constant 0 : index
    %108 = vector.load %arg14[%c0_44, %c0_45] : memref<32x128xf32, #tpu.memory_space<vmem>>, vector<32x128xf32>
    %cst_46 = arith.constant dense<0.000000e+00> : vector<8x128xf32>
    %109 = tpu.matmul %107, %108, %cst_46 {dimension_numbers = #tpu.dot_dimension_numbers<[1], [0], [0], [1], [0, 0, 1, 1], [], []>} : vector<8x32xf32>, vector<32x128xf32>, vector<8x128xf32> -> vector<8x128xf32>
    %c0_47 = arith.constant 0 : index
    %c0_48 = arith.constant 0 : index
    %110 = vector.load %arg15[%c0_47, %c0_48] : memref<1x128xf32, #tpu.memory_space<vmem>>, vector<1x128xf32>
    %111 = vector.broadcast %110 : vector<1x128xf32> to vector<8x128xf32>
    %112 = arith.addf %109, %111 : vector<8x128xf32>
    %cst_49 = arith.constant 5.000000e-01 : f32
    %113 = vector.broadcast %cst_49 : f32 to vector<8x128xf32>
    %114 = arith.mulf %113, %112 : vector<8x128xf32>
    %cst_50 = arith.constant 4.471500e-02 : f32
    %115 = vector.broadcast %cst_50 : f32 to vector<8x128xf32>
    %116 = arith.mulf %115, %112 : vector<8x128xf32>
    %117 = arith.mulf %116, %112 : vector<8x128xf32>
    %118 = arith.mulf %117, %112 : vector<8x128xf32>
    %119 = arith.addf %112, %118 : vector<8x128xf32>
    %cst_51 = arith.constant 0.797884583 : f32
    %120 = vector.broadcast %cst_51 : f32 to vector<8x128xf32>
    %121 = arith.mulf %120, %119 : vector<8x128xf32>
    %122 = math.tanh %121 : vector<8x128xf32>
    %cst_52 = arith.constant 1.000000e+00 : f32
    %123 = vector.broadcast %cst_52 : f32 to vector<8x128xf32>
    %124 = arith.addf %123, %122 : vector<8x128xf32>
    %125 = arith.mulf %114, %124 : vector<8x128xf32>
    %c0_53 = arith.constant 0 : index
    %c0_54 = arith.constant 0 : index
    %126 = vector.load %arg16[%c0_53, %c0_54] : memref<128x32xf32, #tpu.memory_space<vmem>>, vector<128x32xf32>
    %cst_55 = arith.constant dense<0.000000e+00> : vector<8x32xf32>
    %127 = tpu.matmul %125, %126, %cst_55 {dimension_numbers = #tpu.dot_dimension_numbers<[1], [0], [0], [1], [0, 0, 1, 1], [], []>} : vector<8x128xf32>, vector<128x32xf32>, vector<8x32xf32> -> vector<8x32xf32>
    %c0_56 = arith.constant 0 : index
    %c0_57 = arith.constant 0 : index
    %128 = vector.load %arg17[%c0_56, %c0_57] : memref<1x32xf32, #tpu.memory_space<vmem>>, vector<1x32xf32>
    %129 = vector.broadcast %128 : vector<1x32xf32> to vector<8x32xf32>
    %130 = arith.addf %127, %129 : vector<8x32xf32>
    %c0_58 = arith.constant 0 : index
    %c0_59 = arith.constant 0 : index
    %c0_60 = arith.constant 0 : index
    %131 = vector.load %arg18[%c0_58, %c0_59, %c0_60] : memref<1x8x32xf32, #tpu.memory_space<vmem>>, vector<1x8x32xf32>
    %132 = vector.shape_cast %131 : vector<1x8x32xf32> to vector<8x32xf32>
    %133 = vector.shape_cast %130 : vector<8x32xf32> to vector<1x8x32xf32>
    tpu.vector_store %arg18[%c0_58, %c0_59, %c0_60], %133 {strides = array<i32>} : memref<1x8x32xf32, #tpu.memory_space<vmem>>, vector<1x8x32xf32>,
    return
  }
  func.func @transform_0(%arg0: i32) -> (i32, i32, i32) {
    %c0_i32 = arith.constant 0 : i32
    %c0_i32_0 = arith.constant 0 : i32
    %c0_i32_1 = arith.constant 0 : i32
    return %arg0, %c0_i32, %c0_i32_0 : i32, i32, i32
  }
  func.func @transform_1(%arg0: i32) -> (i32, i32) {
    %c0_i32 = arith.constant 0 : i32
    %c0_i32_0 = arith.constant 0 : i32
    %c0_i32_1 = arith.constant 0 : i32
    return %c0_i32, %c0_i32_0 : i32, i32
  }
  func.func @transform_2(%arg0: i32) -> (i32, i32) {
    %c0_i32 = arith.constant 0 : i32
    %c0_i32_0 = arith.constant 0 : i32
    %c0_i32_1 = arith.constant 0 : i32
    return %c0_i32, %c0_i32_0 : i32, i32
  }
  func.func @transform_3(%arg0: i32) -> (i32, i32) {
    %c0_i32 = arith.constant 0 : i32
    %c0_i32_0 = arith.constant 0 : i32
    %c0_i32_1 = arith.constant 0 : i32
    return %c0_i32, %c0_i32_0 : i32, i32
  }
  func.func @transform_4(%arg0: i32) -> (i32, i32) {
    %c0_i32 = arith.constant 0 : i32
    %c0_i32_0 = arith.constant 0 : i32
    %c0_i32_1 = arith.constant 0 : i32
    return %c0_i32, %c0_i32_0 : i32, i32
  }
  func.func @transform_5(%arg0: i32) -> (i32, i32) {
    %c0_i32 = arith.constant 0 : i32
    %c0_i32_0 = arith.constant 0 : i32
    %c0_i32_1 = arith.constant 0 : i32
    return %c0_i32, %c0_i32_0 : i32, i32
  }
  func.func @transform_6(%arg0: i32) -> (i32, i32) {
    %c0_i32 = arith.constant 0 : i32
    %c0_i32_0 = arith.constant 0 : i32
    %c0_i32_1 = arith.constant 0 : i32
    return %c0_i32, %c0_i32_0 : i32, i32
  }
  func.func @transform_7(%arg0: i32) -> (i32, i32) {
    %c0_i32 = arith.constant 0 : i32
    %c0_i32_0 = arith.constant 0 : i32
    %c0_i32_1 = arith.constant 0 : i32
    return %c0_i32, %c0_i32_0 : i32, i32
  }
  func.func @transform_8(%arg0: i32) -> (i32, i32) {
    %c0_i32 = arith.constant 0 : i32
    %c0_i32_0 = arith.constant 0 : i32
    %c0_i32_1 = arith.constant 0 : i32
    return %c0_i32, %c0_i32_0 : i32, i32
  }
  func.func @transform_9(%arg0: i32) -> (i32, i32) {
    %c0_i32 = arith.constant 0 : i32
    %c0_i32_0 = arith.constant 0 : i32
    %c0_i32_1 = arith.constant 0 : i32
    return %c0_i32, %c0_i32_0 : i32, i32
  }
  func.func @transform_10(%arg0: i32) -> (i32, i32) {
    %c0_i32 = arith.constant 0 : i32
    %c0_i32_0 = arith.constant 0 : i32
    %c0_i32_1 = arith.constant 0 : i32
    return %c0_i32, %c0_i32_0 : i32, i32
  }
  func.func @transform_11(%arg0: i32) -> (i32, i32) {
    %c0_i32 = arith.constant 0 : i32
    %c0_i32_0 = arith.constant 0 : i32
    %c0_i32_1 = arith.constant 0 : i32
    return %c0_i32, %c0_i32_0 : i32, i32
  }
  func.func @transform_12(%arg0: i32) -> (i32, i32) {
    %c0_i32 = arith.constant 0 : i32
    %c0_i32_0 = arith.constant 0 : i32
    %c0_i32_1 = arith.constant 0 : i32
    return %c0_i32, %c0_i32_0 : i32, i32
  }
  func.func @transform_13(%arg0: i32) -> (i32, i32) {
    %c0_i32 = arith.constant 0 : i32
    %c0_i32_0 = arith.constant 0 : i32
    %c0_i32_1 = arith.constant 0 : i32
    return %c0_i32, %c0_i32_0 : i32, i32
  }
  func.func @transform_14(%arg0: i32) -> (i32, i32) {
    %c0_i32 = arith.constant 0 : i32
    %c0_i32_0 = arith.constant 0 : i32
    %c0_i32_1 = arith.constant 0 : i32
    return %c0_i32, %c0_i32_0 : i32, i32
  }
  func.func @transform_15(%arg0: i32) -> (i32, i32) {
    %c0_i32 = arith.constant 0 : i32
    %c0_i32_0 = arith.constant 0 : i32
    %c0_i32_1 = arith.constant 0 : i32
    return %c0_i32, %c0_i32_0 : i32, i32
  }
  func.func @transform_16(%arg0: i32) -> (i32, i32) {
    %c0_i32 = arith.constant 0 : i32
    %c0_i32_0 = arith.constant 0 : i32
    %c0_i32_1 = arith.constant 0 : i32
    return %c0_i32, %c0_i32_0 : i32, i32
  }
  func.func @transform_17(%arg0: i32) -> (i32, i32, i32) {
    %c0_i32 = arith.constant 0 : i32
    %c0_i32_0 = arith.constant 0 : i32
    %c0_i32_1 = arith.constant 0 : i32
    return %arg0, %c0_i32, %c0_i32_0 : i32, i32, i32
  }
}

</mosaic_0001>

<llo_original>
// kernel: tpu_custom_call.1
$region0: #{tpu_custom_call.1}
  #allocation0 [shape = 'u32[]', space=smem, size = 0x4, offset = 0x4, fixed_abs, tag = 'smem constant byte address 0x4 - core index']
  #allocation1 [shape = 'u32[144,128]{1,0:T(1,128)}', space=vmem, size = 0x12000, scoped, tag = 'internal scratch']
  %s0 = inlined_call_operand.vmem [shape: f32[2,8,32], index: 0, kind: input, shape index: {}]
  %s1 = inlined_call_operand.vmem [shape: f32[1,32], index: 1, kind: input, shape index: {}]
  %s2 = inlined_call_operand.vmem [shape: f32[1,32], index: 2, kind: input, shape index: {}]
  %s3 = inlined_call_operand.vmem [shape: bf16[32,32], index: 3, kind: input, shape index: {}]
  %s4 = inlined_call_operand.vmem [shape: bf16[32,32], index: 4, kind: input, shape index: {}]
  %s5 = inlined_call_operand.vmem [shape: bf16[32,32], index: 5, kind: input, shape index: {}]
  %s6 = inlined_call_operand.vmem [shape: bf16[1,32], index: 6, kind: input, shape index: {}]
  %s7 = inlined_call_operand.vmem [shape: bf16[1,32], index: 7, kind: input, shape index: {}]
  %s8 = inlined_call_operand.vmem [shape: bf16[1,32], index: 8, kind: input, shape index: {}]
  %s9 = inlined_call_operand.vmem [shape: bf16[32,32], index: 9, kind: input, shape index: {}]
  %s10 = inlined_call_operand.vmem [shape: bf16[1,32], index: 10, kind: input, shape index: {}]
  %s11 = inlined_call_operand.vmem [shape: f32[1,32], index: 11, kind: input, shape index: {}]
  %s12 = inlined_call_operand.vmem [shape: f32[1,32], index: 12, kind: input, shape index: {}]
  %s13 = inlined_call_operand.vmem [shape: f32[32,128], index: 13, kind: input, shape index: {}]
  %s14 = inlined_call_operand.vmem [shape: f32[1,128], index: 14, kind: input, shape index: {}]
  %s15 = inlined_call_operand.vmem [shape: f32[128,32], index: 15, kind: input, shape index: {}]
  %s16 = inlined_call_operand.vmem [shape: f32[1,32], index: 16, kind: input, shape index: {}]
  %s17 = inlined_call_operand.hbm [shape: f32[2,8,32], index: 17, kind: output, shape index: {}]
  %s18 = sld [smem:[#allocation0]]
  $region101: #{tpu_custom_call.1} parent=0
    _
  %s20 = ssub.s32 1, %s18
  %s21 = scalar_select 0, %s20, %s18
  $region1: #{tpu_custom_call.1} parent=0
    #allocation2 [shape = 'u8[8192]{0}', space=vmem, size = 0x2000, scoped, tag = 'output window, operand 0']
    #allocation3 [shape = 's32[2]{0}', space=sflag, size = 0x8, scoped, tag = 'scoped memory for tpu_custom_call.1']
    %22 = vsyncpa [#allocation3], 0
    %s23 = scalar_lea.sflag [#allocation3], 1
    %24 = vsyncpa %s23, 0
    loop: start=0, step=1, limit=4
    $region2: #{tpu_custom_call.1} parent=1 // loop_pre_header
      _
    $region3: #{tpu_custom_call.1} parent=1 // loop_header
      %s26 = sphi 0, %s30
      %p27 = scmp.ge.s32.totalorder %s26, 4
      %s36 = sphi 0, %s38
      %s39 = sphi 0, %s36
      %s40 = sphi 0, %s39
      %s56 = sphi 0, %s40
      %s60 = sphi 0, %s60
      %s62 = sphi 0, %s60
      %s63 = sphi 0, %s62
      %s77 = sphi 0, %s63
      %s81 = sphi 0, %s81
      %s83 = sphi 0, %s81
      %s84 = sphi 0, %s83
      %s98 = sphi 0, %s84
      %s102 = sphi 0, %s102
      %s104 = sphi 0, %s102
      %s105 = sphi 0, %s104
      %s119 = sphi 0, %s105
      %s123 = sphi 0, %s123
      %s125 = sphi 0, %s123
      %s126 = sphi 0, %s125
      %s140 = sphi 0, %s126
      %s144 = sphi 0, %s144
      %s146 = sphi 0, %s144
      %s147 = sphi 0, %s146
      %s161 = sphi 0, %s147
      %s165 = sphi 0, %s165
      %s167 = sphi 0, %s165
      %s168 = sphi 0, %s167
      %s182 = sphi 0, %s168
      %s186 = sphi 0, %s186
      %s188 = sphi 0, %s186
      %s189 = sphi 0, %s188
      %s203 = sphi 0, %s189
      %s207 = sphi 0, %s207
      %s209 = sphi 0, %s207
      %s210 = sphi 0, %s209
      %s224 = sphi 0, %s210
      %s228 = sphi 0, %s228
      %s230 = sphi 0, %s228
      %s231 = sphi 0, %s230
      %s245 = sphi 0, %s231
      %s249 = sphi 0, %s249
      %s251 = sphi 0, %s249
      %s252 = sphi 0, %s251
      %s266 = sphi 0, %s252
      %s270 = sphi 0, %s270
      %s272 = sphi 0, %s270
      %s273 = sphi 0, %s272
      %s287 = sphi 0, %s273
      %s291 = sphi 0, %s291
      %s293 = sphi 0, %s291
      %s294 = sphi 0, %s293
      %s308 = sphi 0, %s294
      %s312 = sphi 0, %s312
      %s314 = sphi 0, %s312
      %s315 = sphi 0, %s314
      %s329 = sphi 0, %s315
      %s333 = sphi 0, %s333
      %s335 = sphi 0, %s333
      %s336 = sphi 0, %s335
      %s350 = sphi 0, %s336
      %s354 = sphi 0, %s354
      %s356 = sphi 0, %s354
      %s357 = sphi 0, %s356
      %s371 = sphi 0, %s357
      %s375 = sphi 0, %s375
      %s377 = sphi 0, %s375
      %s378 = sphi 0, %s377
      %s392 = sphi 0, %s378
      %s398 = sphi 0, %s400
      %s401 = sphi 0, %s398
      %s402 = sphi 0, %s401
      %s418 = sphi 0, %s402
    $region4: #{tpu_custom_call.1} parent=1 // loop_header_branch
      %29 = sbr.rel (%p27) target = $region8
    $region5: #{tpu_custom_call.1} parent=1 // loop_body
      %s31 = ssub.s32 %s26, 1
      %s32 = ssub.s32 %s26, 2
      %s33 = sadd.s32 %s26, 1
      %s34 = ssub.s32 %s26, %s33
      %p35 = scmp.eq.s32.totalorder %s34, 0
      %s37 = sadd.s32 %s36, 1
      %s38 = scalar_select %p35, %s36, %s37
      %p41 = pneg %p35
      %p42 = scmp.eq.s32.totalorder %s26, 1
      %p43 = por %p41, %p42
      %p44 = scmp.ne.s32.totalorder %s36, %s39
      %p45 = scmp.eq.s32.totalorder %s26, 0
      %p46 = por %p44, %p45
      %p47 = scmp.ne.s32.totalorder %s36, %s39
      %p48 = scmp.eq.s32.totalorder %s31, 1
      %p49 = por %p47, %p48
      %p50 = scmp.ne.s32.totalorder %s39, %s40
      %p51 = scmp.eq.s32.totalorder %s31, 0
      %p52 = por %p50, %p51
      %p53 = scmp.ne.s32.totalorder %s39, %s40
      %p54 = scmp.eq.s32.totalorder %s32, 1
      %p55 = por %p53, %p54
      %p57 = scmp.ne.s32.totalorder %s40, %s56
      %p58 = scmp.eq.s32.totalorder %s32, 0
      %p59 = por %p57, %p58
      %s61 = sadd.s32 %s60, 1
      %p64 = scmp.eq.s32.totalorder %s26, 1
      %p65 = scmp.ne.s32.totalorder %s60, %s62
      %p66 = scmp.eq.s32.totalorder %s26, 0
      %p67 = por %p65, %p66
      %p68 = scmp.ne.s32.totalorder %s60, %s62
      %p69 = scmp.eq.s32.totalorder %s31, 1
      %p70 = por %p68, %p69
      %p71 = scmp.ne.s32.totalorder %s62, %s63
      %p72 = scmp.eq.s32.totalorder %s31, 0
      %p73 = por %p71, %p72
      %p74 = scmp.ne.s32.totalorder %s62, %s63
      %p75 = scmp.eq.s32.totalorder %s32, 1
      %p76 = por %p74, %p75
      %p78 = scmp.ne.s32.totalorder %s63, %s77
      %p79 = scmp.eq.s32.totalorder %s32, 0
      %p80 = por %p78, %p79
      %s82 = sadd.s32 %s81, 1
      %p85 = scmp.eq.s32.totalorder %s26, 1
      %p86 = scmp.ne.s32.totalorder %s81, %s83
      %p87 = scmp.eq.s32.totalorder %s26, 0
      %p88 = por %p86, %p87
      %p89 = scmp.ne.s32.totalorder %s81, %s83
      %p90 = scmp.eq.s32.totalorder %s31, 1
      %p91 = por %p89, %p90
      %p92 = scmp.ne.s32.totalorder %s83, %s84
      %p93 = scmp.eq.s32.totalorder %s31, 0
      %p94 = por %p92, %p93
      %p95 = scmp.ne.s32.totalorder %s83, %s84
      %p96 = scmp.eq.s32.totalorder %s32, 1
      %p97 = por %p95, %p96
      %p99 = scmp.ne.s32.totalorder %s84, %s98
      %p100 = scmp.eq.s32.totalorder %s32, 0
      %p101 = por %p99, %p100
      %s103 = sadd.s32 %s102, 1
      %p106 = scmp.eq.s32.totalorder %s26, 1
      %p107 = scmp.ne.s32.totalorder %s102, %s104
      %p108 = scmp.eq.s32.totalorder %s26, 0
      %p109 = por %p107, %p108
      %p110 = scmp.ne.s32.totalorder %s102, %s104
      %p111 = scmp.eq.s32.totalorder %s31, 1
      %p112 = por %p110, %p111
      %p113 = scmp.ne.s32.totalorder %s104, %s105
      %p114 = scmp.eq.s32.totalorder %s31, 0
      %p115 = por %p113, %p114
      %p116 = scmp.ne.s32.totalorder %s104, %s105
      %p117 = scmp.eq.s32.totalorder %s32, 1
      %p118 = por %p116, %p117
      %p120 = scmp.ne.s32.totalorder %s105, %s119
      %p121 = scmp.eq.s32.totalorder %s32, 0
      %p122 = por %p120, %p121
      %s124 = sadd.s32 %s123, 1
      %p127 = scmp.eq.s32.totalorder %s26, 1
      %p128 = scmp.ne.s32.totalorder %s123, %s125
      %p129 = scmp.eq.s32.totalorder %s26, 0
      %p130 = por %p128, %p129
      %p131 = scmp.ne.s32.totalorder %s123, %s125
      %p132 = scmp.eq.s32.totalorder %s31, 1
      %p133 = por %p131, %p132
      %p134 = scmp.ne.s32.totalorder %s125, %s126
      %p135 = scmp.eq.s32.totalorder %s31, 0
      %p136 = por %p134, %p135
      %p137 = scmp.ne.s32.totalorder %s125, %s126
      %p138 = scmp.eq.s32.totalorder %s32, 1
      %p139 = por %p137, %p138
      %p141 = scmp.ne.s32.totalorder %s126, %s140
      %p142 = scmp.eq.s32.totalorder %s32, 0
      %p143 = por %p141, %p142
      %s145 = sadd.s32 %s144, 1
      %p148 = scmp.eq.s32.totalorder %s26, 1
      %p149 = scmp.ne.s32.totalorder %s144, %s146
      %p150 = scmp.eq.s32.totalorder %s26, 0
      %p151 = por %p149, %p150
      %p152 = scmp.ne.s32.totalorder %s144, %s146
      %p153 = scmp.eq.s32.totalorder %s31, 1
      %p154 = por %p152, %p153
      %p155 = scmp.ne.s32.totalorder %s146, %s147
      %p156 = scmp.eq.s32.totalorder %s31, 0
      %p157 = por %p155, %p156
      %p158 = scmp.ne.s32.totalorder %s146, %s147
      %p159 = scmp.eq.s32.totalorder %s32, 1
      %p160 = por %p158, %p159
      %p162 = scmp.ne.s32.totalorder %s147, %s161
      %p163 = scmp.eq.s32.totalorder %s32, 0
      %p164 = por %p162, %p163
      %s166 = sadd.s32 %s165, 1
      %p169 = scmp.eq.s32.totalorder %s26, 1
      %p170 = scmp.ne.s32.totalorder %s165, %s167
      %p171 = scmp.eq.s32.totalorder %s26, 0
      %p172 = por %p170, %p171
      %p173 = scmp.ne.s32.totalorder %s165, %s167
      %p174 = scmp.eq.s32.totalorder %s31, 1
      %p175 = por %p173, %p174
      %p176 = scmp.ne.s32.totalorder %s167, %s168
      %p177 = scmp.eq.s32.totalorder %s31, 0
      %p178 = por %p176, %p177
      %p179 = scmp.ne.s32.totalorder %s167, %s168
      %p180 = scmp.eq.s32.totalorder %s32, 1
      %p181 = por %p179, %p180
      %p183 = scmp.ne.s32.totalorder %s168, %s182
      %p184 = scmp.eq.s32.totalorder %s32, 0
      %p185 = por %p183, %p184
      %s187 = sadd.s32 %s186, 1
      %p190 = scmp.eq.s32.totalorder %s26, 1
      %p191 = scmp.ne.s32.totalorder %s186, %s188
      %p192 = scmp.eq.s32.totalorder %s26, 0
      %p193 = por %p191, %p192
      %p194 = scmp.ne.s32.totalorder %s186, %s188
      %p195 = scmp.eq.s32.totalorder %s31, 1
      %p196 = por %p194, %p195
      %p197 = scmp.ne.s32.totalorder %s188, %s189
      %p198 = scmp.eq.s32.totalorder %s31, 0
      %p199 = por %p197, %p198
      %p200 = scmp.ne.s32.totalorder %s188, %s189
      %p201 = scmp.eq.s32.totalorder %s32, 1
      %p202 = por %p200, %p201
      %p204 = scmp.ne.s32.totalorder %s189, %s203
      %p205 = scmp.eq.s32.totalorder %s32, 0
      %p206 = por %p204, %p205
      %s208 = sadd.s32 %s207, 1
      %p211 = scmp.eq.s32.totalorder %s26, 1
      %p212 = scmp.ne.s32.totalorder %s207, %s209
      %p213 = scmp.eq.s32.totalorder %s26, 0
      %p214 = por %p212, %p213
      %p215 = scmp.ne.s32.totalorder %s207, %s209
      %p216 = scmp.eq.s32.totalorder %s31, 1
      %p217 = por %p215, %p216
      %p218 = scmp.ne.s32.totalorder %s209, %s210
      %p219 = scmp.eq.s32.totalorder %s31, 0
      %p220 = por %p218, %p219
      %p221 = scmp.ne.s32.totalorder %s209, %s210
      %p222 = scmp.eq.s32.totalorder %s32, 1
      %p223 = por %p221, %p222
      %p225 = scmp.ne.s32.totalorder %s210, %s224
      %p226 = scmp.eq.s32.totalorder %s32, 0
      %p227 = por %p225, %p226
      %s229 = sadd.s32 %s228, 1
      %p232 = scmp.eq.s32.totalorder %s26, 1
      %p233 = scmp.ne.s32.totalorder %s228, %s230
      %p234 = scmp.eq.s32.totalorder %s26, 0
      %p235 = por %p233, %p234
      %p236 = scmp.ne.s32.totalorder %s228, %s230
      %p237 = scmp.eq.s32.totalorder %s31, 1
      %p238 = por %p236, %p237
      %p239 = scmp.ne.s32.totalorder %s230, %s231
      %p240 = scmp.eq.s32.totalorder %s31, 0
      %p241 = por %p239, %p240
      %p242 = scmp.ne.s32.totalorder %s230, %s231
      %p243 = scmp.eq.s32.totalorder %s32, 1
      %p244 = por %p242, %p243
      %p246 = scmp.ne.s32.totalorder %s231, %s245
      %p247 = scmp.eq.s32.totalorder %s32, 0
      %p248 = por %p246, %p247
      %s250 = sadd.s32 %s249, 1
      %p253 = scmp.eq.s32.totalorder %s26, 1
      %p254 = scmp.ne.s32.totalorder %s249, %s251
      %p255 = scmp.eq.s32.totalorder %s26, 0
      %p256 = por %p254, %p255
      %p257 = scmp.ne.s32.totalorder %s249, %s251
      %p258 = scmp.eq.s32.totalorder %s31, 1
      %p259 = por %p257, %p258
      %p260 = scmp.ne.s32.totalorder %s251, %s252
      %p261 = scmp.eq.s32.totalorder %s31, 0
      %p262 = por %p260, %p261
      %p263 = scmp.ne.s32.totalorder %s251, %s252
      %p264 = scmp.eq.s32.totalorder %s32, 1
      %p265 = por %p263, %p264
      %p267 = scmp.ne.s32.totalorder %s252, %s266
      %p268 = scmp.eq.s32.totalorder %s32, 0
      %p269 = por %p267, %p268
      %s271 = sadd.s32 %s270, 1
      %p274 = scmp.eq.s32.totalorder %s26, 1
      %p275 = scmp.ne.s32.totalorder %s270, %s272
      %p276 = scmp.eq.s32.totalorder %s26, 0
      %p277 = por %p275, %p276
      %p278 = scmp.ne.s32.totalorder %s270, %s272
      %p279 = scmp.eq.s32.totalorder %s31, 1
      %p280 = por %p278, %p279
      %p281 = scmp.ne.s32.totalorder %s272, %s273
      %p282 = scmp.eq.s32.totalorder %s31, 0
      %p283 = por %p281, %p282
      %p284 = scmp.ne.s32.totalorder %s272, %s273
      %p285 = scmp.eq.s32.totalorder %s32, 1
      %p286 = por %p284, %p285
      %p288 = scmp.ne.s32.totalorder %s273, %s287
      %p289 = scmp.eq.s32.totalorder %s32, 0
      %p290 = por %p288, %p289
      %s292 = sadd.s32 %s291, 1
      %p295 = scmp.eq.s32.totalorder %s26, 1
      %p296 = scmp.ne.s32.totalorder %s291, %s293
      %p297 = scmp.eq.s32.totalorder %s26, 0
      %p298 = por %p296, %p297
      %p299 = scmp.ne.s32.totalorder %s291, %s293
      %p300 = scmp.eq.s32.totalorder %s31, 1
      %p301 = por %p299, %p300
      %p302 = scmp.ne.s32.totalorder %s293, %s294
      %p303 = scmp.eq.s32.totalorder %s31, 0
      %p304 = por %p302, %p303
      %p305 = scmp.ne.s32.totalorder %s293, %s294
      %p306 = scmp.eq.s32.totalorder %s32, 1
      %p307 = por %p305, %p306
      %p309 = scmp.ne.s32.totalorder %s294, %s308
      %p310 = scmp.eq.s32.totalorder %s32, 0
      %p311 = por %p309, %p310
      %s313 = sadd.s32 %s312, 1
      %p316 = scmp.eq.s32.totalorder %s26, 1
      %p317 = scmp.ne.s32.totalorder %s312, %s314
      %p318 = scmp.eq.s32.totalorder %s26, 0
      %p319 = por %p317, %p318
      %p320 = scmp.ne.s32.totalorder %s312, %s314
      %p321 = scmp.eq.s32.totalorder %s31, 1
      %p322 = por %p320, %p321
      %p323 = scmp.ne.s32.totalorder %s314, %s315
      %p324 = scmp.eq.s32.totalorder %s31, 0
      %p325 = por %p323, %p324
      %p326 = scmp.ne.s32.totalorder %s314, %s315
      %p327 = scmp.eq.s32.totalorder %s32, 1
      %p328 = por %p326, %p327
      %p330 = scmp.ne.s32.totalorder %s315, %s329
      %p331 = scmp.eq.s32.totalorder %s32, 0
      %p332 = por %p330, %p331
      %s334 = sadd.s32 %s333, 1
      %p337 = scmp.eq.s32.totalorder %s26, 1
      %p338 = scmp.ne.s32.totalorder %s333, %s335
      %p339 = scmp.eq.s32.totalorder %s26, 0
      %p340 = por %p338, %p339
      %p341 = scmp.ne.s32.totalorder %s333, %s335
      %p342 = scmp.eq.s32.totalorder %s31, 1
      %p343 = por %p341, %p342
      %p344 = scmp.ne.s32.totalorder %s335, %s336
      %p345 = scmp.eq.s32.totalorder %s31, 0
      %p346 = por %p344, %p345
      %p347 = scmp.ne.s32.totalorder %s335, %s336
      %p348 = scmp.eq.s32.totalorder %s32, 1
      %p349 = por %p347, %p348
      %p351 = scmp.ne.s32.totalorder %s336, %s350
      %p352 = scmp.eq.s32.totalorder %s32, 0
      %p353 = por %p351, %p352
      %s355 = sadd.s32 %s354, 1
      %p358 = scmp.eq.s32.totalorder %s26, 1
      %p359 = scmp.ne.s32.totalorder %s354, %s356
      %p360 = scmp.eq.s32.totalorder %s26, 0
      %p361 = por %p359, %p360
      %p362 = scmp.ne.s32.totalorder %s354, %s356
      %p363 = scmp.eq.s32.totalorder %s31, 1
      %p364 = por %p362, %p363
      %p365 = scmp.ne.s32.totalorder %s356, %s357
      %p366 = scmp.eq.s32.totalorder %s31, 0
      %p367 = por %p365, %p366
      %p368 = scmp.ne.s32.totalorder %s356, %s357
      %p369 = scmp.eq.s32.totalorder %s32, 1
      %p370 = por %p368, %p369
      %p372 = scmp.ne.s32.totalorder %s357, %s371
      %p373 = scmp.eq.s32.totalorder %s32, 0
      %p374 = por %p372, %p373
      %s376 = sadd.s32 %s375, 1
      %p379 = scmp.eq.s32.totalorder %s26, 1
      %p380 = scmp.ne.s32.totalorder %s375, %s377
      %p381 = scmp.eq.s32.totalorder %s26, 0
      %p382 = por %p380, %p381
      %p383 = scmp.ne.s32.totalorder %s375, %s377
      %p384 = scmp.eq.s32.totalorder %s31, 1
      %p385 = por %p383, %p384
      %p386 = scmp.ne.s32.totalorder %s377, %s378
      %p387 = scmp.eq.s32.totalorder %s31, 0
      %p388 = por %p386, %p387
      %p389 = scmp.ne.s32.totalorder %s377, %s378
      %p390 = scmp.eq.s32.totalorder %s32, 1
      %p391 = por %p389, %p390
      %p393 = scmp.ne.s32.totalorder %s378, %s392
      %p394 = scmp.eq.s32.totalorder %s32, 0
      %p395 = por %p393, %p394
      %s396 = ssub.s32 %s26, %s33
      %p397 = scmp.eq.s32.totalorder %s396, 0
      %s399 = sadd.s32 %s398, 1
      %s400 = scalar_select %p397, %s398, %s399
      %p403 = pneg %p397
      %p404 = scmp.eq.s32.totalorder %s26, 1
      %p405 = por %p403, %p404
      %p406 = scmp.ne.s32.totalorder %s398, %s401
      %p407 = scmp.eq.s32.totalorder %s26, 0
      %p408 = por %p406, %p407
      %p409 = scmp.ne.s32.totalorder %s398, %s401
      %p410 = scmp.eq.s32.totalorder %s31, 1
      %p411 = por %p409, %p410
      %p412 = scmp.ne.s32.totalorder %s401, %s402
      %p413 = scmp.eq.s32.totalorder %s31, 0
      %p414 = por %p412, %p413
      %p415 = scmp.ne.s32.totalorder %s401, %s402
      %p416 = scmp.eq.s32.totalorder %s32, 1
      %p417 = por %p415, %p416
      %p419 = scmp.ne.s32.totalorder %s402, %s418
      %p420 = scmp.eq.s32.totalorder %s32, 0
      %p421 = por %p419, %p420
      %p422 = scmp.le.s32.totalorder 1, %s26
      %p423 = scmp.lt.s32.totalorder %s26, 3
      %p424 = pnand %p422, %p423
      %p425 = pneg %p424
      // Predicated region
      $region9: #{tpu_custom_call.1} parent=5 // pred_check
        _
      $region10: #{tpu_custom_call.1} parent=5 // pred_check_branch
        %427 = sbr.rel (%p424) target = $region12
      $region11: #{tpu_custom_call.1} parent=5 // pred_region
        %s428 = ssub.s32 %s26, 1
        // Predicated region
        $region13: #{tpu_custom_call.1} parent=11 // pred_check
          %p429 = pneg %p73
        $region14: #{tpu_custom_call.1} parent=11 // pred_check_branch
          %431 = sbr.rel (%p429) target = $region16
        $region15: #{tpu_custom_call.1} parent=11 // pred_region
          _
        $region16: #{tpu_custom_call.1} parent=11 // pred_fallthru
          _
        // Predicated region
        $region17: #{tpu_custom_call.1} parent=11 // pred_check
          %p432 = pneg %p94
        $region18: #{tpu_custom_call.1} parent=11 // pred_check_branch
          %434 = sbr.rel (%p432) target = $region20
        $region19: #{tpu_custom_call.1} parent=11 // pred_region
          _
        $region20: #{tpu_custom_call.1} parent=11 // pred_fallthru
          _
        // Predicated region
        $region21: #{tpu_custom_call.1} parent=11 // pred_check
          %p435 = pneg %p115
        $region22: #{tpu_custom_call.1} parent=11 // pred_check_branch
          %437 = sbr.rel (%p435) target = $region24
        $region23: #{tpu_custom_call.1} parent=11 // pred_region
          _
        $region24: #{tpu_custom_call.1} parent=11 // pred_fallthru
          _
        // Predicated region
        $region25: #{tpu_custom_call.1} parent=11 // pred_check
          %p438 = pneg %p136
        $region26: #{tpu_custom_call.1} parent=11 // pred_check_branch
          %440 = sbr.rel (%p438) target = $region28
        $region27: #{tpu_custom_call.1} parent=11 // pred_region
          _
        $region28: #{tpu_custom_call.1} parent=11 // pred_fallthru
          _
        // Predicated region
        $region29: #{tpu_custom_call.1} parent=11 // pred_check
          %p441 = pneg %p157
        $region30: #{tpu_custom_call.1} parent=11 // pred_check_branch
          %443 = sbr.rel (%p441) target = $region32
        $region31: #{tpu_custom_call.1} parent=11 // pred_region
          _
        $region32: #{tpu_custom_call.1} parent=11 // pred_fallthru
          _
        // Predicated region
        $region33: #{tpu_custom_call.1} parent=11 // pred_check
          %p444 = pneg %p178
        $region34: #{tpu_custom_call.1} parent=11 // pred_check_branch
          %446 = sbr.rel (%p444) target = $region36
        $region35: #{tpu_custom_call.1} parent=11 // pred_region
          _
        $region36: #{tpu_custom_call.1} parent=11 // pred_fallthru
          _
        // Predicated region
        $region37: #{tpu_custom_call.1} parent=11 // pred_check
          %p447 = pneg %p199
        $region38: #{tpu_custom_call.1} parent=11 // pred_check_branch
          %449 = sbr.rel (%p447) target = $region40
        $region39: #{tpu_custom_call.1} parent=11 // pred_region
          _
        $region40: #{tpu_custom_call.1} parent=11 // pred_fallthru
          _
        // Predicated region
        $region41: #{tpu_custom_call.1} parent=11 // pred_check
          %p450 = pneg %p220
        $region42: #{tpu_custom_call.1} parent=11 // pred_check_branch
          %452 = sbr.rel (%p450) target = $region44
        $region43: #{tpu_custom_call.1} parent=11 // pred_region
          _
        $region44: #{tpu_custom_call.1} parent=11 // pred_fallthru
          _
        // Predicated region
        $region45: #{tpu_custom_call.1} parent=11 // pred_check
          %p453 = pneg %p241
        $region46: #{tpu_custom_call.1} parent=11 // pred_check_branch
          %455 = sbr.rel (%p453) target = $region48
        $region47: #{tpu_custom_call.1} parent=11 // pred_region
          _
        $region48: #{tpu_custom_call.1} parent=11 // pred_fallthru
          _
        // Predicated region
        $region49: #{tpu_custom_call.1} parent=11 // pred_check
          %p456 = pneg %p262
        $region50: #{tpu_custom_call.1} parent=11 // pred_check_branch
          %458 = sbr.rel (%p456) target = $region52
        $region51: #{tpu_custom_call.1} parent=11 // pred_region
          _
        $region52: #{tpu_custom_call.1} parent=11 // pred_fallthru
          _
        // Predicated region
        $region53: #{tpu_custom_call.1} parent=11 // pred_check
          %p459 = pneg %p283
        $region54: #{tpu_custom_call.1} parent=11 // pred_check_branch
          %461 = sbr.rel (%p459) target = $region56
        $region55: #{tpu_custom_call.1} parent=11 // pred_region
          _
        $region56: #{tpu_custom_call.1} parent=11 // pred_fallthru
          _
        // Predicated region
        $region57: #{tpu_custom_call.1} parent=11 // pred_check
          %p462 = pneg %p304
        $region58: #{tpu_custom_call.1} parent=11 // pred_check_branch
          %464 = sbr.rel (%p462) target = $region60
        $region59: #{tpu_custom_call.1} parent=11 // pred_region
          _
        $region60: #{tpu_custom_call.1} parent=11 // pred_fallthru
          _
        // Predicated region
        $region61: #{tpu_custom_call.1} parent=11 // pred_check
          %p465 = pneg %p325
        $region62: #{tpu_custom_call.1} parent=11 // pred_check_branch
          %467 = sbr.rel (%p465) target = $region64
        $region63: #{tpu_custom_call.1} parent=11 // pred_region
          _
        $region64: #{tpu_custom_call.1} parent=11 // pred_fallthru
          _
        // Predicated region
        $region65: #{tpu_custom_call.1} parent=11 // pred_check
          %p468 = pneg %p346
        $region66: #{tpu_custom_call.1} parent=11 // pred_check_branch
          %470 = sbr.rel (%p468) target = $region68
        $region67: #{tpu_custom_call.1} parent=11 // pred_region
          _
        $region68: #{tpu_custom_call.1} parent=11 // pred_fallthru
          _
        // Predicated region
        $region69: #{tpu_custom_call.1} parent=11 // pred_check
          %p471 = pneg %p367
        $region70: #{tpu_custom_call.1} parent=11 // pred_check_branch
          %473 = sbr.rel (%p471) target = $region72
        $region71: #{tpu_custom_call.1} parent=11 // pred_region
          _
        $region72: #{tpu_custom_call.1} parent=11 // pred_fallthru
          _
        // Predicated region
        $region73: #{tpu_custom_call.1} parent=11 // pred_check
          %p474 = pneg %p388
        $region74: #{tpu_custom_call.1} parent=11 // pred_check_branch
          %476 = sbr.rel (%p474) target = $region76
        $region75: #{tpu_custom_call.1} parent=11 // pred_region
          _
        $region76: #{tpu_custom_call.1} parent=11 // pred_fallthru
          _
      $region12: #{tpu_custom_call.1} parent=5 // pred_fallthru
        _
      %p477 = scmp.lt.s32.totalorder %s26, 2
      // Predicated region
      $region77: #{tpu_custom_call.1} parent=5 // pred_check
        %p478 = pneg %p477
      $region78: #{tpu_custom_call.1} parent=5 // pred_check_branch
        %480 = sbr.rel (%p478) target = $region80
      $region79: #{tpu_custom_call.1} parent=5 // pred_region
        // Predicated region
        $region81: #{tpu_custom_call.1} parent=79 // pred_check
          %p481 = pneg %p46
        $region82: #{tpu_custom_call.1} parent=79 // pred_check_branch
          %483 = sbr.rel (%p481) target = $region84
        $region83: #{tpu_custom_call.1} parent=79 // pred_region
          %p484 = scmp.lt.s32.totalorder %s26, 1
          %s485 = scalar_select %p484, %s26, 1
          %s486 = smul.addr %s485, 8
          %s487 = scalar_lea.vmem %s0, %s486
        $region84: #{tpu_custom_call.1} parent=79 // pred_fallthru
          _
      $region80: #{tpu_custom_call.1} parent=5 // pred_fallthru
        _
      %p488 = scmp.le.s32.totalorder 1, %s26
      %p489 = scmp.lt.s32.totalorder %s26, 3
      %p490 = pnand %p488, %p489
      %p491 = pneg %p490
      // Predicated region
      $region85: #{tpu_custom_call.1} parent=5 // pred_check
        _
      $region86: #{tpu_custom_call.1} parent=5 // pred_check_branch
        %493 = sbr.rel (%p490) target = $region88
      $region87: #{tpu_custom_call.1} parent=5 // pred_region
        %s494 = ssub.s32 %s26, 1
        %p495 = scmp.lt.s32.totalorder %s31, 1
        %s496 = scalar_select %p495, %s31, 1
        %s497 = smul.addr %s496, 8
        %s498 = scalar_lea.vmem %s0, %s497
        %p499 = pneg %p52
        %p500 = pneg %p49
        %p501 = pneg %p73
        %p502 = pneg %p70
        %p503 = pneg %p94
        %p504 = pneg %p91
        %p505 = pneg %p115
        %p506 = pneg %p112
        %p507 = pneg %p136
        %p508 = pneg %p133
        %p509 = pneg %p157
        %p510 = pneg %p154
        %p511 = pneg %p178
        %p512 = pneg %p175
        %p513 = pneg %p199
        %p514 = pneg %p196
        %p515 = pneg %p220
        %p516 = pneg %p217
        %p517 = pneg %p241
        %p518 = pneg %p238
        %p519 = pneg %p262
        %p520 = pneg %p259
        %p521 = pneg %p283
        %p522 = pneg %p280
        %p523 = pneg %p304
        %p524 = pneg %p301
        %p525 = pneg %p325
        %p526 = pneg %p322
        %p527 = pneg %p346
        %p528 = pneg %p343
        %p529 = pneg %p367
        %p530 = pneg %p364
        %p531 = pneg %p388
        %p532 = pneg %p385
        %p533 = pneg %p414
        %p534 = pneg %p411
        %s535 = sand.u32 %s401, 1
        %s536 = scalar_lea.sflag [#allocation3], %s535
        %s537 = sand.u32 %s401, 1
        %s538 = smul.addr %s537, 8
        %s539 = scalar_lea.vmem [#allocation2], %s538
        %p540 = scmp.lt.s32.totalorder %s31, 1
        %s541 = scalar_select %p540, %s31, 1
        %s542 = smul.addr %s541, 8
        %s543 = scalar_lea.vmem %s0, %s542
        %v545 = vld [vmem:[%s543] sm:$0xff]
        %v546 = vld [vmem:[%s1] sm:$0x1]
        %v547 = vld [vmem:[%s2] sm:$0x1]
        %vm548 = vcmask 261120
        %v549 = vsel %vm548, %v545, 0.0
        %550 = vadd.xlane.f32.xlu0 %v549
        %v551 = vpop.xlane.xlu0 %550
        %v552 = vrcp.pop 32.0
        %v553 = vmul.f32 %v551, %v552
        %v554 = vsub.f32 %v545, %v553
        %v555 = vmul.f32 %v554, %v554
        %v556 = vsel %vm548, %v555, 0.0
        %557 = vadd.xlane.f32.xlu0 %v556
        %v558 = vpop.xlane.xlu0 %557
        %v559 = vmul.f32 %v558, %v552
        %v560 = vadd.f32 %v559, 1e-05
        %v561 = vrsqrt.pop %v560
        %v562 = vmul.f32 %v554, %v561
        %v564 = vlaneseq
        %v565 = vshrl.u32 %v564, 7
        %v566 = vsub.s32 0, %v565
        %v567 = vrot.slane %v546, %v566
        %v569 = vmul.f32 %v562, %v567
        %v571 = vlaneseq
        %v572 = vshrl.u32 %v571, 7
        %v573 = vsub.s32 0, %v572
        %v574 = vrot.slane %v547, %v573
        %v576 = vadd.f32 %v569, %v574
        %v577 = vpack.c.bf16 %v576, %v576
        %v578 = vld [vmem:[%s3] sm:$0xf]
        %v579 = vld [vmem:[%s3 + $0x4] sm:$0xf]
        %v580 = vld [vmem:[%s3 + $0x8] sm:$0xf]
        %v581 = vld [vmem:[%s3 + $0xc] sm:$0xf]
        %v582 = vld [vmem:[%s6] sm:$0x1]
        %v583 = vunpack.c.l.bf16 %v582
        %v584 = vlaneseq
        %v585 = vshrl.u32 %v584, 7
        %v586 = vsub.s32 0, %v585
        %v587 = vrot.slane %v583, %v586
        %v592 = vunpack.c.l.b16 %v578
        %v593 = vunpack.c.l.b16 %v579
        %v594 = vunpack.c.l.b16 %v580
        %v595 = vunpack.c.l.b16 %v581
        %v596 = vpack.c.b16 %v593, %v592
        %v597 = vpack.c.b16 %v595, %v594
        %v601 = vsel %vm548, %v577, 0
        %603 = vmatprep.subr.bf16.mxu0 0
        %604 = vmatpush1.bf16.msra.mxu0 %v596
        %605 = vmatprep.subr.bf16.mxu0 0
        %606 = vmatpush1.bf16.msra.mxu0 %v597
        %607 = vmatprep.subr.bf16.mxu0 0
        %608 = vmatpush1.bf16.msra.mxu0 0
        %609 = vmatprep.subr.bf16.mxu0 0
        %610 = vmatpush1.bf16.msra.mxu0 0
        %611 = vmatprep.subr.bf16.mxu0 0
        %612 = vmatpush1.bf16.msra.mxu0 0
        %613 = vmatprep.subr.bf16.mxu0 0
        %614 = vmatpush1.bf16.msra.mxu0 0
        %615 = vmatprep.subr.bf16.mxu0 0
        %616 = vmatpush1.bf16.msra.mxu0 0
        %617 = vmatprep.subr.bf16.mxu0 0
        %618 = vmatpush1.bf16.msra.mxu0 0
        %619 = vmatprep.subr.bf16.mxu0 0
        %620 = vmatpush1.bf16.msra.mxu0 0
        %621 = vmatprep.subr.bf16.mxu0 0
        %622 = vmatpush1.bf16.msra.mxu0 0
        %623 = vmatprep.subr.bf16.mxu0 0
        %624 = vmatpush1.bf16.msra.mxu0 0
        %625 = vmatprep.subr.bf16.mxu0 0
        %626 = vmatpush1.bf16.msra.mxu0 0
        %627 = vmatprep.subr.bf16.mxu0 0
        %628 = vmatpush1.bf16.msra.mxu0 0
        %629 = vmatprep.subr.bf16.mxu0 0
        %630 = vmatpush1.bf16.msra.mxu0 0
        %631 = vmatprep.subr.bf16.mxu0 0
        %632 = vmatpush1.bf16.msra.mxu0 0
        %633 = vmatprep.subr.bf16.mxu0 0
        %634 = vmatpush1.bf16.msra.mxu0 0
        %635 = vmatprep.mubr.bf16.mxu0 0
        %636 = vmatmul.mubr.bf16.gmra.mrb[0].mxu0 %v601
        %v637 = vpop.f32.mrb[0].mxu0
        %v638 = vadd.f32 %v587, %v637
        %v639 = vpop.f32.mrb[0].mxu0
        %v640 = vpop.f32.mrb[0].mxu0
        %v641 = vpop.f32.mrb[0].mxu0
        %642 = vdwg.mxu0
        %v643 = vld [vmem:[%s4] sm:$0xf]
        %v644 = vld [vmem:[%s4 + $0x4] sm:$0xf]
        %v645 = vld [vmem:[%s4 + $0x8] sm:$0xf]
        %v646 = vld [vmem:[%s4 + $0xc] sm:$0xf]
        %v647 = vld [vmem:[%s7] sm:$0x1]
        %v648 = vunpack.c.l.bf16 %v647
        %v649 = vlaneseq
        %v650 = vshrl.u32 %v649, 7
        %v651 = vsub.s32 0, %v650
        %v652 = vrot.slane %v648, %v651
        %v657 = vunpack.c.l.b16 %v643
        %v658 = vunpack.c.l.b16 %v644
        %v659 = vunpack.c.l.b16 %v645
        %v660 = vunpack.c.l.b16 %v646
        %v661 = vpack.c.b16 %v658, %v657
        %v662 = vpack.c.b16 %v660, %v659
        %665 = vmatprep.subr.bf16.mxu0 0
        %666 = vmatpush1.bf16.msra.mxu0 %v661
        %667 = vmatprep.subr.bf16.mxu0 0
        %668 = vmatpush1.bf16.msra.mxu0 %v662
        %669 = vmatprep.subr.bf16.mxu0 0
        %670 = vmatpush1.bf16.msra.mxu0 0
        %671 = vmatprep.subr.bf16.mxu0 0
        %672 = vmatpush1.bf16.msra.mxu0 0
        %673 = vmatprep.subr.bf16.mxu0 0
        %674 = vmatpush1.bf16.msra.mxu0 0
        %675 = vmatprep.subr.bf16.mxu0 0
        %676 = vmatpush1.bf16.msra.mxu0 0
        %677 = vmatprep.subr.bf16.mxu0 0
        %678 = vmatpush1.bf16.msra.mxu0 0
        %679 = vmatprep.subr.bf16.mxu0 0
        %680 = vmatpush1.bf16.msra.mxu0 0
        %681 = vmatprep.subr.bf16.mxu0 0
        %682 = vmatpush1.bf16.msra.mxu0 0
        %683 = vmatprep.subr.bf16.mxu0 0
        %684 = vmatpush1.bf16.msra.mxu0 0
        %685 = vmatprep.subr.bf16.mxu0 0
        %686 = vmatpush1.bf16.msra.mxu0 0
        %687 = vmatprep.subr.bf16.mxu0 0
        %688 = vmatpush1.bf16.msra.mxu0 0
        %689 = vmatprep.subr.bf16.mxu0 0
        %690 = vmatpush1.bf16.msra.mxu0 0
        %691 = vmatprep.subr.bf16.mxu0 0
        %692 = vmatpush1.bf16.msra.mxu0 0
        %693 = vmatprep.subr.bf16.mxu0 0
        %694 = vmatpush1.bf16.msra.mxu0 0
        %695 = vmatprep.subr.bf16.mxu0 0
        %696 = vmatpush1.bf16.msra.mxu0 0
        %697 = vmatprep.mubr.bf16.mxu0 0
        %698 = vmatmul.mubr.bf16.gmra.mrb[0].mxu0 %v601
        %v699 = vpop.f32.mrb[0].mxu0
        %v700 = vadd.f32 %v652, %v699
        %v701 = vpop.f32.mrb[0].mxu0
        %v702 = vpop.f32.mrb[0].mxu0
        %v703 = vpop.f32.mrb[0].mxu0
        %704 = vdwg.mxu0
        %v705 = vld [vmem:[%s5] sm:$0xf]
        %v706 = vld [vmem:[%s5 + $0x4] sm:$0xf]
        %v707 = vld [vmem:[%s5 + $0x8] sm:$0xf]
        %v708 = vld [vmem:[%s5 + $0xc] sm:$0xf]
        %v709 = vld [vmem:[%s8] sm:$0x1]
        %v710 = vunpack.c.l.bf16 %v709
        %v711 = vlaneseq
        %v712 = vshrl.u32 %v711, 7
        %v713 = vsub.s32 0, %v712
        %v714 = vrot.slane %v710, %v713
        %v719 = vunpack.c.l.b16 %v705
        %v720 = vunpack.c.l.b16 %v706
        %v721 = vunpack.c.l.b16 %v707
        %v722 = vunpack.c.l.b16 %v708
        %v723 = vpack.c.b16 %v720, %v719
        %v724 = vpack.c.b16 %v722, %v721
        %727 = vmatprep.subr.bf16.mxu0 0
        %728 = vmatpush1.bf16.msra.mxu0 %v723
        %729 = vmatprep.subr.bf16.mxu0 0
        %730 = vmatpush1.bf16.msra.mxu0 %v724
        %731 = vmatprep.subr.bf16.mxu0 0
        %732 = vmatpush1.bf16.msra.mxu0 0
        %733 = vmatprep.subr.bf16.mxu0 0
        %734 = vmatpush1.bf16.msra.mxu0 0
        %735 = vmatprep.subr.bf16.mxu0 0
        %736 = vmatpush1.bf16.msra.mxu0 0
        %737 = vmatprep.subr.bf16.mxu0 0
        %738 = vmatpush1.bf16.msra.mxu0 0
        %739 = vmatprep.subr.bf16.mxu0 0
        %740 = vmatpush1.bf16.msra.mxu0 0
        %741 = vmatprep.subr.bf16.mxu0 0
        %742 = vmatpush1.bf16.msra.mxu0 0
        %743 = vmatprep.subr.bf16.mxu0 0
        %744 = vmatpush1.bf16.msra.mxu0 0
        %745 = vmatprep.subr.bf16.mxu0 0
        %746 = vmatpush1.bf16.msra.mxu0 0
        %747 = vmatprep.subr.bf16.mxu0 0
        %748 = vmatpush1.bf16.msra.mxu0 0
        %749 = vmatprep.subr.bf16.mxu0 0
        %750 = vmatpush1.bf16.msra.mxu0 0
        %751 = vmatprep.subr.bf16.mxu0 0
        %752 = vmatpush1.bf16.msra.mxu0 0
        %753 = vmatprep.subr.bf16.mxu0 0
        %754 = vmatpush1.bf16.msra.mxu0 0
        %755 = vmatprep.subr.bf16.mxu0 0
        %756 = vmatpush1.bf16.msra.mxu0 0
        %757 = vmatprep.subr.bf16.mxu0 0
        %758 = vmatpush1.bf16.msra.mxu0 0
        %759 = vmatprep.mubr.bf16.mxu0 0
        %760 = vmatmul.mubr.bf16.gmra.mrb[0].mxu0 %v601
        %v761 = vpop.f32.mrb[0].mxu0
        %v762 = vadd.f32 %v714, %v761
        %v763 = vpop.f32.mrb[0].mxu0
        %v764 = vpop.f32.mrb[0].mxu0
        %v765 = vpop.f32.mrb[0].mxu0
        %766 = vdwg.mxu0
        %768 = vrot.lane.b32.xlu0 %v638, 120
        %v769 = vpop.permute.xlu0 %768
        %771 = vrot.lane.b32.xlu0 %v638, 112
        %v772 = vpop.permute.xlu0 %771
        %774 = vrot.lane.b32.xlu0 %v638, 104
        %v775 = vpop.permute.xlu0 %774
        %v777 = vcombine.low %v638, %v772
        %v778 = vcombine.high %v638, %v772
        %v780 = vunpack.c.l.s4 1983009808
        %v781 = vunpack.c.0.s8 %v780
        %v782 = vlaneseq
        %v783 = vshrl.u32 %v782, 7
        %v784 = vsub.s32 %v781, %v783
        %v785 = vrot.slane %v777, %v784
        %v787 = vunpack.c.l.s4 1983009808
        %v788 = vunpack.c.0.s8 %v787
        %v789 = vlaneseq
        %v790 = vshrl.u32 %v789, 7
        %v791 = vsub.s32 %v788, %v790
        %v792 = vrot.slane %v778, %v791
        %v793 = vcombine.low %v769, %v775
        %v794 = vcombine.high %v769, %v775
        %v796 = vunpack.c.l.s4 1983009808
        %v797 = vunpack.c.0.s8 %v796
        %v798 = vlaneseq
        %v799 = vshrl.u32 %v798, 7
        %v800 = vsub.s32 %v797, %v799
        %v801 = vrot.slane %v793, %v800
        %v803 = vunpack.c.l.s4 1983009808
        %v804 = vunpack.c.0.s8 %v803
        %v805 = vlaneseq
        %v806 = vshrl.u32 %v805, 7
        %v807 = vsub.s32 %v804, %v806
        %v808 = vrot.slane %v794, %v807
        %v809 = vcombine.low %v785, %v801
        %v810 = vcombine.high %v785, %v801
        %v812 = vunpack.c.l.s4 1934713408
        %v813 = vunpack.c.0.s8 %v812
        %v814 = vlaneseq
        %v815 = vshrl.u32 %v814, 7
        %v816 = vsub.s32 %v813, %v815
        %v817 = vrot.slane %v809, %v816
        %v819 = vunpack.c.l.s4 1934713408
        %v820 = vunpack.c.0.s8 %v819
        %v821 = vlaneseq
        %v822 = vshrl.u32 %v821, 7
        %v823 = vsub.s32 %v820, %v822
        %v824 = vrot.slane %v810, %v823
        %v825 = vcombine.low %v792, %v808
        %v826 = vcombine.high %v792, %v808
        %v828 = vunpack.c.l.s4 1934713408
        %v829 = vunpack.c.0.s8 %v828
        %v830 = vlaneseq
        %v831 = vshrl.u32 %v830, 7
        %v832 = vsub.s32 %v829, %v831
        %v833 = vrot.slane %v825, %v832
        %v835 = vunpack.c.l.s4 1934713408
        %v836 = vunpack.c.0.s8 %v835
        %v837 = vlaneseq
        %v838 = vshrl.u32 %v837, 7
        %v839 = vsub.s32 %v836, %v838
        %v840 = vrot.slane %v826, %v839
        %v841 = vcombine.high %v817, 0.0
        %v842 = vcombine.high %v824, 0.0
        %v843 = vcombine.high %v833, 0.0
        %v844 = vcombine.high %v840, 0.0
        %v845 = vpack.c.bf16 %v817, %v817
        %v846 = vpack.c.bf16 %v841, %v841
        %v847 = vpack.c.bf16 %v824, %v824
        %v848 = vpack.c.bf16 %v842, %v842
        %v849 = vpack.c.bf16 %v833, %v833
        %v850 = vpack.c.bf16 %v843, %v843
        %v851 = vpack.c.bf16 %v840, %v840
        %v852 = vpack.c.bf16 %v844, %v844
        %854 = vrot.lane.b32.xlu0 %v700, 120
        %v855 = vpop.permute.xlu0 %854
        %857 = vrot.lane.b32.xlu0 %v700, 112
        %v858 = vpop.permute.xlu0 %857
        %860 = vrot.lane.b32.xlu0 %v700, 104
        %v861 = vpop.permute.xlu0 %860
        %v863 = vcombine.low %v700, %v858
        %v864 = vcombine.high %v700, %v858
        %v866 = vunpack.c.l.s4 1983009808
        %v867 = vunpack.c.0.s8 %v866
        %v868 = vlaneseq
        %v869 = vshrl.u32 %v868, 7
        %v870 = vsub.s32 %v867, %v869
        %v871 = vrot.slane %v863, %v870
        %v873 = vunpack.c.l.s4 1983009808
        %v874 = vunpack.c.0.s8 %v873
        %v875 = vlaneseq
        %v876 = vshrl.u32 %v875, 7
        %v877 = vsub.s32 %v874, %v876
        %v878 = vrot.slane %v864, %v877
        %v879 = vcombine.low %v855, %v861
        %v880 = vcombine.high %v855, %v861
        %v882 = vunpack.c.l.s4 1983009808
        %v883 = vunpack.c.0.s8 %v882
        %v884 = vlaneseq
        %v885 = vshrl.u32 %v884, 7
        %v886 = vsub.s32 %v883, %v885
        %v887 = vrot.slane %v879, %v886
        %v889 = vunpack.c.l.s4 1983009808
        %v890 = vunpack.c.0.s8 %v889
        %v891 = vlaneseq
        %v892 = vshrl.u32 %v891, 7
        %v893 = vsub.s32 %v890, %v892
        %v894 = vrot.slane %v880, %v893
        %v895 = vcombine.low %v871, %v887
        %v896 = vcombine.high %v871, %v887
        %v898 = vunpack.c.l.s4 1934713408
        %v899 = vunpack.c.0.s8 %v898
        %v900 = vlaneseq
        %v901 = vshrl.u32 %v900, 7
        %v902 = vsub.s32 %v899, %v901
        %v903 = vrot.slane %v895, %v902
        %v905 = vunpack.c.l.s4 1934713408
        %v906 = vunpack.c.0.s8 %v905
        %v907 = vlaneseq
        %v908 = vshrl.u32 %v907, 7
        %v909 = vsub.s32 %v906, %v908
        %v910 = vrot.slane %v896, %v909
        %v911 = vcombine.low %v878, %v894
        %v912 = vcombine.high %v878, %v894
        %v914 = vunpack.c.l.s4 1934713408
        %v915 = vunpack.c.0.s8 %v914
        %v916 = vlaneseq
        %v917 = vshrl.u32 %v916, 7
        %v918 = vsub.s32 %v915, %v917
        %v919 = vrot.slane %v911, %v918
        %v921 = vunpack.c.l.s4 1934713408
        %v922 = vunpack.c.0.s8 %v921
        %v923 = vlaneseq
        %v924 = vshrl.u32 %v923, 7
        %v925 = vsub.s32 %v922, %v924
        %v926 = vrot.slane %v912, %v925
        %v927 = vcombine.high %v903, 0.0
        %v928 = vcombine.high %v910, 0.0
        %v929 = vcombine.high %v919, 0.0
        %v930 = vcombine.high %v926, 0.0
        %v931 = vpack.c.bf16 %v903, %v903
        %v932 = vpack.c.bf16 %v927, %v927
        %v933 = vpack.c.bf16 %v910, %v910
        %v934 = vpack.c.bf16 %v928, %v928
        %v935 = vpack.c.bf16 %v919, %v919
        %v936 = vpack.c.bf16 %v929, %v929
        %v937 = vpack.c.bf16 %v926, %v926
        %v938 = vpack.c.bf16 %v930, %v930
        %940 = vrot.lane.b32.xlu0 %v762, 120
        %v941 = vpop.permute.xlu0 %940
        %943 = vrot.lane.b32.xlu0 %v762, 112
        %v944 = vpop.permute.xlu0 %943
        %946 = vrot.lane.b32.xlu0 %v762, 104
        %v947 = vpop.permute.xlu0 %946
        %v949 = vcombine.low %v762, %v944
        %v950 = vcombine.high %v762, %v944
        %v952 = vunpack.c.l.s4 1983009808
        %v953 = vunpack.c.0.s8 %v952
        %v954 = vlaneseq
        %v955 = vshrl.u32 %v954, 7
        %v956 = vsub.s32 %v953, %v955
        %v957 = vrot.slane %v949, %v956
        %v959 = vunpack.c.l.s4 1983009808
        %v960 = vunpack.c.0.s8 %v959
        %v961 = vlaneseq
        %v962 = vshrl.u32 %v961, 7
        %v963 = vsub.s32 %v960, %v962
        %v964 = vrot.slane %v950, %v963
        %v965 = vcombine.low %v941, %v947
        %v966 = vcombine.high %v941, %v947
        %v968 = vunpack.c.l.s4 1983009808
        %v969 = vunpack.c.0.s8 %v968
        %v970 = vlaneseq
        %v971 = vshrl.u32 %v970, 7
        %v972 = vsub.s32 %v969, %v971
        %v973 = vrot.slane %v965, %v972
        %v975 = vunpack.c.l.s4 1983009808
        %v976 = vunpack.c.0.s8 %v975
        %v977 = vlaneseq
        %v978 = vshrl.u32 %v977, 7
        %v979 = vsub.s32 %v976, %v978
        %v980 = vrot.slane %v966, %v979
        %v981 = vcombine.low %v957, %v973
        %v982 = vcombine.high %v957, %v973
        %v984 = vunpack.c.l.s4 1934713408
        %v985 = vunpack.c.0.s8 %v984
        %v986 = vlaneseq
        %v987 = vshrl.u32 %v986, 7
        %v988 = vsub.s32 %v985, %v987
        %v989 = vrot.slane %v981, %v988
        %v991 = vunpack.c.l.s4 1934713408
        %v992 = vunpack.c.0.s8 %v991
        %v993 = vlaneseq
        %v994 = vshrl.u32 %v993, 7
        %v995 = vsub.s32 %v992, %v994
        %v996 = vrot.slane %v982, %v995
        %v997 = vcombine.low %v964, %v980
        %v998 = vcombine.high %v964, %v980
        %v1000 = vunpack.c.l.s4 1934713408
        %v1001 = vunpack.c.0.s8 %v1000
        %v1002 = vlaneseq
        %v1003 = vshrl.u32 %v1002, 7
        %v1004 = vsub.s32 %v1001, %v1003
        %v1005 = vrot.slane %v997, %v1004
        %v1007 = vunpack.c.l.s4 1934713408
        %v1008 = vunpack.c.0.s8 %v1007
        %v1009 = vlaneseq
        %v1010 = vshrl.u32 %v1009, 7
        %v1011 = vsub.s32 %v1008, %v1010
        %v1012 = vrot.slane %v998, %v1011
        %v1013 = vcombine.high %v989, 0.0
        %v1014 = vcombine.high %v996, 0.0
        %v1015 = vcombine.high %v1005, 0.0
        %v1016 = vcombine.high %v1012, 0.0
        %v1017 = vpack.c.bf16 %v989, %v989
        %v1018 = vpack.c.bf16 %v1013, %v1013
        %v1019 = vpack.c.bf16 %v996, %v996
        %v1020 = vpack.c.bf16 %v1014, %v1014
        %v1021 = vpack.c.bf16 %v1005, %v1005
        %v1022 = vpack.c.bf16 %v1015, %v1015
        %v1023 = vpack.c.bf16 %v1012, %v1012
        %v1024 = vpack.c.bf16 %v1016, %v1016
        %v1025 = vlaneseq
        %v1026 = vshrl.u32 %v1025, 7
        %v1027 = vlaneseq
        %v1028 = vand.u32 %v1027, 127
        %vm1029 = vcmp.le.s32.totalorder %v1028, %v1026
        %v1030 = vcombine.low %v845, %v849
        %v1032 = vunpack.c.l.s4 1983009808
        %v1033 = vunpack.c.0.s8 %v1032
        %v1034 = vlaneseq
        %v1035 = vshrl.u32 %v1034, 7
        %v1036 = vsub.s32 %v1033, %v1035
        %v1037 = vrot.slane %v1030, %v1036
        %v1038 = vcombine.low %v847, %v851
        %v1040 = vunpack.c.l.s4 1983009808
        %v1041 = vunpack.c.0.s8 %v1040
        %v1042 = vlaneseq
        %v1043 = vshrl.u32 %v1042, 7
        %v1044 = vsub.s32 %v1041, %v1043
        %v1045 = vrot.slane %v1038, %v1044
        %v1046 = vcombine.low %v1037, %v1045
        %v1048 = vunpack.c.l.s4 1934713408
        %v1049 = vunpack.c.0.s8 %v1048
        %v1050 = vlaneseq
        %v1051 = vshrl.u32 %v1050, 7
        %v1052 = vsub.s32 %v1049, %v1051
        %v1053 = vrot.slane %v1046, %v1052
        %v1054 = vcombine.high %v1053, 0
        %v1055 = vcombine.low %v846, %v850
        %v1057 = vunpack.c.l.s4 1983009808
        %v1058 = vunpack.c.0.s8 %v1057
        %v1059 = vlaneseq
        %v1060 = vshrl.u32 %v1059, 7
        %v1061 = vsub.s32 %v1058, %v1060
        %v1062 = vrot.slane %v1055, %v1061
        %v1063 = vcombine.low %v848, %v852
        %v1065 = vunpack.c.l.s4 1983009808
        %v1066 = vunpack.c.0.s8 %v1065
        %v1067 = vlaneseq
        %v1068 = vshrl.u32 %v1067, 7
        %v1069 = vsub.s32 %v1066, %v1068
        %v1070 = vrot.slane %v1063, %v1069
        %v1071 = vcombine.low %v1062, %v1070
        %v1073 = vunpack.c.l.s4 1934713408
        %v1074 = vunpack.c.0.s8 %v1073
        %v1075 = vlaneseq
        %v1076 = vshrl.u32 %v1075, 7
        %v1077 = vsub.s32 %v1074, %v1076
        %v1078 = vrot.slane %v1071, %v1077
        %v1079 = vcombine.high %v1078, 0
        %v1082 = vpack.i.b16 %v1078, %v1053
        %v1083 = vshrl.u32 %v1053, 16
        %v1084 = vshrl.u32 %v1078, 16
        %v1085 = vpack.i.b16 %v1084, %v1083
        %v1088 = vpack.i.b16 %v1079, %v1054
        %v1089 = vshrl.u32 %v1054, 16
        %v1090 = vshrl.u32 %v1079, 16
        %v1091 = vpack.i.b16 %v1090, %v1089
        %1092 = vxpose.xlu0.c.b16.start [1/8] %v931, 128
        %1093 = vxpose.xlu0.c.b16.cont [2/8] 0, 128
        %1094 = vxpose.xlu0.c.b16.cont [3/8] 0, 128
        %1095 = vxpose.xlu0.c.b16.cont [4/8] 0, 128
        %1096 = vxpose.xlu0.c.b16.cont [5/8] 0, 128
        %1097 = vxpose.xlu0.c.b16.cont [6/8] 0, 128
        %1098 = vxpose.xlu0.c.b16.cont [7/8] 0, 128
        %1099 = vxpose.xlu0.c.b16.end [8/8] 0, 128
        %v1100 = vpop.trf.xlu0
        %v1101 = vpop.trf.xlu0
        %v1102 = vpop.trf.xlu0
        %v1103 = vpop.trf.xlu0
        %v1104 = vpop.trf.xlu0
        %v1105 = vpop.trf.xlu0
        %v1106 = vpop.trf.xlu0
        %v1107 = vpop.trf.xlu0
        %1108 = vxpose.xlu0.c.b16.start [1/8] %v932, 128
        %1109 = vxpose.xlu0.c.b16.cont [2/8] 0, 128
        %1110 = vxpose.xlu0.c.b16.cont [3/8] 0, 128
        %1111 = vxpose.xlu0.c.b16.cont [4/8] 0, 128
        %1112 = vxpose.xlu0.c.b16.cont [5/8] 0, 128
        %1113 = vxpose.xlu0.c.b16.cont [6/8] 0, 128
        %1114 = vxpose.xlu0.c.b16.cont [7/8] 0, 128
        %1115 = vxpose.xlu0.c.b16.end [8/8] 0, 128
        %v1116 = vpop.trf.xlu0
        %v1117 = vpop.trf.xlu0
        %v1118 = vpop.trf.xlu0
        %v1119 = vpop.trf.xlu0
        %v1120 = vpop.trf.xlu0
        %v1121 = vpop.trf.xlu0
        %v1122 = vpop.trf.xlu0
        %v1123 = vpop.trf.xlu0
        %1124 = vxpose.xlu0.c.b16.start [1/8] %v933, 128
        %1125 = vxpose.xlu0.c.b16.cont [2/8] 0, 128
        %1126 = vxpose.xlu0.c.b16.cont [3/8] 0, 128
        %1127 = vxpose.xlu0.c.b16.cont [4/8] 0, 128
        %1128 = vxpose.xlu0.c.b16.cont [5/8] 0, 128
        %1129 = vxpose.xlu0.c.b16.cont [6/8] 0, 128
        %1130 = vxpose.xlu0.c.b16.cont [7/8] 0, 128
        %1131 = vxpose.xlu0.c.b16.end [8/8] 0, 128
        %v1132 = vpop.trf.xlu0
        %v1133 = vpop.trf.xlu0
        %v1134 = vpop.trf.xlu0
        %v1135 = vpop.trf.xlu0
        %v1136 = vpop.trf.xlu0
        %v1137 = vpop.trf.xlu0
        %v1138 = vpop.trf.xlu0
        %v1139 = vpop.trf.xlu0
        %1140 = vxpose.xlu0.c.b16.start [1/8] %v934, 128
        %1141 = vxpose.xlu0.c.b16.cont [2/8] 0, 128
        %1142 = vxpose.xlu0.c.b16.cont [3/8] 0, 128
        %1143 = vxpose.xlu0.c.b16.cont [4/8] 0, 128
        %1144 = vxpose.xlu0.c.b16.cont [5/8] 0, 128
        %1145 = vxpose.xlu0.c.b16.cont [6/8] 0, 128
        %1146 = vxpose.xlu0.c.b16.cont [7/8] 0, 128
        %1147 = vxpose.xlu0.c.b16.end [8/8] 0, 128
        %v1148 = vpop.trf.xlu0
        %v1149 = vpop.trf.xlu0
        %v1150 = vpop.trf.xlu0
        %v1151 = vpop.trf.xlu0
        %v1152 = vpop.trf.xlu0
        %v1153 = vpop.trf.xlu0
        %v1154 = vpop.trf.xlu0
        %v1155 = vpop.trf.xlu0
        %1156 = vxpose.xlu0.c.b16.start [1/8] %v935, 128
        %1157 = vxpose.xlu0.c.b16.cont [2/8] 0, 128
        %1158 = vxpose.xlu0.c.b16.cont [3/8] 0, 128
        %1159 = vxpose.xlu0.c.b16.cont [4/8] 0, 128
        %1160 = vxpose.xlu0.c.b16.cont [5/8] 0, 128
        %1161 = vxpose.xlu0.c.b16.cont [6/8] 0, 128
        %1162 = vxpose.xlu0.c.b16.cont [7/8] 0, 128
        %1163 = vxpose.xlu0.c.b16.end [8/8] 0, 128
        %v1164 = vpop.trf.xlu0
        %v1165 = vpop.trf.xlu0
        %v1166 = vpop.trf.xlu0
        %v1167 = vpop.trf.xlu0
        %v1168 = vpop.trf.xlu0
        %v1169 = vpop.trf.xlu0
        %v1170 = vpop.trf.xlu0
        %v1171 = vpop.trf.xlu0
        %1172 = vxpose.xlu0.c.b16.start [1/8] %v936, 128
        %1173 = vxpose.xlu0.c.b16.cont [2/8] 0, 128
        %1174 = vxpose.xlu0.c.b16.cont [3/8] 0, 128
        %1175 = vxpose.xlu0.c.b16.cont [4/8] 0, 128
        %1176 = vxpose.xlu0.c.b16.cont [5/8] 0, 128
        %1177 = vxpose.xlu0.c.b16.cont [6/8] 0, 128
        %1178 = vxpose.xlu0.c.b16.cont [7/8] 0, 128
        %1179 = vxpose.xlu0.c.b16.end [8/8] 0, 128
        %v1180 = vpop.trf.xlu0
        %v1181 = vpop.trf.xlu0
        %v1182 = vpop.trf.xlu0
        %v1183 = vpop.trf.xlu0
        %v1184 = vpop.trf.xlu0
        %v1185 = vpop.trf.xlu0
        %v1186 = vpop.trf.xlu0
        %v1187 = vpop.trf.xlu0
        %1188 = vxpose.xlu0.c.b16.start [1/8] %v937, 128
        %1189 = vxpose.xlu0.c.b16.cont [2/8] 0, 128
        %1190 = vxpose.xlu0.c.b16.cont [3/8] 0, 128
        %1191 = vxpose.xlu0.c.b16.cont [4/8] 0, 128
        %1192 = vxpose.xlu0.c.b16.cont [5/8] 0, 128
        %1193 = vxpose.xlu0.c.b16.cont [6/8] 0, 128
        %1194 = vxpose.xlu0.c.b16.cont [7/8] 0, 128
        %1195 = vxpose.xlu0.c.b16.end [8/8] 0, 128
        %v1196 = vpop.trf.xlu0
        %v1197 = vpop.trf.xlu0
        %v1198 = vpop.trf.xlu0
        %v1199 = vpop.trf.xlu0
        %v1200 = vpop.trf.xlu0
        %v1201 = vpop.trf.xlu0
        %v1202 = vpop.trf.xlu0
        %v1203 = vpop.trf.xlu0
        %1204 = vxpose.xlu0.c.b16.start [1/8] %v938, 128
        %1205 = vxpose.xlu0.c.b16.cont [2/8] 0, 128
        %1206 = vxpose.xlu0.c.b16.cont [3/8] 0, 128
        %1207 = vxpose.xlu0.c.b16.cont [4/8] 0, 128
        %1208 = vxpose.xlu0.c.b16.cont [5/8] 0, 128
        %1209 = vxpose.xlu0.c.b16.cont [6/8] 0, 128
        %1210 = vxpose.xlu0.c.b16.cont [7/8] 0, 128
        %1211 = vxpose.xlu0.c.b16.end [8/8] 0, 128
        %v1212 = vpop.trf.xlu0
        %v1213 = vpop.trf.xlu0
        %v1214 = vpop.trf.xlu0
        %v1215 = vpop.trf.xlu0
        %v1216 = vpop.trf.xlu0
        %v1217 = vpop.trf.xlu0
        %v1218 = vpop.trf.xlu0
        %v1219 = vpop.trf.xlu0
        %v1220 = vcombine.low %v1100, %v1164
        %v1222 = vunpack.c.l.s4 1983009808
        %v1223 = vunpack.c.0.s8 %v1222
        %v1224 = vlaneseq
        %v1225 = vshrl.u32 %v1224, 7
        %v1226 = vsub.s32 %v1223, %v1225
        %v1227 = vrot.slane %v1220, %v1226
        %v1228 = vcombine.low %v1132, %v1196
        %v1230 = vunpack.c.l.s4 1983009808
        %v1231 = vunpack.c.0.s8 %v1230
        %v1232 = vlaneseq
        %v1233 = vshrl.u32 %v1232, 7
        %v1234 = vsub.s32 %v1231, %v1233
        %v1235 = vrot.slane %v1228, %v1234
        %v1236 = vcombine.low %v1227, %v1235
        %v1237 = vcombine.high %v1227, %v1235
        %v1239 = vunpack.c.l.s4 1934713408
        %v1240 = vunpack.c.0.s8 %v1239
        %v1241 = vlaneseq
        %v1242 = vshrl.u32 %v1241, 7
        %v1243 = vsub.s32 %v1240, %v1242
        %v1244 = vrot.slane %v1236, %v1243
        %v1246 = vunpack.c.l.s4 1934713408
        %v1247 = vunpack.c.0.s8 %v1246
        %v1248 = vlaneseq
        %v1249 = vshrl.u32 %v1248, 7
        %v1250 = vsub.s32 %v1247, %v1249
        %v1251 = vrot.slane %v1237, %v1250
        %v1252 = vcombine.high %v1244, 0
        %v1253 = vcombine.high %v1251, 0
        %v1254 = vcombine.low %v1116, %v1180
        %v1256 = vunpack.c.l.s4 1983009808
        %v1257 = vunpack.c.0.s8 %v1256
        %v1258 = vlaneseq
        %v1259 = vshrl.u32 %v1258, 7
        %v1260 = vsub.s32 %v1257, %v1259
        %v1261 = vrot.slane %v1254, %v1260
        %v1262 = vcombine.low %v1148, %v1212
        %v1264 = vunpack.c.l.s4 1983009808
        %v1265 = vunpack.c.0.s8 %v1264
        %v1266 = vlaneseq
        %v1267 = vshrl.u32 %v1266, 7
        %v1268 = vsub.s32 %v1265, %v1267
        %v1269 = vrot.slane %v1262, %v1268
        %v1270 = vcombine.low %v1261, %v1269
        %v1271 = vcombine.high %v1261, %v1269
        %v1273 = vunpack.c.l.s4 1934713408
        %v1274 = vunpack.c.0.s8 %v1273
        %v1275 = vlaneseq
        %v1276 = vshrl.u32 %v1275, 7
        %v1277 = vsub.s32 %v1274, %v1276
        %v1278 = vrot.slane %v1270, %v1277
        %v1280 = vunpack.c.l.s4 1934713408
        %v1281 = vunpack.c.0.s8 %v1280
        %v1282 = vlaneseq
        %v1283 = vshrl.u32 %v1282, 7
        %v1284 = vsub.s32 %v1281, %v1283
        %v1285 = vrot.slane %v1271, %v1284
        %v1286 = vcombine.high %v1278, 0
        %v1287 = vcombine.high %v1285, 0
        %v1290 = vpack.i.b16 %v1278, %v1244
        %v1292 = vshrl.u32 %v1244, 16
        %v1293 = vshrl.u32 %v1278, 16
        %v1294 = vpack.i.b16 %v1293, %v1292
        %v1298 = vpack.i.b16 %v1286, %v1252
        %v1300 = vshrl.u32 %v1252, 16
        %v1301 = vshrl.u32 %v1286, 16
        %v1302 = vpack.i.b16 %v1301, %v1300
        %v1306 = vpack.i.b16 %v1285, %v1251
        %v1308 = vshrl.u32 %v1251, 16
        %v1309 = vshrl.u32 %v1285, 16
        %v1310 = vpack.i.b16 %v1309, %v1308
        %v1314 = vpack.i.b16 %v1287, %v1253
        %v1316 = vshrl.u32 %v1253, 16
        %v1317 = vshrl.u32 %v1287, 16
        %v1318 = vpack.i.b16 %v1317, %v1316
        %1320 = vxpose.xlu0.c.b16.start [1/8] %v1290, 128
        %1321 = vxpose.xlu0.c.b16.cont [2/8] 0, 128
        %1322 = vxpose.xlu0.c.b16.cont [3/8] 0, 128
        %1323 = vxpose.xlu0.c.b16.cont [4/8] 0, 128
        %1324 = vxpose.xlu0.c.b16.cont [5/8] 0, 128
        %1325 = vxpose.xlu0.c.b16.cont [6/8] 0, 128
        %1326 = vxpose.xlu0.c.b16.cont [7/8] 0, 128
        %1327 = vxpose.xlu0.c.b16.end [8/8] 0, 128
        %v1328 = vpop.trf.xlu0
        %v1329 = vpop.trf.xlu0
        %v1330 = vpop.trf.xlu0
        %v1331 = vpop.trf.xlu0
        %v1332 = vpop.trf.xlu0
        %v1333 = vpop.trf.xlu0
        %v1334 = vpop.trf.xlu0
        %v1335 = vpop.trf.xlu0
        %1336 = vxpose.xlu0.c.b16.start [1/8] %v1294, 128
        %1337 = vxpose.xlu0.c.b16.cont [2/8] 0, 128
        %1338 = vxpose.xlu0.c.b16.cont [3/8] 0, 128
        %1339 = vxpose.xlu0.c.b16.cont [4/8] 0, 128
        %1340 = vxpose.xlu0.c.b16.cont [5/8] 0, 128
        %1341 = vxpose.xlu0.c.b16.cont [6/8] 0, 128
        %1342 = vxpose.xlu0.c.b16.cont [7/8] 0, 128
        %1343 = vxpose.xlu0.c.b16.end [8/8] 0, 128
        %v1344 = vpop.trf.xlu0
        %v1345 = vpop.trf.xlu0
        %v1346 = vpop.trf.xlu0
        %v1347 = vpop.trf.xlu0
        %v1348 = vpop.trf.xlu0
        %v1349 = vpop.trf.xlu0
        %v1350 = vpop.trf.xlu0
        %v1351 = vpop.trf.xlu0
        %1352 = vxpose.xlu0.c.b16.start [1/8] %v1298, 128
        %1353 = vxpose.xlu0.c.b16.cont [2/8] 0, 128
        %1354 = vxpose.xlu0.c.b16.cont [3/8] 0, 128
        %1355 = vxpose.xlu0.c.b16.cont [4/8] 0, 128
        %1356 = vxpose.xlu0.c.b16.cont [5/8] 0, 128
        %1357 = vxpose.xlu0.c.b16.cont [6/8] 0, 128
        %1358 = vxpose.xlu0.c.b16.cont [7/8] 0, 128
        %1359 = vxpose.xlu0.c.b16.end [8/8] 0, 128
        %v1360 = vpop.trf.xlu0
        %v1361 = vpop.trf.xlu0
        %v1362 = vpop.trf.xlu0
        %v1363 = vpop.trf.xlu0
        %v1364 = vpop.trf.xlu0
        %v1365 = vpop.trf.xlu0
        %v1366 = vpop.trf.xlu0
        %v1367 = vpop.trf.xlu0
        %1368 = vxpose.xlu0.c.b16.start [1/8] %v1302, 128
        %1369 = vxpose.xlu0.c.b16.cont [2/8] 0, 128
        %1370 = vxpose.xlu0.c.b16.cont [3/8] 0, 128
        %1371 = vxpose.xlu0.c.b16.cont [4/8] 0, 128
        %1372 = vxpose.xlu0.c.b16.cont [5/8] 0, 128
        %1373 = vxpose.xlu0.c.b16.cont [6/8] 0, 128
        %1374 = vxpose.xlu0.c.b16.cont [7/8] 0, 128
        %1375 = vxpose.xlu0.c.b16.end [8/8] 0, 128
        %v1376 = vpop.trf.xlu0
        %v1377 = vpop.trf.xlu0
        %v1378 = vpop.trf.xlu0
        %v1379 = vpop.trf.xlu0
        %v1380 = vpop.trf.xlu0
        %v1381 = vpop.trf.xlu0
        %v1382 = vpop.trf.xlu0
        %v1383 = vpop.trf.xlu0
        %1384 = vxpose.xlu0.c.b16.start [1/8] %v1306, 128
        %1385 = vxpose.xlu0.c.b16.cont [2/8] 0, 128
        %1386 = vxpose.xlu0.c.b16.cont [3/8] 0, 128
        %1387 = vxpose.xlu0.c.b16.cont [4/8] 0, 128
        %1388 = vxpose.xlu0.c.b16.cont [5/8] 0, 128
        %1389 = vxpose.xlu0.c.b16.cont [6/8] 0, 128
        %1390 = vxpose.xlu0.c.b16.cont [7/8] 0, 128
        %1391 = vxpose.xlu0.c.b16.end [8/8] 0, 128
        %v1392 = vpop.trf.xlu0
        %v1393 = vpop.trf.xlu0
        %v1394 = vpop.trf.xlu0
        %v1395 = vpop.trf.xlu0
        %v1396 = vpop.trf.xlu0
        %v1397 = vpop.trf.xlu0
        %v1398 = vpop.trf.xlu0
        %v1399 = vpop.trf.xlu0
        %1400 = vxpose.xlu0.c.b16.start [1/8] %v1310, 128
        %1401 = vxpose.xlu0.c.b16.cont [2/8] 0, 128
        %1402 = vxpose.xlu0.c.b16.cont [3/8] 0, 128
        %1403 = vxpose.xlu0.c.b16.cont [4/8] 0, 128
        %1404 = vxpose.xlu0.c.b16.cont [5/8] 0, 128
        %1405 = vxpose.xlu0.c.b16.cont [6/8] 0, 128
        %1406 = vxpose.xlu0.c.b16.cont [7/8] 0, 128
        %1407 = vxpose.xlu0.c.b16.end [8/8] 0, 128
        %v1408 = vpop.trf.xlu0
        %v1409 = vpop.trf.xlu0
        %v1410 = vpop.trf.xlu0
        %v1411 = vpop.trf.xlu0
        %v1412 = vpop.trf.xlu0
        %v1413 = vpop.trf.xlu0
        %v1414 = vpop.trf.xlu0
        %v1415 = vpop.trf.xlu0
        %1416 = vxpose.xlu0.c.b16.start [1/8] %v1314, 128
        %1417 = vxpose.xlu0.c.b16.cont [2/8] 0, 128
        %1418 = vxpose.xlu0.c.b16.cont [3/8] 0, 128
        %1419 = vxpose.xlu0.c.b16.cont [4/8] 0, 128
        %1420 = vxpose.xlu0.c.b16.cont [5/8] 0, 128
        %1421 = vxpose.xlu0.c.b16.cont [6/8] 0, 128
        %1422 = vxpose.xlu0.c.b16.cont [7/8] 0, 128
        %1423 = vxpose.xlu0.c.b16.end [8/8] 0, 128
        %v1424 = vpop.trf.xlu0
        %v1425 = vpop.trf.xlu0
        %v1426 = vpop.trf.xlu0
        %v1427 = vpop.trf.xlu0
        %v1428 = vpop.trf.xlu0
        %v1429 = vpop.trf.xlu0
        %v1430 = vpop.trf.xlu0
        %v1431 = vpop.trf.xlu0
        %1432 = vxpose.xlu0.c.b16.start [1/8] %v1318, 128
        %1433 = vxpose.xlu0.c.b16.cont [2/8] 0, 128
        %1434 = vxpose.xlu0.c.b16.cont [3/8] 0, 128
        %1435 = vxpose.xlu0.c.b16.cont [4/8] 0, 128
        %1436 = vxpose.xlu0.c.b16.cont [5/8] 0, 128
        %1437 = vxpose.xlu0.c.b16.cont [6/8] 0, 128
        %1438 = vxpose.xlu0.c.b16.cont [7/8] 0, 128
        %1439 = vxpose.xlu0.c.b16.end [8/8] 0, 128
        %v1440 = vpop.trf.xlu0
        %v1441 = vpop.trf.xlu0
        %v1442 = vpop.trf.xlu0
        %v1443 = vpop.trf.xlu0
        %v1444 = vpop.trf.xlu0
        %v1445 = vpop.trf.xlu0
        %v1446 = vpop.trf.xlu0
        %v1447 = vpop.trf.xlu0
        %v1448 = vcombine.low %v1328, %v1392
        %v1450 = vunpack.c.l.s4 1983009808
        %v1451 = vunpack.c.0.s8 %v1450
        %v1452 = vlaneseq
        %v1453 = vshrl.u32 %v1452, 7
        %v1454 = vsub.s32 %v1451, %v1453
        %v1455 = vrot.slane %v1448, %v1454
        %v1456 = vcombine.low %v1360, %v1424
        %v1458 = vunpack.c.l.s4 1983009808
        %v1459 = vunpack.c.0.s8 %v1458
        %v1460 = vlaneseq
        %v1461 = vshrl.u32 %v1460, 7
        %v1462 = vsub.s32 %v1459, %v1461
        %v1463 = vrot.slane %v1456, %v1462
        %v1464 = vcombine.low %v1455, %v1463
        %v1466 = vunpack.c.l.s4 1934713408
        %v1467 = vunpack.c.0.s8 %v1466
        %v1468 = vlaneseq
        %v1469 = vshrl.u32 %v1468, 7
        %v1470 = vsub.s32 %v1467, %v1469
        %v1471 = vrot.slane %v1464, %v1470
        %v1472 = vcombine.high %v1471, 0
        %v1473 = vcombine.low %v1344, %v1408
        %v1475 = vunpack.c.l.s4 1983009808
        %v1476 = vunpack.c.0.s8 %v1475
        %v1477 = vlaneseq
        %v1478 = vshrl.u32 %v1477, 7
        %v1479 = vsub.s32 %v1476, %v1478
        %v1480 = vrot.slane %v1473, %v1479
        %v1481 = vcombine.low %v1376, %v1440
        %v1483 = vunpack.c.l.s4 1983009808
        %v1484 = vunpack.c.0.s8 %v1483
        %v1485 = vlaneseq
        %v1486 = vshrl.u32 %v1485, 7
        %v1487 = vsub.s32 %v1484, %v1486
        %v1488 = vrot.slane %v1481, %v1487
        %v1489 = vcombine.low %v1480, %v1488
        %v1491 = vunpack.c.l.s4 1934713408
        %v1492 = vunpack.c.0.s8 %v1491
        %v1493 = vlaneseq
        %v1494 = vshrl.u32 %v1493, 7
        %v1495 = vsub.s32 %v1492, %v1494
        %v1496 = vrot.slane %v1489, %v1495
        %v1497 = vcombine.high %v1496, 0
        %v1500 = vpack.i.b16 %v1496, %v1471
        %v1501 = vshrl.u32 %v1471, 16
        %v1502 = vshrl.u32 %v1496, 16
        %v1503 = vpack.i.b16 %v1502, %v1501
        %v1506 = vpack.i.b16 %v1497, %v1472
        %v1507 = vshrl.u32 %v1472, 16
        %v1508 = vshrl.u32 %v1497, 16
        %v1509 = vpack.i.b16 %v1508, %v1507
        %vm1510 = vcmask 64512
        %v1512 = vsel %vm1510, %v1082, 0
        %vm1514 = vcmask 1043456
        %v1516 = vsel %vm1514, %v1500, 0
        %1518 = vmatprep.subr.bf16.mxu0 0
        %1519 = vmatpush1.bf16.msra.mxu0 %v1516
        %1520 = vmatprep.subr.bf16.mxu0 0
        %1521 = vmatpush1.bf16.msra.mxu0 0
        %1522 = vmatprep.subr.bf16.mxu0 0
        %1523 = vmatpush1.bf16.msra.mxu0 0
        %1524 = vmatprep.subr.bf16.mxu0 0
        %1525 = vmatpush1.bf16.msra.mxu0 0
        %1526 = vmatprep.subr.bf16.mxu0 0
        %1527 = vmatpush1.bf16.msra.mxu0 0
        %1528 = vmatprep.subr.bf16.mxu0 0
        %1529 = vmatpush1.bf16.msra.mxu0 0
        %1530 = vmatprep.subr.bf16.mxu0 0
        %1531 = vmatpush1.bf16.msra.mxu0 0
        %1532 = vmatprep.subr.bf16.mxu0 0
        %1533 = vmatpush1.bf16.msra.mxu0 0
        %1534 = vmatprep.subr.bf16.mxu0 0
        %1535 = vmatpush1.bf16.msra.mxu0 0
        %1536 = vmatprep.subr.bf16.mxu0 0
        %1537 = vmatpush1.bf16.msra.mxu0 0
        %1538 = vmatprep.subr.bf16.mxu0 0
        %1539 = vmatpush1.bf16.msra.mxu0 0
        %1540 = vmatprep.subr.bf16.mxu0 0
        %1541 = vmatpush1.bf16.msra.mxu0 0
        %1542 = vmatprep.subr.bf16.mxu0 0
        %1543 = vmatpush1.bf16.msra.mxu0 0
        %1544 = vmatprep.subr.bf16.mxu0 0
        %1545 = vmatpush1.bf16.msra.mxu0 0
        %1546 = vmatprep.subr.bf16.mxu0 0
        %1547 = vmatpush1.bf16.msra.mxu0 0
        %1548 = vmatprep.subr.bf16.mxu0 0
        %1549 = vmatpush1.bf16.msra.mxu0 0
        %1550 = vmatprep.mubr.bf16.mxu0 0
        %1551 = vmatmul.mubr.bf16.gmra.mrb[0].mxu0 %v1512
        %v1552 = vpop.f32.mrb[0].mxu0
        %v1553 = vadd.f32 0.0, %v1552
        %v1554 = vpop.f32.mrb[0].mxu0
        %v1555 = vpop.f32.mrb[0].mxu0
        %v1556 = vpop.f32.mrb[0].mxu0
        %1557 = vdwg.mxu0
        %v1559 = vsel %vm1510, %v1085, 0
        %v1562 = vsel %vm1514, %v1503, 0
        %1564 = vmatprep.subr.bf16.mxu0 0
        %1565 = vmatpush1.bf16.msra.mxu0 %v1562
        %1566 = vmatprep.subr.bf16.mxu0 0
        %1567 = vmatpush1.bf16.msra.mxu0 0
        %1568 = vmatprep.subr.bf16.mxu0 0
        %1569 = vmatpush1.bf16.msra.mxu0 0
        %1570 = vmatprep.subr.bf16.mxu0 0
        %1571 = vmatpush1.bf16.msra.mxu0 0
        %1572 = vmatprep.subr.bf16.mxu0 0
        %1573 = vmatpush1.bf16.msra.mxu0 0
        %1574 = vmatprep.subr.bf16.mxu0 0
        %1575 = vmatpush1.bf16.msra.mxu0 0
        %1576 = vmatprep.subr.bf16.mxu0 0
        %1577 = vmatpush1.bf16.msra.mxu0 0
        %1578 = vmatprep.subr.bf16.mxu0 0
        %1579 = vmatpush1.bf16.msra.mxu0 0
        %1580 = vmatprep.subr.bf16.mxu0 0
        %1581 = vmatpush1.bf16.msra.mxu0 0
        %1582 = vmatprep.subr.bf16.mxu0 0
        %1583 = vmatpush1.bf16.msra.mxu0 0
        %1584 = vmatprep.subr.bf16.mxu0 0
        %1585 = vmatpush1.bf16.msra.mxu0 0
        %1586 = vmatprep.subr.bf16.mxu0 0
        %1587 = vmatpush1.bf16.msra.mxu0 0
        %1588 = vmatprep.subr.bf16.mxu0 0
        %1589 = vmatpush1.bf16.msra.mxu0 0
        %1590 = vmatprep.subr.bf16.mxu0 0
        %1591 = vmatpush1.bf16.msra.mxu0 0
        %1592 = vmatprep.subr.bf16.mxu0 0
        %1593 = vmatpush1.bf16.msra.mxu0 0
        %1594 = vmatprep.subr.bf16.mxu0 0
        %1595 = vmatpush1.bf16.msra.mxu0 0
        %1596 = vmatprep.mubr.bf16.mxu0 0
        %1597 = vmatmul.mubr.bf16.gmra.mrb[0].mxu0 %v1559
        %v1598 = vpop.f32.mrb[0].mxu0
        %v1599 = vadd.f32 0.0, %v1598
        %v1600 = vpop.f32.mrb[0].mxu0
        %v1601 = vpop.f32.mrb[0].mxu0
        %v1602 = vpop.f32.mrb[0].mxu0
        %1603 = vdwg.mxu0
        %v1605 = vsel %vm1510, %v1088, 0
        %v1608 = vsel %vm1514, %v1506, 0
        %1610 = vmatprep.subr.bf16.mxu0 0
        %1611 = vmatpush1.bf16.msra.mxu0 %v1608
        %1612 = vmatprep.subr.bf16.mxu0 0
        %1613 = vmatpush1.bf16.msra.mxu0 0
        %1614 = vmatprep.subr.bf16.mxu0 0
        %1615 = vmatpush1.bf16.msra.mxu0 0
        %1616 = vmatprep.subr.bf16.mxu0 0
        %1617 = vmatpush1.bf16.msra.mxu0 0
        %1618 = vmatprep.subr.bf16.mxu0 0
        %1619 = vmatpush1.bf16.msra.mxu0 0
        %1620 = vmatprep.subr.bf16.mxu0 0
        %1621 = vmatpush1.bf16.msra.mxu0 0
        %1622 = vmatprep.subr.bf16.mxu0 0
        %1623 = vmatpush1.bf16.msra.mxu0 0
        %1624 = vmatprep.subr.bf16.mxu0 0
        %1625 = vmatpush1.bf16.msra.mxu0 0
        %1626 = vmatprep.subr.bf16.mxu0 0
        %1627 = vmatpush1.bf16.msra.mxu0 0
        %1628 = vmatprep.subr.bf16.mxu0 0
        %1629 = vmatpush1.bf16.msra.mxu0 0
        %1630 = vmatprep.subr.bf16.mxu0 0
        %1631 = vmatpush1.bf16.msra.mxu0 0
        %1632 = vmatprep.subr.bf16.mxu0 0
        %1633 = vmatpush1.bf16.msra.mxu0 0
        %1634 = vmatprep.subr.bf16.mxu0 0
        %1635 = vmatpush1.bf16.msra.mxu0 0
        %1636 = vmatprep.subr.bf16.mxu0 0
        %1637 = vmatpush1.bf16.msra.mxu0 0
        %1638 = vmatprep.subr.bf16.mxu0 0
        %1639 = vmatpush1.bf16.msra.mxu0 0
        %1640 = vmatprep.subr.bf16.mxu0 0
        %1641 = vmatpush1.bf16.msra.mxu0 0
        %1642 = vmatprep.mubr.bf16.mxu0 0
        %1643 = vmatmul.mubr.bf16.gmra.mrb[0].mxu0 %v1605
        %v1644 = vpop.f32.mrb[0].mxu0
        %v1645 = vadd.f32 0.0, %v1644
        %v1646 = vpop.f32.mrb[0].mxu0
        %v1647 = vpop.f32.mrb[0].mxu0
        %v1648 = vpop.f32.mrb[0].mxu0
        %1649 = vdwg.mxu0
        %v1651 = vsel %vm1510, %v1091, 0
        %v1654 = vsel %vm1514, %v1509, 0
        %1656 = vmatprep.subr.bf16.mxu0 0
        %1657 = vmatpush1.bf16.msra.mxu0 %v1654
        %1658 = vmatprep.subr.bf16.mxu0 0
        %1659 = vmatpush1.bf16.msra.mxu0 0
        %1660 = vmatprep.subr.bf16.mxu0 0
        %1661 = vmatpush1.bf16.msra.mxu0 0
        %1662 = vmatprep.subr.bf16.mxu0 0
        %1663 = vmatpush1.bf16.msra.mxu0 0
        %1664 = vmatprep.subr.bf16.mxu0 0
        %1665 = vmatpush1.bf16.msra.mxu0 0
        %1666 = vmatprep.subr.bf16.mxu0 0
        %1667 = vmatpush1.bf16.msra.mxu0 0
        %1668 = vmatprep.subr.bf16.mxu0 0
        %1669 = vmatpush1.bf16.msra.mxu0 0
        %1670 = vmatprep.subr.bf16.mxu0 0
        %1671 = vmatpush1.bf16.msra.mxu0 0
        %1672 = vmatprep.subr.bf16.mxu0 0
        %1673 = vmatpush1.bf16.msra.mxu0 0
        %1674 = vmatprep.subr.bf16.mxu0 0
        %1675 = vmatpush1.bf16.msra.mxu0 0
        %1676 = vmatprep.subr.bf16.mxu0 0
        %1677 = vmatpush1.bf16.msra.mxu0 0
        %1678 = vmatprep.subr.bf16.mxu0 0
        %1679 = vmatpush1.bf16.msra.mxu0 0
        %1680 = vmatprep.subr.bf16.mxu0 0
        %1681 = vmatpush1.bf16.msra.mxu0 0
        %1682 = vmatprep.subr.bf16.mxu0 0
        %1683 = vmatpush1.bf16.msra.mxu0 0
        %1684 = vmatprep.subr.bf16.mxu0 0
        %1685 = vmatpush1.bf16.msra.mxu0 0
        %1686 = vmatprep.subr.bf16.mxu0 0
        %1687 = vmatpush1.bf16.msra.mxu0 0
        %1688 = vmatprep.mubr.bf16.mxu0 0
        %1689 = vmatmul.mubr.bf16.gmra.mrb[0].mxu0 %v1651
        %v1690 = vpop.f32.mrb[0].mxu0
        %v1691 = vadd.f32 0.0, %v1690
        %v1692 = vpop.f32.mrb[0].mxu0
        %v1693 = vpop.f32.mrb[0].mxu0
        %v1694 = vpop.f32.mrb[0].mxu0
        %1695 = vdwg.mxu0
        %v1696 = vsel %vm1029, 1, 0
        %vm1697 = vcmp.eq.s32.totalorder %v1696, 1
        %v1698 = vsel %vm1697, %v1553, -10000.0
        %v1699 = vsel %vm1697, %v1599, -10000.0
        %v1700 = vsel %vm1697, %v1645, -10000.0
        %v1701 = vsel %vm1697, %v1691, -10000.0
        %v1702 = vsel %vm1510, %v1698, -inf
        %1703 = vmax.xlane.f32.xlu0 %v1702
        %v1704 = vpop.xlane.xlu0 %1703
        %v1705 = vsel %vm1510, %v1699, -inf
        %1706 = vmax.xlane.f32.xlu0 %v1705
        %v1707 = vpop.xlane.xlu0 %1706
        %v1708 = vsel %vm1510, %v1700, -inf
        %1709 = vmax.xlane.f32.xlu0 %v1708
        %v1710 = vpop.xlane.xlu0 %1709
        %v1711 = vsel %vm1510, %v1701, -inf
        %1712 = vmax.xlane.f32.xlu0 %v1711
        %v1713 = vpop.xlane.xlu0 %1712
        %v1714 = vsub.f32 %v1698, %v1704
        %v1715 = vsub.f32 %v1699, %v1707
        %v1716 = vsub.f32 %v1700, %v1710
        %v1717 = vsub.f32 %v1701, %v1713
        %v1718 = vmul.f32 %v1714, 1.442695
        %v1719 = vpow.pop %v1718
        %v1720 = vmul.f32 %v1715, 1.442695
        %v1721 = vpow.pop %v1720
        %v1722 = vmul.f32 %v1716, 1.442695
        %v1723 = vpow.pop %v1722
        %v1724 = vmul.f32 %v1717, 1.442695
        %v1725 = vpow.pop %v1724
        %v1726 = vsel %vm1510, %v1719, 0.0
        %1727 = vadd.xlane.f32.xlu0 %v1726
        %v1728 = vpop.xlane.xlu0 %1727
        %v1729 = vsel %vm1510, %v1721, 0.0
        %1730 = vadd.xlane.f32.xlu0 %v1729
        %v1731 = vpop.xlane.xlu0 %1730
        %v1732 = vsel %vm1510, %v1723, 0.0
        %1733 = vadd.xlane.f32.xlu0 %v1732
        %v1734 = vpop.xlane.xlu0 %1733
        %v1735 = vsel %vm1510, %v1725, 0.0
        %1736 = vadd.xlane.f32.xlu0 %v1735
        %v1737 = vpop.xlane.xlu0 %1736
        %v1738 = vrcp.pop %v1728
        %v1739 = vrcp.pop %v1731
        %v1740 = vrcp.pop %v1734
        %v1741 = vrcp.pop %v1737
        %v1742 = vmul.f32 %v1719, %v1738
        %v1743 = vmul.f32 %v1721, %v1739
        %v1744 = vmul.f32 %v1723, %v1740
        %v1745 = vmul.f32 %v1725, %v1741
        %v1746 = vpack.c.bf16 %v1742, %v1742
        %v1747 = vpack.c.bf16 %v1743, %v1743
        %v1748 = vpack.c.bf16 %v1744, %v1744
        %v1749 = vpack.c.bf16 %v1745, %v1745
        %1750 = vxpose.xlu0.c.b16.start [1/8] %v1017, 128
        %1751 = vxpose.xlu0.c.b16.cont [2/8] 0, 128
        %1752 = vxpose.xlu0.c.b16.cont [3/8] 0, 128
        %1753 = vxpose.xlu0.c.b16.cont [4/8] 0, 128
        %1754 = vxpose.xlu0.c.b16.cont [5/8] 0, 128
        %1755 = vxpose.xlu0.c.b16.cont [6/8] 0, 128
        %1756 = vxpose.xlu0.c.b16.cont [7/8] 0, 128
        %1757 = vxpose.xlu0.c.b16.end [8/8] 0, 128
        %v1758 = vpop.trf.xlu0
        %v1759 = vpop.trf.xlu0
        %v1760 = vpop.trf.xlu0
        %v1761 = vpop.trf.xlu0
        %v1762 = vpop.trf.xlu0
        %v1763 = vpop.trf.xlu0
        %v1764 = vpop.trf.xlu0
        %v1765 = vpop.trf.xlu0
        %1766 = vxpose.xlu0.c.b16.start [1/8] %v1018, 128
        %1767 = vxpose.xlu0.c.b16.cont [2/8] 0, 128
        %1768 = vxpose.xlu0.c.b16.cont [3/8] 0, 128
        %1769 = vxpose.xlu0.c.b16.cont [4/8] 0, 128
        %1770 = vxpose.xlu0.c.b16.cont [5/8] 0, 128
        %1771 = vxpose.xlu0.c.b16.cont [6/8] 0, 128
        %1772 = vxpose.xlu0.c.b16.cont [7/8] 0, 128
        %1773 = vxpose.xlu0.c.b16.end [8/8] 0, 128
        %v1774 = vpop.trf.xlu0
        %v1775 = vpop.trf.xlu0
        %v1776 = vpop.trf.xlu0
        %v1777 = vpop.trf.xlu0
        %v1778 = vpop.trf.xlu0
        %v1779 = vpop.trf.xlu0
        %v1780 = vpop.trf.xlu0
        %v1781 = vpop.trf.xlu0
        %1782 = vxpose.xlu0.c.b16.start [1/8] %v1019, 128
        %1783 = vxpose.xlu0.c.b16.cont [2/8] 0, 128
        %1784 = vxpose.xlu0.c.b16.cont [3/8] 0, 128
        %1785 = vxpose.xlu0.c.b16.cont [4/8] 0, 128
        %1786 = vxpose.xlu0.c.b16.cont [5/8] 0, 128
        %1787 = vxpose.xlu0.c.b16.cont [6/8] 0, 128
        %1788 = vxpose.xlu0.c.b16.cont [7/8] 0, 128
        %1789 = vxpose.xlu0.c.b16.end [8/8] 0, 128
        %v1790 = vpop.trf.xlu0
        %v1791 = vpop.trf.xlu0
        %v1792 = vpop.trf.xlu0
        %v1793 = vpop.trf.xlu0
        %v1794 = vpop.trf.xlu0
        %v1795 = vpop.trf.xlu0
        %v1796 = vpop.trf.xlu0
        %v1797 = vpop.trf.xlu0
        %1798 = vxpose.xlu0.c.b16.start [1/8] %v1020, 128
        %1799 = vxpose.xlu0.c.b16.cont [2/8] 0, 128
        %1800 = vxpose.xlu0.c.b16.cont [3/8] 0, 128
        %1801 = vxpose.xlu0.c.b16.cont [4/8] 0, 128
        %1802 = vxpose.xlu0.c.b16.cont [5/8] 0, 128
        %1803 = vxpose.xlu0.c.b16.cont [6/8] 0, 128
        %1804 = vxpose.xlu0.c.b16.cont [7/8] 0, 128
        %1805 = vxpose.xlu0.c.b16.end [8/8] 0, 128
        %v1806 = vpop.trf.xlu0
        %v1807 = vpop.trf.xlu0
        %v1808 = vpop.trf.xlu0
        %v1809 = vpop.trf.xlu0
        %v1810 = vpop.trf.xlu0
        %v1811 = vpop.trf.xlu0
        %v1812 = vpop.trf.xlu0
        %v1813 = vpop.trf.xlu0
        %1814 = vxpose.xlu0.c.b16.start [1/8] %v1021, 128
        %1815 = vxpose.xlu0.c.b16.cont [2/8] 0, 128
        %1816 = vxpose.xlu0.c.b16.cont [3/8] 0, 128
        %1817 = vxpose.xlu0.c.b16.cont [4/8] 0, 128
        %1818 = vxpose.xlu0.c.b16.cont [5/8] 0, 128
        %1819 = vxpose.xlu0.c.b16.cont [6/8] 0, 128
        %1820 = vxpose.xlu0.c.b16.cont [7/8] 0, 128
        %1821 = vxpose.xlu0.c.b16.end [8/8] 0, 128
        %v1822 = vpop.trf.xlu0
        %v1823 = vpop.trf.xlu0
        %v1824 = vpop.trf.xlu0
        %v1825 = vpop.trf.xlu0
        %v1826 = vpop.trf.xlu0
        %v1827 = vpop.trf.xlu0
        %v1828 = vpop.trf.xlu0
        %v1829 = vpop.trf.xlu0
        %1830 = vxpose.xlu0.c.b16.start [1/8] %v1022, 128
        %1831 = vxpose.xlu0.c.b16.cont [2/8] 0, 128
        %1832 = vxpose.xlu0.c.b16.cont [3/8] 0, 128
        %1833 = vxpose.xlu0.c.b16.cont [4/8] 0, 128
        %1834 = vxpose.xlu0.c.b16.cont [5/8] 0, 128
        %1835 = vxpose.xlu0.c.b16.cont [6/8] 0, 128
        %1836 = vxpose.xlu0.c.b16.cont [7/8] 0, 128
        %1837 = vxpose.xlu0.c.b16.end [8/8] 0, 128
        %v1838 = vpop.trf.xlu0
        %v1839 = vpop.trf.xlu0
        %v1840 = vpop.trf.xlu0
        %v1841 = vpop.trf.xlu0
        %v1842 = vpop.trf.xlu0
        %v1843 = vpop.trf.xlu0
        %v1844 = vpop.trf.xlu0
        %v1845 = vpop.trf.xlu0
        %1846 = vxpose.xlu0.c.b16.start [1/8] %v1023, 128
        %1847 = vxpose.xlu0.c.b16.cont [2/8] 0, 128
        %1848 = vxpose.xlu0.c.b16.cont [3/8] 0, 128
        %1849 = vxpose.xlu0.c.b16.cont [4/8] 0, 128
        %1850 = vxpose.xlu0.c.b16.cont [5/8] 0, 128
        %1851 = vxpose.xlu0.c.b16.cont [6/8] 0, 128
        %1852 = vxpose.xlu0.c.b16.cont [7/8] 0, 128
        %1853 = vxpose.xlu0.c.b16.end [8/8] 0, 128
        %v1854 = vpop.trf.xlu0
        %v1855 = vpop.trf.xlu0
        %v1856 = vpop.trf.xlu0
        %v1857 = vpop.trf.xlu0
        %v1858 = vpop.trf.xlu0
        %v1859 = vpop.trf.xlu0
        %v1860 = vpop.trf.xlu0
        %v1861 = vpop.trf.xlu0
        %1862 = vxpose.xlu0.c.b16.start [1/8] %v1024, 128
        %1863 = vxpose.xlu0.c.b16.cont [2/8] 0, 128
        %1864 = vxpose.xlu0.c.b16.cont [3/8] 0, 128
        %1865 = vxpose.xlu0.c.b16.cont [4/8] 0, 128
        %1866 = vxpose.xlu0.c.b16.cont [5/8] 0, 128
        %1867 = vxpose.xlu0.c.b16.cont [6/8] 0, 128
        %1868 = vxpose.xlu0.c.b16.cont [7/8] 0, 128
        %1869 = vxpose.xlu0.c.b16.end [8/8] 0, 128
        %v1870 = vpop.trf.xlu0
        %v1871 = vpop.trf.xlu0
        %v1872 = vpop.trf.xlu0
        %v1873 = vpop.trf.xlu0
        %v1874 = vpop.trf.xlu0
        %v1875 = vpop.trf.xlu0
        %v1876 = vpop.trf.xlu0
        %v1877 = vpop.trf.xlu0
        %v1878 = vcombine.low %v1758, %v1822
        %v1880 = vunpack.c.l.s4 1983009808
        %v1881 = vunpack.c.0.s8 %v1880
        %v1882 = vlaneseq
        %v1883 = vshrl.u32 %v1882, 7
        %v1884 = vsub.s32 %v1881, %v1883
        %v1885 = vrot.slane %v1878, %v1884
        %v1886 = vcombine.low %v1790, %v1854
        %v1888 = vunpack.c.l.s4 1983009808
        %v1889 = vunpack.c.0.s8 %v1888
        %v1890 = vlaneseq
        %v1891 = vshrl.u32 %v1890, 7
        %v1892 = vsub.s32 %v1889, %v1891
        %v1893 = vrot.slane %v1886, %v1892
        %v1894 = vcombine.low %v1885, %v1893
        %v1895 = vcombine.high %v1885, %v1893
        %v1897 = vunpack.c.l.s4 1934713408
        %v1898 = vunpack.c.0.s8 %v1897
        %v1899 = vlaneseq
        %v1900 = vshrl.u32 %v1899, 7
        %v1901 = vsub.s32 %v1898, %v1900
        %v1902 = vrot.slane %v1894, %v1901
        %v1904 = vunpack.c.l.s4 1934713408
        %v1905 = vunpack.c.0.s8 %v1904
        %v1906 = vlaneseq
        %v1907 = vshrl.u32 %v1906, 7
        %v1908 = vsub.s32 %v1905, %v1907
        %v1909 = vrot.slane %v1895, %v1908
        %v1910 = vcombine.high %v1902, 0
        %v1911 = vcombine.high %v1909, 0
        %v1912 = vcombine.low %v1774, %v1838
        %v1914 = vunpack.c.l.s4 1983009808
        %v1915 = vunpack.c.0.s8 %v1914
        %v1916 = vlaneseq
        %v1917 = vshrl.u32 %v1916, 7
        %v1918 = vsub.s32 %v1915, %v1917
        %v1919 = vrot.slane %v1912, %v1918
        %v1920 = vcombine.low %v1806, %v1870
        %v1922 = vunpack.c.l.s4 1983009808
        %v1923 = vunpack.c.0.s8 %v1922
        %v1924 = vlaneseq
        %v1925 = vshrl.u32 %v1924, 7
        %v1926 = vsub.s32 %v1923, %v1925
        %v1927 = vrot.slane %v1920, %v1926
        %v1928 = vcombine.low %v1919, %v1927
        %v1929 = vcombine.high %v1919, %v1927
        %v1931 = vunpack.c.l.s4 1934713408
        %v1932 = vunpack.c.0.s8 %v1931
        %v1933 = vlaneseq
        %v1934 = vshrl.u32 %v1933, 7
        %v1935 = vsub.s32 %v1932, %v1934
        %v1936 = vrot.slane %v1928, %v1935
        %v1938 = vunpack.c.l.s4 1934713408
        %v1939 = vunpack.c.0.s8 %v1938
        %v1940 = vlaneseq
        %v1941 = vshrl.u32 %v1940, 7
        %v1942 = vsub.s32 %v1939, %v1941
        %v1943 = vrot.slane %v1929, %v1942
        %v1944 = vcombine.high %v1936, 0
        %v1945 = vcombine.high %v1943, 0
        %v1948 = vpack.i.b16 %v1936, %v1902
        %v1950 = vshrl.u32 %v1902, 16
        %v1951 = vshrl.u32 %v1936, 16
        %v1952 = vpack.i.b16 %v1951, %v1950
        %v1956 = vpack.i.b16 %v1944, %v1910
        %v1958 = vshrl.u32 %v1910, 16
        %v1959 = vshrl.u32 %v1944, 16
        %v1960 = vpack.i.b16 %v1959, %v1958
        %v1964 = vpack.i.b16 %v1943, %v1909
        %v1966 = vshrl.u32 %v1909, 16
        %v1967 = vshrl.u32 %v1943, 16
        %v1968 = vpack.i.b16 %v1967, %v1966
        %v1972 = vpack.i.b16 %v1945, %v1911
        %v1974 = vshrl.u32 %v1911, 16
        %v1975 = vshrl.u32 %v1945, 16
        %v1976 = vpack.i.b16 %v1975, %v1974
        %1978 = vxpose.xlu0.c.b16.start [1/8] %v1948, 128
        %1979 = vxpose.xlu0.c.b16.cont [2/8] 0, 128
        %1980 = vxpose.xlu0.c.b16.cont [3/8] 0, 128
        %1981 = vxpose.xlu0.c.b16.cont [4/8] 0, 128
        %1982 = vxpose.xlu0.c.b16.cont [5/8] 0, 128
        %1983 = vxpose.xlu0.c.b16.cont [6/8] 0, 128
        %1984 = vxpose.xlu0.c.b16.cont [7/8] 0, 128
        %1985 = vxpose.xlu0.c.b16.end [8/8] 0, 128
        %v1986 = vpop.trf.xlu0
        %v1987 = vpop.trf.xlu0
        %v1988 = vpop.trf.xlu0
        %v1989 = vpop.trf.xlu0
        %v1990 = vpop.trf.xlu0
        %v1991 = vpop.trf.xlu0
        %v1992 = vpop.trf.xlu0
        %v1993 = vpop.trf.xlu0
        %1994 = vxpose.xlu0.c.b16.start [1/8] %v1952, 128
        %1995 = vxpose.xlu0.c.b16.cont [2/8] 0, 128
        %1996 = vxpose.xlu0.c.b16.cont [3/8] 0, 128
        %1997 = vxpose.xlu0.c.b16.cont [4/8] 0, 128
        %1998 = vxpose.xlu0.c.b16.cont [5/8] 0, 128
        %1999 = vxpose.xlu0.c.b16.cont [6/8] 0, 128
        %2000 = vxpose.xlu0.c.b16.cont [7/8] 0, 128
        %2001 = vxpose.xlu0.c.b16.end [8/8] 0, 128
        %v2002 = vpop.trf.xlu0
        %v2003 = vpop.trf.xlu0
        %v2004 = vpop.trf.xlu0
        %v2005 = vpop.trf.xlu0
        %v2006 = vpop.trf.xlu0
        %v2007 = vpop.trf.xlu0
        %v2008 = vpop.trf.xlu0
        %v2009 = vpop.trf.xlu0
        %2010 = vxpose.xlu0.c.b16.start [1/8] %v1956, 128
        %2011 = vxpose.xlu0.c.b16.cont [2/8] 0, 128
        %2012 = vxpose.xlu0.c.b16.cont [3/8] 0, 128
        %2013 = vxpose.xlu0.c.b16.cont [4/8] 0, 128
        %2014 = vxpose.xlu0.c.b16.cont [5/8] 0, 128
        %2015 = vxpose.xlu0.c.b16.cont [6/8] 0, 128
        %2016 = vxpose.xlu0.c.b16.cont [7/8] 0, 128
        %2017 = vxpose.xlu0.c.b16.end [8/8] 0, 128
        %v2018 = vpop.trf.xlu0
        %v2019 = vpop.trf.xlu0
        %v2020 = vpop.trf.xlu0
        %v2021 = vpop.trf.xlu0
        %v2022 = vpop.trf.xlu0
        %v2023 = vpop.trf.xlu0
        %v2024 = vpop.trf.xlu0
        %v2025 = vpop.trf.xlu0
        %2026 = vxpose.xlu0.c.b16.start [1/8] %v1960, 128
        %2027 = vxpose.xlu0.c.b16.cont [2/8] 0, 128
        %2028 = vxpose.xlu0.c.b16.cont [3/8] 0, 128
        %2029 = vxpose.xlu0.c.b16.cont [4/8] 0, 128
        %2030 = vxpose.xlu0.c.b16.cont [5/8] 0, 128
        %2031 = vxpose.xlu0.c.b16.cont [6/8] 0, 128
        %2032 = vxpose.xlu0.c.b16.cont [7/8] 0, 128
        %2033 = vxpose.xlu0.c.b16.end [8/8] 0, 128
        %v2034 = vpop.trf.xlu0
        %v2035 = vpop.trf.xlu0
        %v2036 = vpop.trf.xlu0
        %v2037 = vpop.trf.xlu0
        %v2038 = vpop.trf.xlu0
        %v2039 = vpop.trf.xlu0
        %v2040 = vpop.trf.xlu0
        %v2041 = vpop.trf.xlu0
        %2042 = vxpose.xlu0.c.b16.start [1/8] %v1964, 128
        %2043 = vxpose.xlu0.c.b16.cont [2/8] 0, 128
        %2044 = vxpose.xlu0.c.b16.cont [3/8] 0, 128
        %2045 = vxpose.xlu0.c.b16.cont [4/8] 0, 128
        %2046 = vxpose.xlu0.c.b16.cont [5/8] 0, 128
        %2047 = vxpose.xlu0.c.b16.cont [6/8] 0, 128
        %2048 = vxpose.xlu0.c.b16.cont [7/8] 0, 128
        %2049 = vxpose.xlu0.c.b16.end [8/8] 0, 128
        %v2050 = vpop.trf.xlu0
        %v2051 = vpop.trf.xlu0
        %v2052 = vpop.trf.xlu0
        %v2053 = vpop.trf.xlu0
        %v2054 = vpop.trf.xlu0
        %v2055 = vpop.trf.xlu0
        %v2056 = vpop.trf.xlu0
        %v2057 = vpop.trf.xlu0
        %2058 = vxpose.xlu0.c.b16.start [1/8] %v1968, 128
        %2059 = vxpose.xlu0.c.b16.cont [2/8] 0, 128
        %2060 = vxpose.xlu0.c.b16.cont [3/8] 0, 128
        %2061 = vxpose.xlu0.c.b16.cont [4/8] 0, 128
        %2062 = vxpose.xlu0.c.b16.cont [5/8] 0, 128
        %2063 = vxpose.xlu0.c.b16.cont [6/8] 0, 128
        %2064 = vxpose.xlu0.c.b16.cont [7/8] 0, 128
        %2065 = vxpose.xlu0.c.b16.end [8/8] 0, 128
        %v2066 = vpop.trf.xlu0
        %v2067 = vpop.trf.xlu0
        %v2068 = vpop.trf.xlu0
        %v2069 = vpop.trf.xlu0
        %v2070 = vpop.trf.xlu0
        %v2071 = vpop.trf.xlu0
        %v2072 = vpop.trf.xlu0
        %v2073 = vpop.trf.xlu0
        %2074 = vxpose.xlu0.c.b16.start [1/8] %v1972, 128
        %2075 = vxpose.xlu0.c.b16.cont [2/8] 0, 128
        %2076 = vxpose.xlu0.c.b16.cont [3/8] 0, 128
        %2077 = vxpose.xlu0.c.b16.cont [4/8] 0, 128
        %2078 = vxpose.xlu0.c.b16.cont [5/8] 0, 128
        %2079 = vxpose.xlu0.c.b16.cont [6/8] 0, 128
        %2080 = vxpose.xlu0.c.b16.cont [7/8] 0, 128
        %2081 = vxpose.xlu0.c.b16.end [8/8] 0, 128
        %v2082 = vpop.trf.xlu0
        %v2083 = vpop.trf.xlu0
        %v2084 = vpop.trf.xlu0
        %v2085 = vpop.trf.xlu0
        %v2086 = vpop.trf.xlu0
        %v2087 = vpop.trf.xlu0
        %v2088 = vpop.trf.xlu0
        %v2089 = vpop.trf.xlu0
        %2090 = vxpose.xlu0.c.b16.start [1/8] %v1976, 128
        %2091 = vxpose.xlu0.c.b16.cont [2/8] 0, 128
        %2092 = vxpose.xlu0.c.b16.cont [3/8] 0, 128
        %2093 = vxpose.xlu0.c.b16.cont [4/8] 0, 128
        %2094 = vxpose.xlu0.c.b16.cont [5/8] 0, 128
        %2095 = vxpose.xlu0.c.b16.cont [6/8] 0, 128
        %2096 = vxpose.xlu0.c.b16.cont [7/8] 0, 128
        %2097 = vxpose.xlu0.c.b16.end [8/8] 0, 128
        %v2098 = vpop.trf.xlu0
        %v2099 = vpop.trf.xlu0
        %v2100 = vpop.trf.xlu0
        %v2101 = vpop.trf.xlu0
        %v2102 = vpop.trf.xlu0
        %v2103 = vpop.trf.xlu0
        %v2104 = vpop.trf.xlu0
        %v2105 = vpop.trf.xlu0
        %v2106 = vcombine.low %v1986, %v2050
        %v2108 = vunpack.c.l.s4 1983009808
        %v2109 = vunpack.c.0.s8 %v2108
        %v2110 = vlaneseq
        %v2111 = vshrl.u32 %v2110, 7
        %v2112 = vsub.s32 %v2109, %v2111
        %v2113 = vrot.slane %v2106, %v2112
        %v2114 = vcombine.low %v2018, %v2082
        %v2116 = vunpack.c.l.s4 1983009808
        %v2117 = vunpack.c.0.s8 %v2116
        %v2118 = vlaneseq
        %v2119 = vshrl.u32 %v2118, 7
        %v2120 = vsub.s32 %v2117, %v2119
        %v2121 = vrot.slane %v2114, %v2120
        %v2122 = vcombine.low %v2113, %v2121
        %v2124 = vunpack.c.l.s4 1934713408
        %v2125 = vunpack.c.0.s8 %v2124
        %v2126 = vlaneseq
        %v2127 = vshrl.u32 %v2126, 7
        %v2128 = vsub.s32 %v2125, %v2127
        %v2129 = vrot.slane %v2122, %v2128
        %v2130 = vcombine.high %v2129, 0
        %v2131 = vcombine.low %v2002, %v2066
        %v2133 = vunpack.c.l.s4 1983009808
        %v2134 = vunpack.c.0.s8 %v2133
        %v2135 = vlaneseq
        %v2136 = vshrl.u32 %v2135, 7
        %v2137 = vsub.s32 %v2134, %v2136
        %v2138 = vrot.slane %v2131, %v2137
        %v2139 = vcombine.low %v2034, %v2098
        %v2141 = vunpack.c.l.s4 1983009808
        %v2142 = vunpack.c.0.s8 %v2141
        %v2143 = vlaneseq
        %v2144 = vshrl.u32 %v2143, 7
        %v2145 = vsub.s32 %v2142, %v2144
        %v2146 = vrot.slane %v2139, %v2145
        %v2147 = vcombine.low %v2138, %v2146
        %v2149 = vunpack.c.l.s4 1934713408
        %v2150 = vunpack.c.0.s8 %v2149
        %v2151 = vlaneseq
        %v2152 = vshrl.u32 %v2151, 7
        %v2153 = vsub.s32 %v2150, %v2152
        %v2154 = vrot.slane %v2147, %v2153
        %v2155 = vcombine.high %v2154, 0
        %v2158 = vpack.i.b16 %v2154, %v2129
        %v2159 = vshrl.u32 %v2129, 16
        %v2160 = vshrl.u32 %v2154, 16
        %v2161 = vpack.i.b16 %v2160, %v2159
        %v2164 = vpack.i.b16 %v2155, %v2130
        %v2165 = vshrl.u32 %v2130, 16
        %v2166 = vshrl.u32 %v2155, 16
        %v2167 = vpack.i.b16 %v2166, %v2165
        %v2169 = vsel %vm1510, %v2158, 0
        %v2172 = vsel %vm1510, %v1746, 0
        %2174 = vmatprep.subr.bf16.mxu0 0
        %2175 = vmatpush1.bf16.xpose.msra.mxu0 %v2172
        %2176 = vmatprep.subr.bf16.mxu0 0
        %2177 = vmatpush1.bf16.xpose.msra.mxu0 0
        %2178 = vmatprep.subr.bf16.mxu0 0
        %2179 = vmatpush1.bf16.xpose.msra.mxu0 0
        %2180 = vmatprep.subr.bf16.mxu0 0
        %2181 = vmatpush1.bf16.xpose.msra.mxu0 0
        %2182 = vmatprep.subr.bf16.mxu0 0
        %2183 = vmatpush1.bf16.xpose.msra.mxu0 0
        %2184 = vmatprep.subr.bf16.mxu0 0
        %2185 = vmatpush1.bf16.xpose.msra.mxu0 0
        %2186 = vmatprep.subr.bf16.mxu0 0
        %2187 = vmatpush1.bf16.xpose.msra.mxu0 0
        %2188 = vmatprep.subr.bf16.mxu0 0
        %2189 = vmatpush1.bf16.xpose.msra.mxu0 0
        %2190 = vmatprep.subr.bf16.mxu0 0
        %2191 = vmatpush1.bf16.xpose.msra.mxu0 0
        %2192 = vmatprep.subr.bf16.mxu0 0
        %2193 = vmatpush1.bf16.xpose.msra.mxu0 0
        %2194 = vmatprep.subr.bf16.mxu0 0
        %2195 = vmatpush1.bf16.xpose.msra.mxu0 0
        %2196 = vmatprep.subr.bf16.mxu0 0
        %2197 = vmatpush1.bf16.xpose.msra.mxu0 0
        %2198 = vmatprep.subr.bf16.mxu0 0
        %2199 = vmatpush1.bf16.xpose.msra.mxu0 0
        %2200 = vmatprep.subr.bf16.mxu0 0
        %2201 = vmatpush1.bf16.xpose.msra.mxu0 0
        %2202 = vmatprep.subr.bf16.mxu0 0
        %2203 = vmatpush1.bf16.xpose.msra.mxu0 0
        %2204 = vmatprep.subr.bf16.mxu0 0
        %2205 = vmatpush1.bf16.xpose.msra.mxu0 0
        %2206 = vmatprep.mubr.bf16.mxu0 0
        %2207 = vmatmul.mubr.bf16.gmra.mrb[0].mxu0 %v2169
        %v2208 = vpop.f32.mrb[0].mxu0
        %v2209 = vadd.f32 0.0, %v2208
        %v2210 = vpop.f32.mrb[0].mxu0
        %v2211 = vpop.f32.mrb[0].mxu0
        %v2212 = vpop.f32.mrb[0].mxu0
        %2213 = vdwg.mxu0
        %v2215 = vsel %vm1510, %v2161, 0
        %v2218 = vsel %vm1510, %v1747, 0
        %2220 = vmatprep.subr.bf16.mxu0 0
        %2221 = vmatpush1.bf16.xpose.msra.mxu0 %v2218
        %2222 = vmatprep.subr.bf16.mxu0 0
        %2223 = vmatpush1.bf16.xpose.msra.mxu0 0
        %2224 = vmatprep.subr.bf16.mxu0 0
        %2225 = vmatpush1.bf16.xpose.msra.mxu0 0
        %2226 = vmatprep.subr.bf16.mxu0 0
        %2227 = vmatpush1.bf16.xpose.msra.mxu0 0
        %2228 = vmatprep.subr.bf16.mxu0 0
        %2229 = vmatpush1.bf16.xpose.msra.mxu0 0
        %2230 = vmatprep.subr.bf16.mxu0 0
        %2231 = vmatpush1.bf16.xpose.msra.mxu0 0
        %2232 = vmatprep.subr.bf16.mxu0 0
        %2233 = vmatpush1.bf16.xpose.msra.mxu0 0
        %2234 = vmatprep.subr.bf16.mxu0 0
        %2235 = vmatpush1.bf16.xpose.msra.mxu0 0
        %2236 = vmatprep.subr.bf16.mxu0 0
        %2237 = vmatpush1.bf16.xpose.msra.mxu0 0
        %2238 = vmatprep.subr.bf16.mxu0 0
        %2239 = vmatpush1.bf16.xpose.msra.mxu0 0
        %2240 = vmatprep.subr.bf16.mxu0 0
        %2241 = vmatpush1.bf16.xpose.msra.mxu0 0
        %2242 = vmatprep.subr.bf16.mxu0 0
        %2243 = vmatpush1.bf16.xpose.msra.mxu0 0
        %2244 = vmatprep.subr.bf16.mxu0 0
        %2245 = vmatpush1.bf16.xpose.msra.mxu0 0
        %2246 = vmatprep.subr.bf16.mxu0 0
        %2247 = vmatpush1.bf16.xpose.msra.mxu0 0
        %2248 = vmatprep.subr.bf16.mxu0 0
        %2249 = vmatpush1.bf16.xpose.msra.mxu0 0
        %2250 = vmatprep.subr.bf16.mxu0 0
        %2251 = vmatpush1.bf16.xpose.msra.mxu0 0
        %2252 = vmatprep.mubr.bf16.mxu0 0
        %2253 = vmatmul.mubr.bf16.gmra.mrb[0].mxu0 %v2215
        %v2254 = vpop.f32.mrb[0].mxu0
        %v2255 = vadd.f32 0.0, %v2254
        %v2256 = vpop.f32.mrb[0].mxu0
        %v2257 = vpop.f32.mrb[0].mxu0
        %v2258 = vpop.f32.mrb[0].mxu0
        %2259 = vdwg.mxu0
        %v2261 = vsel %vm1510, %v2164, 0
        %v2264 = vsel %vm1510, %v1748, 0
        %2266 = vmatprep.subr.bf16.mxu0 0
        %2267 = vmatpush1.bf16.xpose.msra.mxu0 %v2264
        %2268 = vmatprep.subr.bf16.mxu0 0
        %2269 = vmatpush1.bf16.xpose.msra.mxu0 0
        %2270 = vmatprep.subr.bf16.mxu0 0
        %2271 = vmatpush1.bf16.xpose.msra.mxu0 0
        %2272 = vmatprep.subr.bf16.mxu0 0
        %2273 = vmatpush1.bf16.xpose.msra.mxu0 0
        %2274 = vmatprep.subr.bf16.mxu0 0
        %2275 = vmatpush1.bf16.xpose.msra.mxu0 0
        %2276 = vmatprep.subr.bf16.mxu0 0
        %2277 = vmatpush1.bf16.xpose.msra.mxu0 0
        %2278 = vmatprep.subr.bf16.mxu0 0
        %2279 = vmatpush1.bf16.xpose.msra.mxu0 0
        %2280 = vmatprep.subr.bf16.mxu0 0
        %2281 = vmatpush1.bf16.xpose.msra.mxu0 0
        %2282 = vmatprep.subr.bf16.mxu0 0
        %2283 = vmatpush1.bf16.xpose.msra.mxu0 0
        %2284 = vmatprep.subr.bf16.mxu0 0
        %2285 = vmatpush1.bf16.xpose.msra.mxu0 0
        %2286 = vmatprep.subr.bf16.mxu0 0
        %2287 = vmatpush1.bf16.xpose.msra.mxu0 0
        %2288 = vmatprep.subr.bf16.mxu0 0
        %2289 = vmatpush1.bf16.xpose.msra.mxu0 0
        %2290 = vmatprep.subr.bf16.mxu0 0
        %2291 = vmatpush1.bf16.xpose.msra.mxu0 0
        %2292 = vmatprep.subr.bf16.mxu0 0
        %2293 = vmatpush1.bf16.xpose.msra.mxu0 0
        %2294 = vmatprep.subr.bf16.mxu0 0
        %2295 = vmatpush1.bf16.xpose.msra.mxu0 0
        %2296 = vmatprep.subr.bf16.mxu0 0
        %2297 = vmatpush1.bf16.xpose.msra.mxu0 0
        %2298 = vmatprep.mubr.bf16.mxu0 0
        %2299 = vmatmul.mubr.bf16.gmra.mrb[0].mxu0 %v2261
        %v2300 = vpop.f32.mrb[0].mxu0
        %v2301 = vadd.f32 0.0, %v2300
        %v2302 = vpop.f32.mrb[0].mxu0
        %v2303 = vpop.f32.mrb[0].mxu0
        %v2304 = vpop.f32.mrb[0].mxu0
        %2305 = vdwg.mxu0
        %v2307 = vsel %vm1510, %v2167, 0
        %v2310 = vsel %vm1510, %v1749, 0
        %2312 = vmatprep.subr.bf16.mxu0 0
        %2313 = vmatpush1.bf16.xpose.msra.mxu0 %v2310
        %2314 = vmatprep.subr.bf16.mxu0 0
        %2315 = vmatpush1.bf16.xpose.msra.mxu0 0
        %2316 = vmatprep.subr.bf16.mxu0 0
        %2317 = vmatpush1.bf16.xpose.msra.mxu0 0
        %2318 = vmatprep.subr.bf16.mxu0 0
        %2319 = vmatpush1.bf16.xpose.msra.mxu0 0
        %2320 = vmatprep.subr.bf16.mxu0 0
        %2321 = vmatpush1.bf16.xpose.msra.mxu0 0
        %2322 = vmatprep.subr.bf16.mxu0 0
        %2323 = vmatpush1.bf16.xpose.msra.mxu0 0
        %2324 = vmatprep.subr.bf16.mxu0 0
        %2325 = vmatpush1.bf16.xpose.msra.mxu0 0
        %2326 = vmatprep.subr.bf16.mxu0 0
        %2327 = vmatpush1.bf16.xpose.msra.mxu0 0
        %2328 = vmatprep.subr.bf16.mxu0 0
        %2329 = vmatpush1.bf16.xpose.msra.mxu0 0
        %2330 = vmatprep.subr.bf16.mxu0 0
        %2331 = vmatpush1.bf16.xpose.msra.mxu0 0
        %2332 = vmatprep.subr.bf16.mxu0 0
        %2333 = vmatpush1.bf16.xpose.msra.mxu0 0
        %2334 = vmatprep.subr.bf16.mxu0 0
        %2335 = vmatpush1.bf16.xpose.msra.mxu0 0
        %2336 = vmatprep.subr.bf16.mxu0 0
        %2337 = vmatpush1.bf16.xpose.msra.mxu0 0
        %2338 = vmatprep.subr.bf16.mxu0 0
        %2339 = vmatpush1.bf16.xpose.msra.mxu0 0
        %2340 = vmatprep.subr.bf16.mxu0 0
        %2341 = vmatpush1.bf16.xpose.msra.mxu0 0
        %2342 = vmatprep.subr.bf16.mxu0 0
        %2343 = vmatpush1.bf16.xpose.msra.mxu0 0
        %2344 = vmatprep.mubr.bf16.mxu0 0
        %2345 = vmatmul.mubr.bf16.gmra.mrb[0].mxu0 %v2307
        %v2346 = vpop.f32.mrb[0].mxu0
        %v2347 = vadd.f32 0.0, %v2346
        %v2348 = vpop.f32.mrb[0].mxu0
        %v2349 = vpop.f32.mrb[0].mxu0
        %v2350 = vpop.f32.mrb[0].mxu0
        %2351 = vdwg.mxu0
        %2352 = vxpose.xlu0.b32.start [1/16] %v2209, 128
        %2353 = vxpose.xlu0.b32.cont [2/16] 0.0, 128
        %2354 = vxpose.xlu0.b32.cont [3/16] 0.0, 128
        %2355 = vxpose.xlu0.b32.cont [4/16] 0.0, 128
        %2356 = vxpose.xlu0.b32.cont [5/16] 0.0, 128
        %2357 = vxpose.xlu0.b32.cont [6/16] 0.0, 128
        %2358 = vxpose.xlu0.b32.cont [7/16] 0.0, 128
        %2359 = vxpose.xlu0.b32.cont [8/16] 0.0, 128
        %2360 = vxpose.xlu0.b32.cont [9/16] 0.0, 128
        %2361 = vxpose.xlu0.b32.cont [10/16] 0.0, 128
        %2362 = vxpose.xlu0.b32.cont [11/16] 0.0, 128
        %2363 = vxpose.xlu0.b32.cont [12/16] 0.0, 128
        %2364 = vxpose.xlu0.b32.cont [13/16] 0.0, 128
        %2365 = vxpose.xlu0.b32.cont [14/16] 0.0, 128
        %2366 = vxpose.xlu0.b32.cont [15/16] 0.0, 128
        %2367 = vxpose.xlu0.b32.end [16/16] 0.0, 128
        %v2368 = vpop.trf.xlu0
        %v2369 = vpop.trf.xlu0
        %v2370 = vpop.trf.xlu0
        %v2371 = vpop.trf.xlu0
        %v2372 = vpop.trf.xlu0
        %v2373 = vpop.trf.xlu0
        %v2374 = vpop.trf.xlu0
        %v2375 = vpop.trf.xlu0
        %v2376 = vpop.trf.xlu0
        %v2377 = vpop.trf.xlu0
        %v2378 = vpop.trf.xlu0
        %v2379 = vpop.trf.xlu0
        %v2380 = vpop.trf.xlu0
        %v2381 = vpop.trf.xlu0
        %v2382 = vpop.trf.xlu0
        %v2383 = vpop.trf.xlu0
        %2384 = vxpose.xlu0.b32.start [1/16] %v2255, 128
        %2385 = vxpose.xlu0.b32.cont [2/16] 0.0, 128
        %2386 = vxpose.xlu0.b32.cont [3/16] 0.0, 128
        %2387 = vxpose.xlu0.b32.cont [4/16] 0.0, 128
        %2388 = vxpose.xlu0.b32.cont [5/16] 0.0, 128
        %2389 = vxpose.xlu0.b32.cont [6/16] 0.0, 128
        %2390 = vxpose.xlu0.b32.cont [7/16] 0.0, 128
        %2391 = vxpose.xlu0.b32.cont [8/16] 0.0, 128
        %2392 = vxpose.xlu0.b32.cont [9/16] 0.0, 128
        %2393 = vxpose.xlu0.b32.cont [10/16] 0.0, 128
        %2394 = vxpose.xlu0.b32.cont [11/16] 0.0, 128
        %2395 = vxpose.xlu0.b32.cont [12/16] 0.0, 128
        %2396 = vxpose.xlu0.b32.cont [13/16] 0.0, 128
        %2397 = vxpose.xlu0.b32.cont [14/16] 0.0, 128
        %2398 = vxpose.xlu0.b32.cont [15/16] 0.0, 128
        %2399 = vxpose.xlu0.b32.end [16/16] 0.0, 128
        %v2400 = vpop.trf.xlu0
        %v2401 = vpop.trf.xlu0
        %v2402 = vpop.trf.xlu0
        %v2403 = vpop.trf.xlu0
        %v2404 = vpop.trf.xlu0
        %v2405 = vpop.trf.xlu0
        %v2406 = vpop.trf.xlu0
        %v2407 = vpop.trf.xlu0
        %v2408 = vpop.trf.xlu0
        %v2409 = vpop.trf.xlu0
        %v2410 = vpop.trf.xlu0
        %v2411 = vpop.trf.xlu0
        %v2412 = vpop.trf.xlu0
        %v2413 = vpop.trf.xlu0
        %v2414 = vpop.trf.xlu0
        %v2415 = vpop.trf.xlu0
        %2416 = vxpose.xlu0.b32.start [1/16] %v2301, 128
        %2417 = vxpose.xlu0.b32.cont [2/16] 0.0, 128
        %2418 = vxpose.xlu0.b32.cont [3/16] 0.0, 128
        %2419 = vxpose.xlu0.b32.cont [4/16] 0.0, 128
        %2420 = vxpose.xlu0.b32.cont [5/16] 0.0, 128
        %2421 = vxpose.xlu0.b32.cont [6/16] 0.0, 128
        %2422 = vxpose.xlu0.b32.cont [7/16] 0.0, 128
        %2423 = vxpose.xlu0.b32.cont [8/16] 0.0, 128
        %2424 = vxpose.xlu0.b32.cont [9/16] 0.0, 128
        %2425 = vxpose.xlu0.b32.cont [10/16] 0.0, 128
        %2426 = vxpose.xlu0.b32.cont [11/16] 0.0, 128
        %2427 = vxpose.xlu0.b32.cont [12/16] 0.0, 128
        %2428 = vxpose.xlu0.b32.cont [13/16] 0.0, 128
        %2429 = vxpose.xlu0.b32.cont [14/16] 0.0, 128
        %2430 = vxpose.xlu0.b32.cont [15/16] 0.0, 128
        %2431 = vxpose.xlu0.b32.end [16/16] 0.0, 128
        %v2432 = vpop.trf.xlu0
        %v2433 = vpop.trf.xlu0
        %v2434 = vpop.trf.xlu0
        %v2435 = vpop.trf.xlu0
        %v2436 = vpop.trf.xlu0
        %v2437 = vpop.trf.xlu0
        %v2438 = vpop.trf.xlu0
        %v2439 = vpop.trf.xlu0
        %v2440 = vpop.trf.xlu0
        %v2441 = vpop.trf.xlu0
        %v2442 = vpop.trf.xlu0
        %v2443 = vpop.trf.xlu0
        %v2444 = vpop.trf.xlu0
        %v2445 = vpop.trf.xlu0
        %v2446 = vpop.trf.xlu0
        %v2447 = vpop.trf.xlu0
        %2448 = vxpose.xlu0.b32.start [1/16] %v2347, 128
        %2449 = vxpose.xlu0.b32.cont [2/16] 0.0, 128
        %2450 = vxpose.xlu0.b32.cont [3/16] 0.0, 128
        %2451 = vxpose.xlu0.b32.cont [4/16] 0.0, 128
        %2452 = vxpose.xlu0.b32.cont [5/16] 0.0, 128
        %2453 = vxpose.xlu0.b32.cont [6/16] 0.0, 128
        %2454 = vxpose.xlu0.b32.cont [7/16] 0.0, 128
        %2455 = vxpose.xlu0.b32.cont [8/16] 0.0, 128
        %2456 = vxpose.xlu0.b32.cont [9/16] 0.0, 128
        %2457 = vxpose.xlu0.b32.cont [10/16] 0.0, 128
        %2458 = vxpose.xlu0.b32.cont [11/16] 0.0, 128
        %2459 = vxpose.xlu0.b32.cont [12/16] 0.0, 128
        %2460 = vxpose.xlu0.b32.cont [13/16] 0.0, 128
        %2461 = vxpose.xlu0.b32.cont [14/16] 0.0, 128
        %2462 = vxpose.xlu0.b32.cont [15/16] 0.0, 128
        %2463 = vxpose.xlu0.b32.end [16/16] 0.0, 128
        %v2464 = vpop.trf.xlu0
        %v2465 = vpop.trf.xlu0
        %v2466 = vpop.trf.xlu0
        %v2467 = vpop.trf.xlu0
        %v2468 = vpop.trf.xlu0
        %v2469 = vpop.trf.xlu0
        %v2470 = vpop.trf.xlu0
        %v2471 = vpop.trf.xlu0
        %v2472 = vpop.trf.xlu0
        %v2473 = vpop.trf.xlu0
        %v2474 = vpop.trf.xlu0
        %v2475 = vpop.trf.xlu0
        %v2476 = vpop.trf.xlu0
        %v2477 = vpop.trf.xlu0
        %v2478 = vpop.trf.xlu0
        %v2479 = vpop.trf.xlu0
        %v2480 = vcombine.low %v2368, %v2432
        %v2481 = vcombine.high %v2368, %v2432
        %v2483 = vunpack.c.l.s4 1983009808
        %v2484 = vunpack.c.0.s8 %v2483
        %v2485 = vlaneseq
        %v2486 = vshrl.u32 %v2485, 7
        %v2487 = vsub.s32 %v2484, %v2486
        %v2488 = vrot.slane %v2480, %v2487
        %v2490 = vunpack.c.l.s4 1983009808
        %v2491 = vunpack.c.0.s8 %v2490
        %v2492 = vlaneseq
        %v2493 = vshrl.u32 %v2492, 7
        %v2494 = vsub.s32 %v2491, %v2493
        %v2495 = vrot.slane %v2481, %v2494
        %v2496 = vcombine.low %v2400, %v2464
        %v2497 = vcombine.high %v2400, %v2464
        %v2499 = vunpack.c.l.s4 1983009808
        %v2500 = vunpack.c.0.s8 %v2499
        %v2501 = vlaneseq
        %v2502 = vshrl.u32 %v2501, 7
        %v2503 = vsub.s32 %v2500, %v2502
        %v2504 = vrot.slane %v2496, %v2503
        %v2506 = vunpack.c.l.s4 1983009808
        %v2507 = vunpack.c.0.s8 %v2506
        %v2508 = vlaneseq
        %v2509 = vshrl.u32 %v2508, 7
        %v2510 = vsub.s32 %v2507, %v2509
        %v2511 = vrot.slane %v2497, %v2510
        %v2512 = vcombine.low %v2488, %v2504
        %v2513 = vcombine.high %v2488, %v2504
        %v2515 = vunpack.c.l.s4 1934713408
        %v2516 = vunpack.c.0.s8 %v2515
        %v2517 = vlaneseq
        %v2518 = vshrl.u32 %v2517, 7
        %v2519 = vsub.s32 %v2516, %v2518
        %v2520 = vrot.slane %v2512, %v2519
        %v2522 = vunpack.c.l.s4 1934713408
        %v2523 = vunpack.c.0.s8 %v2522
        %v2524 = vlaneseq
        %v2525 = vshrl.u32 %v2524, 7
        %v2526 = vsub.s32 %v2523, %v2525
        %v2527 = vrot.slane %v2513, %v2526
        %v2528 = vcombine.low %v2495, %v2511
        %v2529 = vcombine.high %v2495, %v2511
        %v2531 = vunpack.c.l.s4 1934713408
        %v2532 = vunpack.c.0.s8 %v2531
        %v2533 = vlaneseq
        %v2534 = vshrl.u32 %v2533, 7
        %v2535 = vsub.s32 %v2532, %v2534
        %v2536 = vrot.slane %v2528, %v2535
        %v2538 = vunpack.c.l.s4 1934713408
        %v2539 = vunpack.c.0.s8 %v2538
        %v2540 = vlaneseq
        %v2541 = vshrl.u32 %v2540, 7
        %v2542 = vsub.s32 %v2539, %v2541
        %v2543 = vrot.slane %v2529, %v2542
        %v2544 = vcombine.high %v2520, 0.0
        %v2545 = vcombine.high %v2527, 0.0
        %v2546 = vcombine.high %v2536, 0.0
        %v2547 = vcombine.high %v2543, 0.0
        %v2548 = vcombine.low %v2520, %v2527
        %v2550 = vunpack.c.l.s4 1983009808
        %v2551 = vunpack.c.0.s8 %v2550
        %v2552 = vlaneseq
        %v2553 = vshrl.u32 %v2552, 7
        %v2554 = vsub.s32 %v2551, %v2553
        %v2555 = vrot.slane %v2548, %v2554
        %v2556 = vcombine.low %v2544, %v2545
        %v2558 = vunpack.c.l.s4 1983009808
        %v2559 = vunpack.c.0.s8 %v2558
        %v2560 = vlaneseq
        %v2561 = vshrl.u32 %v2560, 7
        %v2562 = vsub.s32 %v2559, %v2561
        %v2563 = vrot.slane %v2556, %v2562
        %v2564 = vcombine.low %v2536, %v2543
        %v2566 = vunpack.c.l.s4 1983009808
        %v2567 = vunpack.c.0.s8 %v2566
        %v2568 = vlaneseq
        %v2569 = vshrl.u32 %v2568, 7
        %v2570 = vsub.s32 %v2567, %v2569
        %v2571 = vrot.slane %v2564, %v2570
        %v2572 = vcombine.low %v2546, %v2547
        %v2574 = vunpack.c.l.s4 1983009808
        %v2575 = vunpack.c.0.s8 %v2574
        %v2576 = vlaneseq
        %v2577 = vshrl.u32 %v2576, 7
        %v2578 = vsub.s32 %v2575, %v2577
        %v2579 = vrot.slane %v2572, %v2578
        %v2580 = vcombine.low %v2555, %v2563
        %v2581 = vcombine.high %v2555, %v2563
        %v2583 = vunpack.c.l.s4 1934713408
        %v2584 = vunpack.c.0.s8 %v2583
        %v2585 = vlaneseq
        %v2586 = vshrl.u32 %v2585, 7
        %v2587 = vsub.s32 %v2584, %v2586
        %v2588 = vrot.slane %v2580, %v2587
        %v2590 = vunpack.c.l.s4 1934713408
        %v2591 = vunpack.c.0.s8 %v2590
        %v2592 = vlaneseq
        %v2593 = vshrl.u32 %v2592, 7
        %v2594 = vsub.s32 %v2591, %v2593
        %v2595 = vrot.slane %v2581, %v2594
        %v2596 = vcombine.low %v2571, %v2579
        %v2597 = vcombine.high %v2571, %v2579
        %v2599 = vunpack.c.l.s4 1934713408
        %v2600 = vunpack.c.0.s8 %v2599
        %v2601 = vlaneseq
        %v2602 = vshrl.u32 %v2601, 7
        %v2603 = vsub.s32 %v2600, %v2602
        %v2604 = vrot.slane %v2596, %v2603
        %v2606 = vunpack.c.l.s4 1934713408
        %v2607 = vunpack.c.0.s8 %v2606
        %v2608 = vlaneseq
        %v2609 = vshrl.u32 %v2608, 7
        %v2610 = vsub.s32 %v2607, %v2609
        %v2611 = vrot.slane %v2597, %v2610
        %v2612 = vcombine.low %v2588, %v2604
        %v2613 = vcombine.high %v2588, %v2604
        %v2614 = vcombine.low %v2595, %v2611
        %v2615 = vcombine.high %v2595, %v2611
        %2617 = vrot.lane.b32.xlu0 %v2613, 8
        %v2618 = vpop.permute.xlu0 %2617
        %2621 = vrot.lane.b32.xlu0 %v2614, 16
        %v2622 = vpop.permute.xlu0 %2621
        %2625 = vrot.lane.b32.xlu0 %v2615, 24
        %v2626 = vpop.permute.xlu0 %2625
        %v2628 = vsel %vm1510, %v2612, %v2618
        %vm2629 = vcmask 130048
        %v2630 = vsel %vm2629, %v2628, %v2622
        %vm2631 = vcmask 195584
        %v2632 = vsel %vm2631, %v2630, %v2626
        %v2633 = vpack.c.bf16 %v2632, %v2632
        %v2634 = vld [vmem:[%s9] sm:$0xf]
        %v2635 = vld [vmem:[%s9 + $0x4] sm:$0xf]
        %v2636 = vld [vmem:[%s9 + $0x8] sm:$0xf]
        %v2637 = vld [vmem:[%s9 + $0xc] sm:$0xf]
        %v2638 = vld [vmem:[%s10] sm:$0x1]
        %v2639 = vunpack.c.l.bf16 %v2638
        %v2640 = vlaneseq
        %v2641 = vshrl.u32 %v2640, 7
        %v2642 = vsub.s32 0, %v2641
        %v2643 = vrot.slane %v2639, %v2642
        %v2648 = vunpack.c.l.b16 %v2634
        %v2649 = vunpack.c.l.b16 %v2635
        %v2650 = vunpack.c.l.b16 %v2636
        %v2651 = vunpack.c.l.b16 %v2637
        %v2652 = vpack.c.b16 %v2649, %v2648
        %v2653 = vpack.c.b16 %v2651, %v2650
        %v2657 = vsel %vm548, %v2633, 0
        %2659 = vmatprep.subr.bf16.mxu0 0
        %2660 = vmatpush1.bf16.msra.mxu0 %v2652
        %2661 = vmatprep.subr.bf16.mxu0 0
        %2662 = vmatpush1.bf16.msra.mxu0 %v2653
        %2663 = vmatprep.subr.bf16.mxu0 0
        %2664 = vmatpush1.bf16.msra.mxu0 0
        %2665 = vmatprep.subr.bf16.mxu0 0
        %2666 = vmatpush1.bf16.msra.mxu0 0
        %2667 = vmatprep.subr.bf16.mxu0 0
        %2668 = vmatpush1.bf16.msra.mxu0 0
        %2669 = vmatprep.subr.bf16.mxu0 0
        %2670 = vmatpush1.bf16.msra.mxu0 0
        %2671 = vmatprep.subr.bf16.mxu0 0
        %2672 = vmatpush1.bf16.msra.mxu0 0
        %2673 = vmatprep.subr.bf16.mxu0 0
        %2674 = vmatpush1.bf16.msra.mxu0 0
        %2675 = vmatprep.subr.bf16.mxu0 0
        %2676 = vmatpush1.bf16.msra.mxu0 0
        %2677 = vmatprep.subr.bf16.mxu0 0
        %2678 = vmatpush1.bf16.msra.mxu0 0
        %2679 = vmatprep.subr.bf16.mxu0 0
        %2680 = vmatpush1.bf16.msra.mxu0 0
        %2681 = vmatprep.subr.bf16.mxu0 0
        %2682 = vmatpush1.bf16.msra.mxu0 0
        %2683 = vmatprep.subr.bf16.mxu0 0
        %2684 = vmatpush1.bf16.msra.mxu0 0
        %2685 = vmatprep.subr.bf16.mxu0 0
        %2686 = vmatpush1.bf16.msra.mxu0 0
        %2687 = vmatprep.subr.bf16.mxu0 0
        %2688 = vmatpush1.bf16.msra.mxu0 0
        %2689 = vmatprep.subr.bf16.mxu0 0
        %2690 = vmatpush1.bf16.msra.mxu0 0
        %2691 = vmatprep.mubr.bf16.mxu0 0
        %2692 = vmatmul.mubr.bf16.gmra.mrb[0].mxu0 %v2657
        %v2693 = vpop.f32.mrb[0].mxu0
        %v2694 = vadd.f32 %v2643, %v2693
        %v2695 = vpop.f32.mrb[0].mxu0
        %v2696 = vpop.f32.mrb[0].mxu0
        %v2697 = vpop.f32.mrb[0].mxu0
        %2698 = vdwg.mxu0
        %v2699 = vpack.c.bf16 %v2694, %v2694
        %v2700 = vunpack.c.l.bf16 %v2699
        %v2701 = vadd.f32 %v2700, %v545
        %v2702 = vld [vmem:[%s11] sm:$0x1]
        %v2703 = vld [vmem:[%s12] sm:$0x1]
        %v2704 = vsel %vm548, %v2701, 0.0
        %2705 = vadd.xlane.f32.xlu0 %v2704
        %v2706 = vpop.xlane.xlu0 %2705
        %v2707 = vmul.f32 %v2706, %v552
        %v2708 = vsub.f32 %v2701, %v2707
        %v2709 = vmul.f32 %v2708, %v2708
        %v2710 = vsel %vm548, %v2709, 0.0
        %2711 = vadd.xlane.f32.xlu0 %v2710
        %v2712 = vpop.xlane.xlu0 %2711
        %v2713 = vmul.f32 %v2712, %v552
        %v2714 = vadd.f32 %v2713, 1e-05
        %v2715 = vrsqrt.pop %v2714
        %v2716 = vmul.f32 %v2708, %v2715
        %v2718 = vlaneseq
        %v2719 = vshrl.u32 %v2718, 7
        %v2720 = vsub.s32 0, %v2719
        %v2721 = vrot.slane %v2702, %v2720
        %v2723 = vmul.f32 %v2716, %v2721
        %v2725 = vlaneseq
        %v2726 = vshrl.u32 %v2725, 7
        %v2727 = vsub.s32 0, %v2726
        %v2728 = vrot.slane %v2703, %v2727
        %v2730 = vadd.f32 %v2723, %v2728
        %v2731 = vld [vmem:[%s13] sm:$0xff]
        %v2732 = vld [vmem:[%s13 + $0x8] sm:$0xff]
        %v2733 = vld [vmem:[%s13 + $0x10] sm:$0xff]
        %v2734 = vld [vmem:[%s13 + $0x18] sm:$0xff]
        %v2735 = vld [vmem:[%s14] sm:$0x1]
        %v2737 = vlaneseq
        %v2738 = vshrl.u32 %v2737, 7
        %v2739 = vsub.s32 0, %v2738
        %v2740 = vrot.slane %v2735, %v2739
        %v2743 = vsel %vm548, %v2730, 0
        %2745 = vmatprep.subr.mxu0 0.0
        %2746 = vmatpush1.msra.mxu0 %v2731
        %2747 = vmatprep.subr.mxu0 0.0
        %2748 = vmatpush1.msra.mxu0 %v2732
        %2749 = vmatprep.subr.mxu0 0.0
        %2750 = vmatpush1.msra.mxu0 %v2733
        %2751 = vmatprep.subr.mxu0 0.0
        %2752 = vmatpush1.msra.mxu0 %v2734
        %2753 = vmatprep.subr.mxu0 0.0
        %2754 = vmatpush1.msra.mxu0 0.0
        %2755 = vmatprep.subr.mxu0 0.0
        %2756 = vmatpush1.msra.mxu0 0.0
        %2757 = vmatprep.subr.mxu0 0.0
        %2758 = vmatpush1.msra.mxu0 0.0
        %2759 = vmatprep.subr.mxu0 0.0
        %2760 = vmatpush1.msra.mxu0 0.0
        %2761 = vmatprep.subr.mxu0 0.0
        %2762 = vmatpush1.msra.mxu0 0.0
        %2763 = vmatprep.subr.mxu0 0.0
        %2764 = vmatpush1.msra.mxu0 0.0
        %2765 = vmatprep.subr.mxu0 0.0
        %2766 = vmatpush1.msra.mxu0 0.0
        %2767 = vmatprep.subr.mxu0 0.0
        %2768 = vmatpush1.msra.mxu0 0.0
        %2769 = vmatprep.subr.mxu0 0.0
        %2770 = vmatpush1.msra.mxu0 0.0
        %2771 = vmatprep.subr.mxu0 0.0
        %2772 = vmatpush1.msra.mxu0 0.0
        %2773 = vmatprep.subr.mxu0 0.0
        %2774 = vmatpush1.msra.mxu0 0.0
        %2775 = vmatprep.subr.mxu0 0.0
        %2776 = vmatpush1.msra.mxu0 0.0
        %2777 = vmatprep.subr.mxu0 0.0
        %2778 = vmatpush1.msra.mxu0 0.0
        %2779 = vmatprep.subr.mxu0 0.0
        %2780 = vmatpush1.msra.mxu0 0.0
        %2781 = vmatprep.subr.mxu0 0.0
        %2782 = vmatpush1.msra.mxu0 0.0
        %2783 = vmatprep.subr.mxu0 0.0
        %2784 = vmatpush1.msra.mxu0 0.0
        %2785 = vmatprep.subr.mxu0 0.0
        %2786 = vmatpush1.msra.mxu0 0.0
        %2787 = vmatprep.subr.mxu0 0.0
        %2788 = vmatpush1.msra.mxu0 0.0
        %2789 = vmatprep.subr.mxu0 0.0
        %2790 = vmatpush1.msra.mxu0 0.0
        %2791 = vmatprep.subr.mxu0 0.0
        %2792 = vmatpush1.msra.mxu0 0.0
        %2793 = vmatprep.subr.mxu0 0.0
        %2794 = vmatpush1.msra.mxu0 0.0
        %2795 = vmatprep.subr.mxu0 0.0
        %2796 = vmatpush1.msra.mxu0 0.0
        %2797 = vmatprep.subr.mxu0 0.0
        %2798 = vmatpush1.msra.mxu0 0.0
        %2799 = vmatprep.subr.mxu0 0.0
        %2800 = vmatpush1.msra.mxu0 0.0
        %2801 = vmatprep.subr.mxu0 0.0
        %2802 = vmatpush1.msra.mxu0 0.0
        %2803 = vmatprep.subr.mxu0 0.0
        %2804 = vmatpush1.msra.mxu0 0.0
        %2805 = vmatprep.subr.mxu0 0.0
        %2806 = vmatpush1.msra.mxu0 0.0
        %2807 = vmatprep.subr.mxu0 0.0
        %2808 = vmatpush1.msra.mxu0 0.0
        %2809 = vmatprep.mubr.f32.mxu0 0.0
        %2810 = vmatmul.mubr.f32.gmra.mrb[0].mxu0 %v2743
        %v2811 = vpop.f32.mrb[0].mxu0
        %v2812 = vadd.f32 %v2740, %v2811
        %v2813 = vpop.f32.mrb[0].mxu0
        %2814 = vdwg.mxu0
        %v2815 = vmul.f32 %v2812, 0.5
        %v2816 = vmul.f32 %v2812, 0.044715
        %v2817 = vmul.f32 %v2816, %v2812
        %v2818 = vmul.f32 %v2817, %v2812
        %v2819 = vadd.f32 %v2812, %v2818
        %v2820 = vmul.f32 %v2819, 0.7978846
        %v2821 = vtanh.pop %v2820
        %v2822 = vadd.f32 %v2821, 1.0
        %v2823 = vmul.f32 %v2815, %v2822
        %v2824 = vld [vmem:[%s15] sm:$0xff]
        %v2825 = vld [vmem:[%s15 + $0x8] sm:$0xff]
        %v2826 = vld [vmem:[%s15 + $0x10] sm:$0xff]
        %v2827 = vld [vmem:[%s15 + $0x18] sm:$0xff]
        %v2828 = vld [vmem:[%s15 + $0x20] sm:$0xff]
        %v2829 = vld [vmem:[%s15 + $0x28] sm:$0xff]
        %v2830 = vld [vmem:[%s15 + $0x30] sm:$0xff]
        %v2831 = vld [vmem:[%s15 + $0x38] sm:$0xff]
        %v2832 = vld [vmem:[%s15 + $0x40] sm:$0xff]
        %v2833 = vld [vmem:[%s15 + $0x48] sm:$0xff]
        %v2834 = vld [vmem:[%s15 + $0x50] sm:$0xff]
        %v2835 = vld [vmem:[%s15 + $0x58] sm:$0xff]
        %v2836 = vld [vmem:[%s15 + $0x60] sm:$0xff]
        %v2837 = vld [vmem:[%s15 + $0x68] sm:$0xff]
        %v2838 = vld [vmem:[%s15 + $0x70] sm:$0xff]
        %v2839 = vld [vmem:[%s15 + $0x78] sm:$0xff]
        %v2840 = vld [vmem:[%s16] sm:$0x1]
        %v2842 = vlaneseq
        %v2843 = vshrl.u32 %v2842, 7
        %v2844 = vsub.s32 0, %v2843
        %v2845 = vrot.slane %v2840, %v2844
        %2847 = vmatprep.subr.mxu0 0.0
        %2848 = vmatpush1.msra.mxu0 %v2824
        %2849 = vmatprep.subr.mxu0 0.0
        %2850 = vmatpush1.msra.mxu0 %v2825
        %2851 = vmatprep.subr.mxu0 0.0
        %2852 = vmatpush1.msra.mxu0 %v2826
        %2853 = vmatprep.subr.mxu0 0.0
        %2854 = vmatpush1.msra.mxu0 %v2827
        %2855 = vmatprep.subr.mxu0 0.0
        %2856 = vmatpush1.msra.mxu0 %v2828
        %2857 = vmatprep.subr.mxu0 0.0
        %2858 = vmatpush1.msra.mxu0 %v2829
        %2859 = vmatprep.subr.mxu0 0.0
        %2860 = vmatpush1.msra.mxu0 %v2830
        %2861 = vmatprep.subr.mxu0 0.0
        %2862 = vmatpush1.msra.mxu0 %v2831
        %2863 = vmatprep.subr.mxu0 0.0
        %2864 = vmatpush1.msra.mxu0 %v2832
        %2865 = vmatprep.subr.mxu0 0.0
        %2866 = vmatpush1.msra.mxu0 %v2833
        %2867 = vmatprep.subr.mxu0 0.0
        %2868 = vmatpush1.msra.mxu0 %v2834
        %2869 = vmatprep.subr.mxu0 0.0
        %2870 = vmatpush1.msra.mxu0 %v2835
        %2871 = vmatprep.subr.mxu0 0.0
        %2872 = vmatpush1.msra.mxu0 %v2836
        %2873 = vmatprep.subr.mxu0 0.0
        %2874 = vmatpush1.msra.mxu0 %v2837
        %2875 = vmatprep.subr.mxu0 0.0
        %2876 = vmatpush1.msra.mxu0 %v2838
        %2877 = vmatprep.subr.mxu0 0.0
        %2878 = vmatpush1.msra.mxu0 %v2839
        %2879 = vmatprep.subr.mxu0 0.0
        %2880 = vmatpush1.msra.mxu0 0.0
        %2881 = vmatprep.subr.mxu0 0.0
        %2882 = vmatpush1.msra.mxu0 0.0
        %2883 = vmatprep.subr.mxu0 0.0
        %2884 = vmatpush1.msra.mxu0 0.0
        %2885 = vmatprep.subr.mxu0 0.0
        %2886 = vmatpush1.msra.mxu0 0.0
        %2887 = vmatprep.subr.mxu0 0.0
        %2888 = vmatpush1.msra.mxu0 0.0
        %2889 = vmatprep.subr.mxu0 0.0
        %2890 = vmatpush1.msra.mxu0 0.0
        %2891 = vmatprep.subr.mxu0 0.0
        %2892 = vmatpush1.msra.mxu0 0.0
        %2893 = vmatprep.subr.mxu0 0.0
        %2894 = vmatpush1.msra.mxu0 0.0
        %2895 = vmatprep.subr.mxu0 0.0
        %2896 = vmatpush1.msra.mxu0 0.0
        %2897 = vmatprep.subr.mxu0 0.0
        %2898 = vmatpush1.msra.mxu0 0.0
        %2899 = vmatprep.subr.mxu0 0.0
        %2900 = vmatpush1.msra.mxu0 0.0
        %2901 = vmatprep.subr.mxu0 0.0
        %2902 = vmatpush1.msra.mxu0 0.0
        %2903 = vmatprep.subr.mxu0 0.0
        %2904 = vmatpush1.msra.mxu0 0.0
        %2905 = vmatprep.subr.mxu0 0.0
        %2906 = vmatpush1.msra.mxu0 0.0
        %2907 = vmatprep.subr.mxu0 0.0
        %2908 = vmatpush1.msra.mxu0 0.0
        %2909 = vmatprep.subr.mxu0 0.0
        %2910 = vmatpush1.msra.mxu0 0.0
        %2911 = vmatprep.mubr.f32.mxu0 0.0
        %2912 = vmatmul.mubr.f32.gmra.mrb[0].mxu0 %v2823
        %v2913 = vpop.f32.mrb[0].mxu0
        %v2914 = vadd.f32 %v2845, %v2913
        %v2915 = vpop.f32.mrb[0].mxu0
        %2916 = vdwg.mxu0
        %2917 = vst.msk [vmem:[%s539] sm:$0xff] %vm548, %v2914
        %s2918 = sand.u32 %s401, 1
        %s2919 = scalar_lea.sflag [#allocation3], %s2918
        %s2920 = sand.u32 %s401, 1
        %s2921 = smul.addr %s2920, 8
        %s2922 = scalar_lea.vmem [#allocation2], %s2921
        // Predicated region
        $region89: #{tpu_custom_call.1} parent=87 // pred_check
          %p2923 = pneg %p411
        $region90: #{tpu_custom_call.1} parent=87 // pred_check_branch
          %2925 = sbr.rel (%p2923) target = $region92
        $region91: #{tpu_custom_call.1} parent=87 // pred_region
          %s2927 = ssub.s32 128, 128
          %2928 = vsyncadd %s2919, %s2927
          %s2929 = smul.addr %s31, 128
          %s2930 = scalar_lea.hbm %s17, %s2929
          %s2932 = sshll.u32 %s2922, 4
          %s2933 = int_to_ptr.vmem [resolvable:$true] %s2932
          %2935 = dma.vmem_to_hbm [thread:$0]  %s2933, 128, %s2930, %s2919
        $region92: #{tpu_custom_call.1} parent=87 // pred_fallthru
          _
      $region88: #{tpu_custom_call.1} parent=5 // pred_fallthru
        _
      %p2936 = scmp.le.s32.totalorder 2, %s26
      // Predicated region
      $region93: #{tpu_custom_call.1} parent=5 // pred_check
        %p2937 = pneg %p2936
      $region94: #{tpu_custom_call.1} parent=5 // pred_check_branch
        %2939 = sbr.rel (%p2937) target = $region96
      $region95: #{tpu_custom_call.1} parent=5 // pred_region
        %s2940 = ssub.s32 %s26, 2
        // Predicated region
        $region97: #{tpu_custom_call.1} parent=95 // pred_check
          %p2941 = pneg %p417
        $region98: #{tpu_custom_call.1} parent=95 // pred_check_branch
          %2943 = sbr.rel (%p2941) target = $region100
        $region99: #{tpu_custom_call.1} parent=95 // pred_region
          %s2944 = sand.u32 %s402, 1
          %s2945 = scalar_lea.sflag [#allocation3], %s2944
          %s2946 = sand.u32 %s402, 1
          %s2947 = smul.addr %s2946, 8
          %s2948 = scalar_lea.vmem [#allocation2], %s2947
          %2949 = dma.done %s2945, 128
        $region100: #{tpu_custom_call.1} parent=95 // pred_fallthru
          _
      $region96: #{tpu_custom_call.1} parent=5 // pred_fallthru
        _
    $region6: #{tpu_custom_call.1} parent=1 // loop_footer
      %s30 = sadd.s32 1, %s26
    $region7: #{tpu_custom_call.1} parent=1 // loop_footer_branch
      %25 = sbr.rel target = $region3
    $region8: #{tpu_custom_call.1} parent=1 // loop_exit
      _
    %2950 = vsyncpa [#allocation3], 1
    %s2951 = scalar_lea.sflag [#allocation3], 1
    %2952 = vsyncpa %s2951, 1

</llo_original>
